<compile_context>
chip_gen: v7x
topology: tpu7x:2x2x1
jax: 0.10.0
libtpu: 0.0.40
codegen_flags: <defaults>
</compile_context>

<pallas_src>
import functools

import jax
import jax.numpy as jnp
from jax.experimental import pallas as pl
from jax.experimental.pallas import tpu as pltpu


_BN_EPS = 1e-5
_E_PAD = 128          # lane-dense head width; sliced to embedding_size outside


# ----------------------------- Pallas kernel --------------------------------


def _fused_kernel(B, C, H, W, KH, KW, inv_hw, training,
                  xpad_ref, conv_w_ref, conv_b_ref, lin_w_ref, head_ref,
                  out_ref):
    """conv3x3 (in-kernel im2col) + ReLU + global-avg-pool + Linear + BatchNorm1d.

    xpad_ref  : (B, H+KH-1, W+KW-1, C) bf16   padded NHWC image (streamed once)
    conv_w_ref: (KH*KW, C, Cf)         bf16   per-tap conv weights
    conv_b_ref: (1, Cf)                f32
    lin_w_ref : (Cf, E_PAD)            bf16
    head_ref  : (5, E_PAD)             f32    rows: lin_b, gamma, beta, run_mean, run_var
    out_ref   : (B, E_PAD)             f32
    """
    Cf = conv_w_ref.shape[-1]

    # Load once; slice/reshape in f32 (robust 32-bit layouts), cast back to
    # bf16 only for the MXU operands.
    xp = xpad_ref[...].astype(jnp.float32)                  # (B, Hp, Wp, C)
    cw = conv_w_ref[...]                                    # (KH*KW, C, Cf) bf16
    hv = head_ref[...]                                      # (5, E_PAD) f32

    # Conv as KH*KW shifted accumulating matmuls with K = C_in (no HBM im2col,
    # no contraction zero-padding).
    z = jnp.zeros((B * H * W, Cf), jnp.float32)
    s = 0
    for dy in range(KH):
        for dx in range(KW):
            xs = xp[:, dy:dy + H, dx:dx + W, :].reshape(B * H * W, C)
            z = z + jnp.dot(xs.astype(jnp.bfloat16), cw[s],
                            preferred_element_type=jnp.float32)
            s += 1

    # Bias + ReLU (f32 VPU), then global average pool over H*W.
    z = jnp.maximum(z + conv_b_ref[...], 0.0)
    feat = jnp.sum(z.reshape(B, H * W, Cf), axis=1) * inv_hw        # (B, Cf) f32

    # Head: Linear (bf16 MXU, f32 accumulate) + BatchNorm1d (f32 epilogue).
    y = jnp.dot(feat.astype(jnp.bfloat16), lin_w_ref[...],
                preferred_element_type=jnp.float32)
    y = y + hv[0:1, :]                                      # linear bias
    if training:                                            # batch statistics
        mean = jnp.mean(y, axis=0, keepdims=True)
        var = jnp.mean((y - mean) ** 2, axis=0, keepdims=True)
    else:                                                   # running statistics
        mean = hv[3:4, :]
        var = hv[4:5, :]
    inv = jax.lax.rsqrt(var + _BN_EPS)
    out_ref[...] = (y - mean) * inv * hv[1:2, :] + hv[2:3, :]


# ------------------------------- Wrapper -------------------------------------


def _vmem_limit_bytes():
    """~7/8 of this generation's physical VMEM (≈112 MiB v5e/v6e, ≈56 MiB v7x)."""
    try:
        return int(pltpu.get_tpu_info().vmem_capacity_bytes * 7 // 8)
    except Exception:
        return 32 * 1024 * 1024


def cnn_model_forward(input_images, params, training=True):
    """Forward pass equivalent to CNNModel.forward (see module docstring)."""
    B, C_in, H, W = input_images.shape
    conv_w = params["conv_w"]              # (KH, KW, C_in, Cf)
    conv_b = params["conv_b"]              # (1, Cf)
    lin_w = params["lin_w"]                # (Cf, E)
    lin_b = params["lin_b"]                # (1, E)
    gamma = params["bn_gamma"]             # (1, E)
    beta = params["bn_beta"]               # (1, E)
    run_mean = params["bn_running_mean"]   # (1, E)
    run_var = params["bn_running_var"]     # (1, E)

    KH, KW, _, Cf = conv_w.shape
    E = lin_w.shape[1]
    assert E <= _E_PAD
    Hp, Wp = H + KH - 1, W + KW - 1

    # NCHW -> NHWC, zero-pad spatial borders (3x3 / stride 1 / pad 1 conv),
    # cast to bf16 so the only large streamed operand is half-width in HBM.
    x = jnp.transpose(input_images, (0, 2, 3, 1))
    xpad = jnp.pad(x, ((0, 0), (KH // 2,) * 2, (KW // 2,) * 2, (0, 0)))
    xpad = xpad.astype(jnp.bfloat16)

    conv_w_r = conv_w.reshape(KH * KW, C_in, Cf).astype(jnp.bfloat16)
    conv_b_f = conv_b.astype(jnp.float32)
    lin_w_p = jnp.pad(lin_w, ((0, 0), (0, _E_PAD - E))).astype(jnp.bfloat16)

    def _pad_vec(v, fill=0.0):
        return jnp.pad(v.astype(jnp.float32), ((0, 0), (0, _E_PAD - E)),
                       constant_values=fill)

    head_vecs = jnp.concatenate(
        [_pad_vec(lin_b), _pad_vec(gamma), _pad_vec(beta),
         _pad_vec(run_mean), _pad_vec(run_var, 1.0)], axis=0)    # (5, E_PAD)

    kernel = functools.partial(_fused_kernel, B, C_in, H, W, KH, KW,
                               1.0 / (H * W), training)

    out_pad = pl.pallas_call(
        kernel,
        out_shape=jax.ShapeDtypeStruct((B, _E_PAD), jnp.float32),
        grid=(1,),   # whole problem is resident at these shapes: one grid step
        in_specs=[
            pl.BlockSpec((B, Hp, Wp, C_in), lambda i: (0, 0, 0, 0)),
            pl.BlockSpec((KH * KW, C_in, Cf), lambda i: (0, 0, 0)),
            pl.BlockSpec((1, Cf), lambda i: (0, 0)),
            pl.BlockSpec((Cf, _E_PAD), lambda i: (0, 0)),
            pl.BlockSpec((5, _E_PAD), lambda i: (0, 0)),
        ],
        out_specs=pl.BlockSpec((B, _E_PAD), lambda i: (0, 0)),
        compiler_params=pltpu.CompilerParams(
            dimension_semantics=("arbitrary",),
            vmem_limit_bytes=_vmem_limit_bytes(),
        ),
    )(xpad, conv_w_r, conv_b_f, lin_w_p, head_vecs)

    return out_pad[:, :E]


# ----------------------- Pure-JAX reference (for checks) ---------------------


def _reference_forward(input_images, params, training=True):
    """Pure-JAX reference with matching operand dtypes (bf16 matmul inputs)."""
    B, C_in, H, W = input_images.shape
    conv_w = params["conv_w"]
    KH, KW, _, Cf = conv_w.shape
    x = jnp.transpose(input_images, (0, 2, 3, 1))
    xpad = jnp.pad(x, ((0, 0), (KH // 2,) * 2, (KW // 2,) * 2, (0, 0)))
    xpad = xpad.astype(jnp.bfloat16).astype(jnp.float32)
    w = conv_w.astype(jnp.bfloat16).astype(jnp.float32)
    z = jnp.zeros((B, H, W, Cf), jnp.float32)
    for dy in range(KH):
        for dx in range(KW):
            z = z + jnp.einsum("bhwc,cf->bhwf",
                               xpad[:, dy:dy + H, dx:dx + W, :], w[dy, dx])
    z = jnp.maximum(z + params["conv_b"], 0.0)
    feat = jnp.mean(z.reshape(B, H * W, Cf), axis=1)
    y = (feat.astype(jnp.bfloat16).astype(jnp.float32)
         @ params["lin_w"].astype(jnp.bfloat16).astype(jnp.float32)
         + params["lin_b"])
    if training:
        mean = jnp.mean(y, axis=0, keepdims=True)
        var = jnp.mean((y - mean) ** 2, axis=0, keepdims=True)
    else:
        mean, var = params["bn_running_mean"], params["bn_running_var"]
    return ((y - mean) * jax.lax.rsqrt(var + _BN_EPS)
            * params["bn_gamma"] + params["bn_beta"])


def init_params(key, c_in=3, feat_dim=256, embedding_size=32):
    """Deterministic synthetic parameters (module __init__ defines the shapes)."""
    k1, k2, k3 = jax.random.split(key, 3)
    conv_w = jax.random.normal(k1, (3, 3, c_in, feat_dim), jnp.float32) * 0.1
    conv_b = jnp.zeros((1, feat_dim), jnp.float32)
    lin_w = (jax.random.normal(k2, (feat_dim, embedding_size), jnp.float32)
             * (1.0 / jnp.sqrt(feat_dim)))
    lin_b = jax.random.normal(k3, (1, embedding_size), jnp.float32) * 0.01
    return {
        "conv_w": conv_w, "conv_b": conv_b,
        "lin_w": lin_w, "lin_b": lin_b,
        "bn_gamma": jnp.ones((1, embedding_size), jnp.float32),
        "bn_beta": jnp.zeros((1, embedding_size), jnp.float32),
        "bn_running_mean": jnp.zeros((1, embedding_size), jnp.float32),
        "bn_running_var": jnp.ones((1, embedding_size), jnp.float32),
    }


if __name__ == "__main__":
    key = jax.random.PRNGKey(0)
    k_img, k_par = jax.random.split(key)

    B, C_in, H, W = 2, 3, 16, 16
    feat_dim, embedding_size = 256, 32

    input_images = jax.random.normal(k_img, (B, C_in, H, W), jnp.float32)
    params = init_params(k_par, c_in=C_in, feat_dim=feat_dim,
                         embedding_size=embedding_size)

    fwd = jax.jit(cnn_model_forward, static_argnames=("training",))

    # Training-mode BatchNorm (nn.Module default state): main forward pass.
    out = jax.block_until_ready(fwd(input_images, params, training=True))
    assert out.shape == (B, embedding_size) and out.dtype == jnp.float32
    assert bool(jnp.all(jnp.isfinite(out)))

    # Eval-mode BatchNorm (running stats): compare against a pure-JAX reference.
    out_eval = jax.block_until_ready(fwd(input_images, params, training=False))
    ref_eval = _reference_forward(input_images, params, training=False)
    assert bool(jnp.allclose(out_eval, ref_eval, atol=1e-2, rtol=1e-2))

    print("KERNEL_OK")
</pallas_src>

<mosaic_0001>
module attributes {stable_mosaic.version = 11 : i64} {
  func.func @_fused_kernel(%arg0: i32, %arg1: memref<2x18x18x3xbf16, #tpu.memory_space<vmem>>, %arg2: memref<9x3x256xbf16, #tpu.memory_space<vmem>>, %arg3: memref<1x256xf32, #tpu.memory_space<vmem>>, %arg4: memref<256x128xbf16, #tpu.memory_space<vmem>>, %arg5: memref<5x128xf32, #tpu.memory_space<vmem>>, %arg6: memref<2x128xf32, #tpu.memory_space<vmem>>) attributes {dimension_semantics = [#tpu.dimension_semantics<arbitrary>], iteration_bounds = array<i64: 1>, scalar_prefetch = 0 : i64, scratch_operands = 0 : i64, tpu.core_type = #tpu.core_type<tc>, window_params = [{pipeline_mode = #tpu.pipeline_mode<synchronous>, transform_indices = @transform_0, window_bounds = array<i64: 2, 18, 18, 3>}, {pipeline_mode = #tpu.pipeline_mode<synchronous>, transform_indices = @transform_1, window_bounds = array<i64: 9, 3, 256>}, {pipeline_mode = #tpu.pipeline_mode<synchronous>, transform_indices = @transform_2, window_bounds = array<i64: 1, 256>}, {pipeline_mode = #tpu.pipeline_mode<synchronous>, transform_indices = @transform_3, window_bounds = array<i64: 256, 128>}, {pipeline_mode = #tpu.pipeline_mode<synchronous>, transform_indices = @transform_4, window_bounds = array<i64: 5, 128>}, {pipeline_mode = #tpu.pipeline_mode<synchronous>, transform_indices = @transform_5, window_bounds = array<i64: 2, 128>}]} {
    %c0 = arith.constant 0 : index
    %c0_0 = arith.constant 0 : index
    %c0_1 = arith.constant 0 : index
    %c0_2 = arith.constant 0 : index
    %0 = vector.load %arg1[%c0, %c0_0, %c0_1, %c0_2] : memref<2x18x18x3xbf16, #tpu.memory_space<vmem>>, vector<2x18x18x3xbf16>
    %1 = arith.extf %0 : vector<2x18x18x3xbf16> to vector<2x18x18x3xf32>
    %c0_3 = arith.constant 0 : index
    %c0_4 = arith.constant 0 : index
    %c0_5 = arith.constant 0 : index
    %2 = vector.load %arg2[%c0_3, %c0_4, %c0_5] : memref<9x3x256xbf16, #tpu.memory_space<vmem>>, vector<9x3x256xbf16>
    %c0_6 = arith.constant 0 : index
    %c0_7 = arith.constant 0 : index
    %3 = vector.load %arg5[%c0_6, %c0_7] : memref<5x128xf32, #tpu.memory_space<vmem>>, vector<5x128xf32>
    %cst = arith.constant 0.000000e+00 : f32
    %4 = vector.broadcast %cst : f32 to vector<512x256xf32>
    %5 = vector.extract_strided_slice %1 {offsets = [0, 0, 0, 0], sizes = [2, 16, 16, 3], strides = [1, 1, 1, 1]} : vector<2x18x18x3xf32> to vector<2x16x16x3xf32>
    %6 = vector.shape_cast %5 : vector<2x16x16x3xf32> to vector<512x3xf32>
    %7 = arith.truncf %6 : vector<512x3xf32> to vector<512x3xbf16>
    %8 = vector.extract_strided_slice %2 {offsets = [0, 0, 0], sizes = [1, 3, 256], strides = [1, 1, 1]} : vector<9x3x256xbf16> to vector<1x3x256xbf16>
    %9 = vector.shape_cast %8 : vector<1x3x256xbf16> to vector<3x256xbf16>
    %cst_8 = arith.constant dense<0.000000e+00> : vector<512x256xf32>
    %10 = tpu.matmul %7, %9, %cst_8 {dimension_numbers = #tpu.dot_dimension_numbers<[1], [0], [0], [1], [0, 0, 1, 1], [], []>} : vector<512x3xbf16>, vector<3x256xbf16>, vector<512x256xf32> -> vector<512x256xf32>
    %11 = arith.addf %4, %10 : vector<512x256xf32>
    %12 = vector.extract_strided_slice %1 {offsets = [0, 0, 1, 0], sizes = [2, 16, 16, 3], strides = [1, 1, 1, 1]} : vector<2x18x18x3xf32> to vector<2x16x16x3xf32>
    %13 = vector.shape_cast %12 : vector<2x16x16x3xf32> to vector<512x3xf32>
    %14 = arith.truncf %13 : vector<512x3xf32> to vector<512x3xbf16>
    %15 = vector.extract_strided_slice %2 {offsets = [1, 0, 0], sizes = [1, 3, 256], strides = [1, 1, 1]} : vector<9x3x256xbf16> to vector<1x3x256xbf16>
    %16 = vector.shape_cast %15 : vector<1x3x256xbf16> to vector<3x256xbf16>
    %cst_9 = arith.constant dense<0.000000e+00> : vector<512x256xf32>
    %17 = tpu.matmul %14, %16, %cst_9 {dimension_numbers = #tpu.dot_dimension_numbers<[1], [0], [0], [1], [0, 0, 1, 1], [], []>} : vector<512x3xbf16>, vector<3x256xbf16>, vector<512x256xf32> -> vector<512x256xf32>
    %18 = arith.addf %11, %17 : vector<512x256xf32>
    %19 = vector.extract_strided_slice %1 {offsets = [0, 0, 2, 0], sizes = [2, 16, 16, 3], strides = [1, 1, 1, 1]} : vector<2x18x18x3xf32> to vector<2x16x16x3xf32>
    %20 = vector.shape_cast %19 : vector<2x16x16x3xf32> to vector<512x3xf32>
    %21 = arith.truncf %20 : vector<512x3xf32> to vector<512x3xbf16>
    %22 = vector.extract_strided_slice %2 {offsets = [2, 0, 0], sizes = [1, 3, 256], strides = [1, 1, 1]} : vector<9x3x256xbf16> to vector<1x3x256xbf16>
    %23 = vector.shape_cast %22 : vector<1x3x256xbf16> to vector<3x256xbf16>
    %cst_10 = arith.constant dense<0.000000e+00> : vector<512x256xf32>
    %24 = tpu.matmul %21, %23, %cst_10 {dimension_numbers = #tpu.dot_dimension_numbers<[1], [0], [0], [1], [0, 0, 1, 1], [], []>} : vector<512x3xbf16>, vector<3x256xbf16>, vector<512x256xf32> -> vector<512x256xf32>
    %25 = arith.addf %18, %24 : vector<512x256xf32>
    %26 = vector.extract_strided_slice %1 {offsets = [0, 1, 0, 0], sizes = [2, 16, 16, 3], strides = [1, 1, 1, 1]} : vector<2x18x18x3xf32> to vector<2x16x16x3xf32>
    %27 = vector.shape_cast %26 : vector<2x16x16x3xf32> to vector<512x3xf32>
    %28 = arith.truncf %27 : vector<512x3xf32> to vector<512x3xbf16>
    %29 = vector.extract_strided_slice %2 {offsets = [3, 0, 0], sizes = [1, 3, 256], strides = [1, 1, 1]} : vector<9x3x256xbf16> to vector<1x3x256xbf16>
    %30 = vector.shape_cast %29 : vector<1x3x256xbf16> to vector<3x256xbf16>
    %cst_11 = arith.constant dense<0.000000e+00> : vector<512x256xf32>
    %31 = tpu.matmul %28, %30, %cst_11 {dimension_numbers = #tpu.dot_dimension_numbers<[1], [0], [0], [1], [0, 0, 1, 1], [], []>} : vector<512x3xbf16>, vector<3x256xbf16>, vector<512x256xf32> -> vector<512x256xf32>
    %32 = arith.addf %25, %31 : vector<512x256xf32>
    %33 = vector.extract_strided_slice %1 {offsets = [0, 1, 1, 0], sizes = [2, 16, 16, 3], strides = [1, 1, 1, 1]} : vector<2x18x18x3xf32> to vector<2x16x16x3xf32>
    %34 = vector.shape_cast %33 : vector<2x16x16x3xf32> to vector<512x3xf32>
    %35 = arith.truncf %34 : vector<512x3xf32> to vector<512x3xbf16>
    %36 = vector.extract_strided_slice %2 {offsets = [4, 0, 0], sizes = [1, 3, 256], strides = [1, 1, 1]} : vector<9x3x256xbf16> to vector<1x3x256xbf16>
    %37 = vector.shape_cast %36 : vector<1x3x256xbf16> to vector<3x256xbf16>
    %cst_12 = arith.constant dense<0.000000e+00> : vector<512x256xf32>
    %38 = tpu.matmul %35, %37, %cst_12 {dimension_numbers = #tpu.dot_dimension_numbers<[1], [0], [0], [1], [0, 0, 1, 1], [], []>} : vector<512x3xbf16>, vector<3x256xbf16>, vector<512x256xf32> -> vector<512x256xf32>
    %39 = arith.addf %32, %38 : vector<512x256xf32>
    %40 = vector.extract_strided_slice %1 {offsets = [0, 1, 2, 0], sizes = [2, 16, 16, 3], strides = [1, 1, 1, 1]} : vector<2x18x18x3xf32> to vector<2x16x16x3xf32>
    %41 = vector.shape_cast %40 : vector<2x16x16x3xf32> to vector<512x3xf32>
    %42 = arith.truncf %41 : vector<512x3xf32> to vector<512x3xbf16>
    %43 = vector.extract_strided_slice %2 {offsets = [5, 0, 0], sizes = [1, 3, 256], strides = [1, 1, 1]} : vector<9x3x256xbf16> to vector<1x3x256xbf16>
    %44 = vector.shape_cast %43 : vector<1x3x256xbf16> to vector<3x256xbf16>
    %cst_13 = arith.constant dense<0.000000e+00> : vector<512x256xf32>
    %45 = tpu.matmul %42, %44, %cst_13 {dimension_numbers = #tpu.dot_dimension_numbers<[1], [0], [0], [1], [0, 0, 1, 1], [], []>} : vector<512x3xbf16>, vector<3x256xbf16>, vector<512x256xf32> -> vector<512x256xf32>
    %46 = arith.addf %39, %45 : vector<512x256xf32>
    %47 = vector.extract_strided_slice %1 {offsets = [0, 2, 0, 0], sizes = [2, 16, 16, 3], strides = [1, 1, 1, 1]} : vector<2x18x18x3xf32> to vector<2x16x16x3xf32>
    %48 = vector.shape_cast %47 : vector<2x16x16x3xf32> to vector<512x3xf32>
    %49 = arith.truncf %48 : vector<512x3xf32> to vector<512x3xbf16>
    %50 = vector.extract_strided_slice %2 {offsets = [6, 0, 0], sizes = [1, 3, 256], strides = [1, 1, 1]} : vector<9x3x256xbf16> to vector<1x3x256xbf16>
    %51 = vector.shape_cast %50 : vector<1x3x256xbf16> to vector<3x256xbf16>
    %cst_14 = arith.constant dense<0.000000e+00> : vector<512x256xf32>
    %52 = tpu.matmul %49, %51, %cst_14 {dimension_numbers = #tpu.dot_dimension_numbers<[1], [0], [0], [1], [0, 0, 1, 1], [], []>} : vector<512x3xbf16>, vector<3x256xbf16>, vector<512x256xf32> -> vector<512x256xf32>
    %53 = arith.addf %46, %52 : vector<512x256xf32>
    %54 = vector.extract_strided_slice %1 {offsets = [0, 2, 1, 0], sizes = [2, 16, 16, 3], strides = [1, 1, 1, 1]} : vector<2x18x18x3xf32> to vector<2x16x16x3xf32>
    %55 = vector.shape_cast %54 : vector<2x16x16x3xf32> to vector<512x3xf32>
    %56 = arith.truncf %55 : vector<512x3xf32> to vector<512x3xbf16>
    %57 = vector.extract_strided_slice %2 {offsets = [7, 0, 0], sizes = [1, 3, 256], strides = [1, 1, 1]} : vector<9x3x256xbf16> to vector<1x3x256xbf16>
    %58 = vector.shape_cast %57 : vector<1x3x256xbf16> to vector<3x256xbf16>
    %cst_15 = arith.constant dense<0.000000e+00> : vector<512x256xf32>
    %59 = tpu.matmul %56, %58, %cst_15 {dimension_numbers = #tpu.dot_dimension_numbers<[1], [0], [0], [1], [0, 0, 1, 1], [], []>} : vector<512x3xbf16>, vector<3x256xbf16>, vector<512x256xf32> -> vector<512x256xf32>
    %60 = arith.addf %53, %59 : vector<512x256xf32>
    %61 = vector.extract_strided_slice %1 {offsets = [0, 2, 2, 0], sizes = [2, 16, 16, 3], strides = [1, 1, 1, 1]} : vector<2x18x18x3xf32> to vector<2x16x16x3xf32>
    %62 = vector.shape_cast %61 : vector<2x16x16x3xf32> to vector<512x3xf32>
    %63 = arith.truncf %62 : vector<512x3xf32> to vector<512x3xbf16>
    %64 = vector.extract_strided_slice %2 {offsets = [8, 0, 0], sizes = [1, 3, 256], strides = [1, 1, 1]} : vector<9x3x256xbf16> to vector<1x3x256xbf16>
    %65 = vector.shape_cast %64 : vector<1x3x256xbf16> to vector<3x256xbf16>
    %cst_16 = arith.constant dense<0.000000e+00> : vector<512x256xf32>
    %66 = tpu.matmul %63, %65, %cst_16 {dimension_numbers = #tpu.dot_dimension_numbers<[1], [0], [0], [1], [0, 0, 1, 1], [], []>} : vector<512x3xbf16>, vector<3x256xbf16>, vector<512x256xf32> -> vector<512x256xf32>
    %67 = arith.addf %60, %66 : vector<512x256xf32>
    %c0_17 = arith.constant 0 : index
    %c0_18 = arith.constant 0 : index
    %68 = vector.load %arg3[%c0_17, %c0_18] : memref<1x256xf32, #tpu.memory_space<vmem>>, vector<1x256xf32>
    %69 = vector.broadcast %68 : vector<1x256xf32> to vector<512x256xf32>
    %70 = arith.addf %67, %69 : vector<512x256xf32>
    %cst_19 = arith.constant 0.000000e+00 : f32
    %71 = vector.broadcast %cst_19 : f32 to vector<512x256xf32>
    %72 = arith.maximumf %70, %71 : vector<512x256xf32>
    %73 = vector.shape_cast %72 : vector<512x256xf32> to vector<2x256x256xf32>
    %cst_20 = arith.constant dense<0.000000e+00> : vector<2x256xf32>
    %74 = vector.multi_reduction <add>, %73, %cst_20 [1] : vector<2x256x256xf32> to vector<2x256xf32>
    %cst_21 = arith.constant 3.906250e-03 : f32
    %75 = vector.broadcast %cst_21 : f32 to vector<2x256xf32>
    %76 = arith.mulf %74, %75 : vector<2x256xf32>
    %77 = arith.truncf %76 : vector<2x256xf32> to vector<2x256xbf16>
    %c0_22 = arith.constant 0 : index
    %c0_23 = arith.constant 0 : index
    %78 = vector.load %arg4[%c0_22, %c0_23] : memref<256x128xbf16, #tpu.memory_space<vmem>>, vector<256x128xbf16>
    %cst_24 = arith.constant dense<0.000000e+00> : vector<2x128xf32>
    %79 = tpu.matmul %77, %78, %cst_24 {dimension_numbers = #tpu.dot_dimension_numbers<[1], [0], [0], [1], [0, 0, 1, 1], [], []>} : vector<2x256xbf16>, vector<256x128xbf16>, vector<2x128xf32> -> vector<2x128xf32>
    %80 = vector.extract_strided_slice %3 {offsets = [0, 0], sizes = [1, 128], strides = [1, 1]} : vector<5x128xf32> to vector<1x128xf32>
    %81 = vector.broadcast %80 : vector<1x128xf32> to vector<2x128xf32>
    %82 = arith.addf %79, %81 : vector<2x128xf32>
    %cst_25 = arith.constant dense<0.000000e+00> : vector<128xf32>
    %83 = vector.multi_reduction <add>, %82, %cst_25 [0] : vector<2x128xf32> to vector<128xf32>
    %84 = vector.shape_cast %83 : vector<128xf32> to vector<1x128xf32>
    %cst_26 = arith.constant 2.000000e+00 : f32
    %85 = vector.broadcast %cst_26 : f32 to vector<1x128xf32>
    %86 = arith.divf %84, %85 : vector<1x128xf32>
    %87 = vector.broadcast %86 : vector<1x128xf32> to vector<2x128xf32>
    %88 = arith.subf %82, %87 : vector<2x128xf32>
    %89 = arith.mulf %88, %88 : vector<2x128xf32>
    %cst_27 = arith.constant dense<0.000000e+00> : vector<128xf32>
    %90 = vector.multi_reduction <add>, %89, %cst_27 [0] : vector<2x128xf32> to vector<128xf32>
    %91 = vector.shape_cast %90 : vector<128xf32> to vector<1x128xf32>
    %cst_28 = arith.constant 2.000000e+00 : f32
    %92 = vector.broadcast %cst_28 : f32 to vector<1x128xf32>
    %93 = arith.divf %91, %92 : vector<1x128xf32>
    %cst_29 = arith.constant 9.99999974E-6 : f32
    %94 = vector.broadcast %cst_29 : f32 to vector<1x128xf32>
    %95 = arith.addf %93, %94 : vector<1x128xf32>
    %96 = math.rsqrt %95 : vector<1x128xf32>
    %97 = vector.broadcast %86 : vector<1x128xf32> to vector<2x128xf32>
    %98 = arith.subf %82, %97 : vector<2x128xf32>
    %99 = vector.broadcast %96 : vector<1x128xf32> to vector<2x128xf32>
    %100 = arith.mulf %98, %99 : vector<2x128xf32>
    %101 = vector.extract_strided_slice %3 {offsets = [1, 0], sizes = [1, 128], strides = [1, 1]} : vector<5x128xf32> to vector<1x128xf32>
    %102 = vector.broadcast %101 : vector<1x128xf32> to vector<2x128xf32>
    %103 = arith.mulf %100, %102 : vector<2x128xf32>
    %104 = vector.extract_strided_slice %3 {offsets = [2, 0], sizes = [1, 128], strides = [1, 1]} : vector<5x128xf32> to vector<1x128xf32>
    %105 = vector.broadcast %104 : vector<1x128xf32> to vector<2x128xf32>
    %106 = arith.addf %103, %105 : vector<2x128xf32>
    %c0_30 = arith.constant 0 : index
    %c0_31 = arith.constant 0 : index
    %107 = vector.load %arg6[%c0_30, %c0_31] : memref<2x128xf32, #tpu.memory_space<vmem>>, vector<2x128xf32>
    tpu.vector_store %arg6[%c0_30, %c0_31], %106 {strides = array<i32>} : memref<2x128xf32, #tpu.memory_space<vmem>>, vector<2x128xf32>,
    return
  }
  func.func @transform_0(%arg0: i32) -> (i32, i32, i32, i32) {
    %c0_i32 = arith.constant 0 : i32
    %c0_i32_0 = arith.constant 0 : i32
    %c0_i32_1 = arith.constant 0 : i32
    %c0_i32_2 = arith.constant 0 : i32
    %c0_i32_3 = arith.constant 0 : i32
    return %c0_i32, %c0_i32_0, %c0_i32_1, %c0_i32_2 : i32, i32, i32, i32
  }
  func.func @transform_1(%arg0: i32) -> (i32, i32, i32) {
    %c0_i32 = arith.constant 0 : i32
    %c0_i32_0 = arith.constant 0 : i32
    %c0_i32_1 = arith.constant 0 : i32
    %c0_i32_2 = arith.constant 0 : i32
    return %c0_i32, %c0_i32_0, %c0_i32_1 : i32, i32, i32
  }
  func.func @transform_2(%arg0: i32) -> (i32, i32) {
    %c0_i32 = arith.constant 0 : i32
    %c0_i32_0 = arith.constant 0 : i32
    %c0_i32_1 = arith.constant 0 : i32
    return %c0_i32, %c0_i32_0 : i32, i32
  }
  func.func @transform_3(%arg0: i32) -> (i32, i32) {
    %c0_i32 = arith.constant 0 : i32
    %c0_i32_0 = arith.constant 0 : i32
    %c0_i32_1 = arith.constant 0 : i32
    return %c0_i32, %c0_i32_0 : i32, i32
  }
  func.func @transform_4(%arg0: i32) -> (i32, i32) {
    %c0_i32 = arith.constant 0 : i32
    %c0_i32_0 = arith.constant 0 : i32
    %c0_i32_1 = arith.constant 0 : i32
    return %c0_i32, %c0_i32_0 : i32, i32
  }
  func.func @transform_5(%arg0: i32) -> (i32, i32) {
    %c0_i32 = arith.constant 0 : i32
    %c0_i32_0 = arith.constant 0 : i32
    %c0_i32_1 = arith.constant 0 : i32
    return %c0_i32, %c0_i32_0 : i32, i32
  }
}

</mosaic_0001>

<llo_original>
// kernel: cnn_model_forward.1
$region0: #{cnn_model_forward.1}
  #allocation0 [shape = 'u32[]', space=smem, size = 0x4, offset = 0x4, fixed_abs, tag = 'smem constant byte address 0x4 - core index']
  #allocation1 [shape = 'u32[144,128]{1,0:T(1,128)}', space=vmem, size = 0x12000, scoped, tag = 'internal scratch']
  %s0 = inlined_call_operand.vmem [shape: bf16[2,18,18,3], index: 0, kind: input, shape index: {}]
  %s1 = inlined_call_operand.vmem [shape: bf16[9,3,256], index: 1, kind: input, shape index: {}]
  %s2 = inlined_call_operand.vmem [shape: f32[1,256], index: 2, kind: input, shape index: {}]
  %s3 = inlined_call_operand.vmem [shape: bf16[256,128], index: 3, kind: input, shape index: {}]
  %s4 = inlined_call_operand.vmem [shape: f32[5,128], index: 4, kind: input, shape index: {}]
  %s5 = inlined_call_operand.hbm [shape: f32[2,128], index: 5, kind: output, shape index: {}]
  %s6 = sld [smem:[#allocation0]]
  $region30: #{cnn_model_forward.1} parent=0
    _
  %s8 = ssub.s32 1, %s6
  %s9 = scalar_select 0, %s8, %s6
  $region1: #{cnn_model_forward.1} parent=0
    #allocation2 [shape = 'u8[1024]{0}', space=vmem, size = 0x400, scoped, tag = 'output window, operand 0, single buffered']
    #allocation3 [shape = 's32[1]{0}', space=sflag, size = 0x4, scoped, tag = 'scoped memory for cnn_model_forward.1']
    %10 = vsyncpa [#allocation3], 0
    // Predicated region
    $region2: #{cnn_model_forward.1} parent=1 // pred_check
      _
    $region3: #{cnn_model_forward.1} parent=1 // pred_check_branch
      %12 = sbr.rel (0) target = $region5
    $region4: #{cnn_model_forward.1} parent=1 // pred_region
      _
    $region5: #{cnn_model_forward.1} parent=1 // pred_fallthru
      _
    // Predicated region
    $region6: #{cnn_model_forward.1} parent=1 // pred_check
      _
    $region7: #{cnn_model_forward.1} parent=1 // pred_check_branch
      %14 = sbr.rel (0) target = $region9
    $region8: #{cnn_model_forward.1} parent=1 // pred_region
      _
    $region9: #{cnn_model_forward.1} parent=1 // pred_fallthru
      _
    // Predicated region
    $region10: #{cnn_model_forward.1} parent=1 // pred_check
      _
    $region11: #{cnn_model_forward.1} parent=1 // pred_check_branch
      %16 = sbr.rel (0) target = $region13
    $region12: #{cnn_model_forward.1} parent=1 // pred_region
      _
    $region13: #{cnn_model_forward.1} parent=1 // pred_fallthru
      _
    // Predicated region
    $region14: #{cnn_model_forward.1} parent=1 // pred_check
      _
    $region15: #{cnn_model_forward.1} parent=1 // pred_check_branch
      %18 = sbr.rel (0) target = $region17
    $region16: #{cnn_model_forward.1} parent=1 // pred_region
      _
    $region17: #{cnn_model_forward.1} parent=1 // pred_fallthru
      _
    // Predicated region
    $region18: #{cnn_model_forward.1} parent=1 // pred_check
      _
    $region19: #{cnn_model_forward.1} parent=1 // pred_check_branch
      %20 = sbr.rel (0) target = $region21
    $region20: #{cnn_model_forward.1} parent=1 // pred_region
      _
    $region21: #{cnn_model_forward.1} parent=1 // pred_fallthru
      _
    %v22 = vld [vmem:[%s0] sm:$0xf]
    %v23 = vld [vmem:[%s0 + $0x4] sm:$0xf]
    %v24 = vld [vmem:[%s0 + $0x8] sm:$0x1]
    %v25 = vld [vmem:[%s0 + $0xc] sm:$0xf]
    %v26 = vld [vmem:[%s0 + $0x10] sm:$0xf]
    %v27 = vld [vmem:[%s0 + $0x14] sm:$0x1]
    %v28 = vld [vmem:[%s0 + $0x18] sm:$0xf]
    %v29 = vld [vmem:[%s0 + $0x1c] sm:$0xf]
    %v30 = vld [vmem:[%s0 + $0x20] sm:$0x1]
    %v31 = vld [vmem:[%s0 + $0x24] sm:$0xf]
    %v32 = vld [vmem:[%s0 + $0x28] sm:$0xf]
    %v33 = vld [vmem:[%s0 + $0x2c] sm:$0x1]
    %v34 = vld [vmem:[%s0 + $0x30] sm:$0xf]
    %v35 = vld [vmem:[%s0 + $0x34] sm:$0xf]
    %v36 = vld [vmem:[%s0 + $0x38] sm:$0x1]
    %v37 = vld [vmem:[%s0 + $0x3c] sm:$0xf]
    %v38 = vld [vmem:[%s0 + $0x40] sm:$0xf]
    %v39 = vld [vmem:[%s0 + $0x44] sm:$0x1]
    %v40 = vld [vmem:[%s0 + $0x48] sm:$0xf]
    %v41 = vld [vmem:[%s0 + $0x4c] sm:$0xf]
    %v42 = vld [vmem:[%s0 + $0x50] sm:$0x1]
    %v43 = vld [vmem:[%s0 + $0x54] sm:$0xf]
    %v44 = vld [vmem:[%s0 + $0x58] sm:$0xf]
    %v45 = vld [vmem:[%s0 + $0x5c] sm:$0x1]
    %v46 = vld [vmem:[%s0 + $0x60] sm:$0xf]
    %v47 = vld [vmem:[%s0 + $0x64] sm:$0xf]
    %v48 = vld [vmem:[%s0 + $0x68] sm:$0x1]
    %v49 = vld [vmem:[%s0 + $0x6c] sm:$0xf]
    %v50 = vld [vmem:[%s0 + $0x70] sm:$0xf]
    %v51 = vld [vmem:[%s0 + $0x74] sm:$0x1]
    %v52 = vld [vmem:[%s0 + $0x78] sm:$0xf]
    %v53 = vld [vmem:[%s0 + $0x7c] sm:$0xf]
    %v54 = vld [vmem:[%s0 + $0x80] sm:$0x1]
    %v55 = vld [vmem:[%s0 + $0x84] sm:$0xf]
    %v56 = vld [vmem:[%s0 + $0x88] sm:$0xf]
    %v57 = vld [vmem:[%s0 + $0x8c] sm:$0x1]
    %v58 = vld [vmem:[%s0 + $0x90] sm:$0xf]
    %v59 = vld [vmem:[%s0 + $0x94] sm:$0xf]
    %v60 = vld [vmem:[%s0 + $0x98] sm:$0x1]
    %v61 = vld [vmem:[%s0 + $0x9c] sm:$0xf]
    %v62 = vld [vmem:[%s0 + $0xa0] sm:$0xf]
    %v63 = vld [vmem:[%s0 + $0xa4] sm:$0x1]
    %v64 = vld [vmem:[%s0 + $0xa8] sm:$0xf]
    %v65 = vld [vmem:[%s0 + $0xac] sm:$0xf]
    %v66 = vld [vmem:[%s0 + $0xb0] sm:$0x1]
    %v67 = vld [vmem:[%s0 + $0xb4] sm:$0xf]
    %v68 = vld [vmem:[%s0 + $0xb8] sm:$0xf]
    %v69 = vld [vmem:[%s0 + $0xbc] sm:$0x1]
    %v70 = vld [vmem:[%s0 + $0xc0] sm:$0xf]
    %v71 = vld [vmem:[%s0 + $0xc4] sm:$0xf]
    %v72 = vld [vmem:[%s0 + $0xc8] sm:$0x1]
    %v73 = vld [vmem:[%s0 + $0xcc] sm:$0xf]
    %v74 = vld [vmem:[%s0 + $0xd0] sm:$0xf]
    %v75 = vld [vmem:[%s0 + $0xd4] sm:$0x1]
    %v76 = vld [vmem:[%s0 + $0xd8] sm:$0xf]
    %v77 = vld [vmem:[%s0 + $0xdc] sm:$0xf]
    %v78 = vld [vmem:[%s0 + $0xe0] sm:$0x1]
    %v79 = vld [vmem:[%s0 + $0xe4] sm:$0xf]
    %v80 = vld [vmem:[%s0 + $0xe8] sm:$0xf]
    %v81 = vld [vmem:[%s0 + $0xec] sm:$0x1]
    %v82 = vld [vmem:[%s0 + $0xf0] sm:$0xf]
    %v83 = vld [vmem:[%s0 + $0xf4] sm:$0xf]
    %v84 = vld [vmem:[%s0 + $0xf8] sm:$0x1]
    %v85 = vld [vmem:[%s0 + $0xfc] sm:$0xf]
    %v86 = vld [vmem:[%s0 + $0x100] sm:$0xf]
    %v87 = vld [vmem:[%s0 + $0x104] sm:$0x1]
    %v88 = vld [vmem:[%s0 + $0x108] sm:$0xf]
    %v89 = vld [vmem:[%s0 + $0x10c] sm:$0xf]
    %v90 = vld [vmem:[%s0 + $0x110] sm:$0x1]
    %v91 = vld [vmem:[%s0 + $0x114] sm:$0xf]
    %v92 = vld [vmem:[%s0 + $0x118] sm:$0xf]
    %v93 = vld [vmem:[%s0 + $0x11c] sm:$0x1]
    %v94 = vld [vmem:[%s0 + $0x120] sm:$0xf]
    %v95 = vld [vmem:[%s0 + $0x124] sm:$0xf]
    %v96 = vld [vmem:[%s0 + $0x128] sm:$0x1]
    %v97 = vld [vmem:[%s0 + $0x12c] sm:$0xf]
    %v98 = vld [vmem:[%s0 + $0x130] sm:$0xf]
    %v99 = vld [vmem:[%s0 + $0x134] sm:$0x1]
    %v100 = vld [vmem:[%s0 + $0x138] sm:$0xf]
    %v101 = vld [vmem:[%s0 + $0x13c] sm:$0xf]
    %v102 = vld [vmem:[%s0 + $0x140] sm:$0x1]
    %v103 = vld [vmem:[%s0 + $0x144] sm:$0xf]
    %v104 = vld [vmem:[%s0 + $0x148] sm:$0xf]
    %v105 = vld [vmem:[%s0 + $0x14c] sm:$0x1]
    %v106 = vld [vmem:[%s0 + $0x150] sm:$0xf]
    %v107 = vld [vmem:[%s0 + $0x154] sm:$0xf]
    %v108 = vld [vmem:[%s0 + $0x158] sm:$0x1]
    %v109 = vld [vmem:[%s0 + $0x15c] sm:$0xf]
    %v110 = vld [vmem:[%s0 + $0x160] sm:$0xf]
    %v111 = vld [vmem:[%s0 + $0x164] sm:$0x1]
    %v112 = vld [vmem:[%s0 + $0x168] sm:$0xf]
    %v113 = vld [vmem:[%s0 + $0x16c] sm:$0xf]
    %v114 = vld [vmem:[%s0 + $0x170] sm:$0x1]
    %v115 = vld [vmem:[%s0 + $0x174] sm:$0xf]
    %v116 = vld [vmem:[%s0 + $0x178] sm:$0xf]
    %v117 = vld [vmem:[%s0 + $0x17c] sm:$0x1]
    %v118 = vld [vmem:[%s0 + $0x180] sm:$0xf]
    %v119 = vld [vmem:[%s0 + $0x184] sm:$0xf]
    %v120 = vld [vmem:[%s0 + $0x188] sm:$0x1]
    %v121 = vld [vmem:[%s0 + $0x18c] sm:$0xf]
    %v122 = vld [vmem:[%s0 + $0x190] sm:$0xf]
    %v123 = vld [vmem:[%s0 + $0x194] sm:$0x1]
    %v124 = vld [vmem:[%s0 + $0x198] sm:$0xf]
    %v125 = vld [vmem:[%s0 + $0x19c] sm:$0xf]
    %v126 = vld [vmem:[%s0 + $0x1a0] sm:$0x1]
    %v127 = vld [vmem:[%s0 + $0x1a4] sm:$0xf]
    %v128 = vld [vmem:[%s0 + $0x1a8] sm:$0xf]
    %v129 = vld [vmem:[%s0 + $0x1ac] sm:$0x1]
    %v130 = vunpack.c.l.bf16 %v22
    %v131 = vunpack.c.l.bf16 %v23
    %v132 = vunpack.c.l.bf16 %v24
    %v133 = vunpack.c.l.bf16 %v25
    %v134 = vunpack.c.l.bf16 %v26
    %v135 = vunpack.c.l.bf16 %v27
    %v136 = vunpack.c.l.bf16 %v28
    %v137 = vunpack.c.l.bf16 %v29
    %v138 = vunpack.c.l.bf16 %v30
    %v139 = vunpack.c.l.bf16 %v31
    %v140 = vunpack.c.l.bf16 %v32
    %v141 = vunpack.c.l.bf16 %v33
    %v142 = vunpack.c.l.bf16 %v34
    %v143 = vunpack.c.l.bf16 %v35
    %v144 = vunpack.c.l.bf16 %v36
    %v145 = vunpack.c.l.bf16 %v37
    %v146 = vunpack.c.l.bf16 %v38
    %v147 = vunpack.c.l.bf16 %v39
    %v148 = vunpack.c.l.bf16 %v40
    %v149 = vunpack.c.l.bf16 %v41
    %v150 = vunpack.c.l.bf16 %v42
    %v151 = vunpack.c.l.bf16 %v43
    %v152 = vunpack.c.l.bf16 %v44
    %v153 = vunpack.c.l.bf16 %v45
    %v154 = vunpack.c.l.bf16 %v46
    %v155 = vunpack.c.l.bf16 %v47
    %v156 = vunpack.c.l.bf16 %v48
    %v157 = vunpack.c.l.bf16 %v49
    %v158 = vunpack.c.l.bf16 %v50
    %v159 = vunpack.c.l.bf16 %v51
    %v160 = vunpack.c.l.bf16 %v52
    %v161 = vunpack.c.l.bf16 %v53
    %v162 = vunpack.c.l.bf16 %v54
    %v163 = vunpack.c.l.bf16 %v55
    %v164 = vunpack.c.l.bf16 %v56
    %v165 = vunpack.c.l.bf16 %v57
    %v166 = vunpack.c.l.bf16 %v58
    %v167 = vunpack.c.l.bf16 %v59
    %v168 = vunpack.c.l.bf16 %v60
    %v169 = vunpack.c.l.bf16 %v61
    %v170 = vunpack.c.l.bf16 %v62
    %v171 = vunpack.c.l.bf16 %v63
    %v172 = vunpack.c.l.bf16 %v64
    %v173 = vunpack.c.l.bf16 %v65
    %v174 = vunpack.c.l.bf16 %v66
    %v175 = vunpack.c.l.bf16 %v67
    %v176 = vunpack.c.l.bf16 %v68
    %v177 = vunpack.c.l.bf16 %v69
    %v178 = vunpack.c.l.bf16 %v70
    %v179 = vunpack.c.l.bf16 %v71
    %v180 = vunpack.c.l.bf16 %v72
    %v181 = vunpack.c.l.bf16 %v73
    %v182 = vunpack.c.l.bf16 %v74
    %v183 = vunpack.c.l.bf16 %v75
    %v184 = vunpack.c.l.bf16 %v76
    %v185 = vunpack.c.l.bf16 %v77
    %v186 = vunpack.c.l.bf16 %v78
    %v187 = vunpack.c.l.bf16 %v79
    %v188 = vunpack.c.l.bf16 %v80
    %v189 = vunpack.c.l.bf16 %v81
    %v190 = vunpack.c.l.bf16 %v82
    %v191 = vunpack.c.l.bf16 %v83
    %v192 = vunpack.c.l.bf16 %v84
    %v193 = vunpack.c.l.bf16 %v85
    %v194 = vunpack.c.l.bf16 %v86
    %v195 = vunpack.c.l.bf16 %v87
    %v196 = vunpack.c.l.bf16 %v88
    %v197 = vunpack.c.l.bf16 %v89
    %v198 = vunpack.c.l.bf16 %v90
    %v199 = vunpack.c.l.bf16 %v91
    %v200 = vunpack.c.l.bf16 %v92
    %v201 = vunpack.c.l.bf16 %v93
    %v202 = vunpack.c.l.bf16 %v94
    %v203 = vunpack.c.l.bf16 %v95
    %v204 = vunpack.c.l.bf16 %v96
    %v205 = vunpack.c.l.bf16 %v97
    %v206 = vunpack.c.l.bf16 %v98
    %v207 = vunpack.c.l.bf16 %v99
    %v208 = vunpack.c.l.bf16 %v100
    %v209 = vunpack.c.l.bf16 %v101
    %v210 = vunpack.c.l.bf16 %v102
    %v211 = vunpack.c.l.bf16 %v103
    %v212 = vunpack.c.l.bf16 %v104
    %v213 = vunpack.c.l.bf16 %v105
    %v214 = vunpack.c.l.bf16 %v106
    %v215 = vunpack.c.l.bf16 %v107
    %v216 = vunpack.c.l.bf16 %v108
    %v217 = vunpack.c.l.bf16 %v109
    %v218 = vunpack.c.l.bf16 %v110
    %v219 = vunpack.c.l.bf16 %v111
    %v220 = vunpack.c.l.bf16 %v112
    %v221 = vunpack.c.l.bf16 %v113
    %v222 = vunpack.c.l.bf16 %v114
    %v223 = vunpack.c.l.bf16 %v115
    %v224 = vunpack.c.l.bf16 %v116
    %v225 = vunpack.c.l.bf16 %v117
    %v226 = vunpack.c.l.bf16 %v118
    %v227 = vunpack.c.l.bf16 %v119
    %v228 = vunpack.c.l.bf16 %v120
    %v229 = vunpack.c.l.bf16 %v121
    %v230 = vunpack.c.l.bf16 %v122
    %v231 = vunpack.c.l.bf16 %v123
    %v232 = vunpack.c.l.bf16 %v124
    %v233 = vunpack.c.l.bf16 %v125
    %v234 = vunpack.c.l.bf16 %v126
    %v235 = vunpack.c.l.bf16 %v127
    %v236 = vunpack.c.l.bf16 %v128
    %v237 = vunpack.c.l.bf16 %v129
    %v238 = vld [vmem:[%s1] sm:$0xf]
    %v239 = vld [vmem:[%s1 + $0x4] sm:$0xf]
    %v240 = vld [vmem:[%s1 + $0x8] sm:$0xf]
    %v241 = vld [vmem:[%s1 + $0xc] sm:$0xf]
    %v242 = vld [vmem:[%s1 + $0x10] sm:$0xf]
    %v243 = vld [vmem:[%s1 + $0x14] sm:$0xf]
    %v244 = vld [vmem:[%s1 + $0x18] sm:$0xf]
    %v245 = vld [vmem:[%s1 + $0x1c] sm:$0xf]
    %v246 = vld [vmem:[%s1 + $0x20] sm:$0xf]
    %v247 = vld [vmem:[%s4] sm:$0x1f]
    %v248 = vpack.c.bf16 %v131, %v130
    %v249 = vpack.c.bf16 %v134, %v133
    %v250 = vpack.c.bf16 %v137, %v136
    %v251 = vpack.c.bf16 %v140, %v139
    %v252 = vpack.c.bf16 %v143, %v142
    %v253 = vpack.c.bf16 %v146, %v145
    %v254 = vpack.c.bf16 %v149, %v148
    %v255 = vpack.c.bf16 %v152, %v151
    %v256 = vpack.c.bf16 %v155, %v154
    %v257 = vpack.c.bf16 %v158, %v157
    %v258 = vpack.c.bf16 %v161, %v160
    %v259 = vpack.c.bf16 %v164, %v163
    %v260 = vpack.c.bf16 %v167, %v166
    %v261 = vpack.c.bf16 %v170, %v169
    %v262 = vpack.c.bf16 %v173, %v172
    %v263 = vpack.c.bf16 %v176, %v175
    %v264 = vpack.c.bf16 %v185, %v184
    %v265 = vpack.c.bf16 %v188, %v187
    %v266 = vpack.c.bf16 %v191, %v190
    %v267 = vpack.c.bf16 %v194, %v193
    %v268 = vpack.c.bf16 %v197, %v196
    %v269 = vpack.c.bf16 %v200, %v199
    %v270 = vpack.c.bf16 %v203, %v202
    %v271 = vpack.c.bf16 %v206, %v205
    %v272 = vpack.c.bf16 %v209, %v208
    %v273 = vpack.c.bf16 %v212, %v211
    %v274 = vpack.c.bf16 %v215, %v214
    %v275 = vpack.c.bf16 %v218, %v217
    %v276 = vpack.c.bf16 %v221, %v220
    %v277 = vpack.c.bf16 %v224, %v223
    %v278 = vpack.c.bf16 %v227, %v226
    %v279 = vpack.c.bf16 %v230, %v229
    %vm376 = vcmask 1046528
    %v377 = vrot.slane %v130, 1
    %v378 = vrot.slane %v131, 1
    %v379 = vsel %vm376, %v377, %v378
    %v380 = vrot.slane %v132, 1
    %v381 = vsel %vm376, %v378, %v380
    %v382 = vrot.slane %v133, 1
    %v383 = vrot.slane %v134, 1
    %v384 = vsel %vm376, %v382, %v383
    %v385 = vrot.slane %v135, 1
    %v386 = vsel %vm376, %v383, %v385
    %v387 = vrot.slane %v136, 1
    %v388 = vrot.slane %v137, 1
    %v389 = vsel %vm376, %v387, %v388
    %v390 = vrot.slane %v138, 1
    %v391 = vsel %vm376, %v388, %v390
    %v392 = vrot.slane %v139, 1
    %v393 = vrot.slane %v140, 1
    %v394 = vsel %vm376, %v392, %v393
    %v395 = vrot.slane %v141, 1
    %v396 = vsel %vm376, %v393, %v395
    %v397 = vrot.slane %v142, 1
    %v398 = vrot.slane %v143, 1
    %v399 = vsel %vm376, %v397, %v398
    %v400 = vrot.slane %v144, 1
    %v401 = vsel %vm376, %v398, %v400
    %v402 = vrot.slane %v145, 1
    %v403 = vrot.slane %v146, 1
    %v404 = vsel %vm376, %v402, %v403
    %v405 = vrot.slane %v147, 1
    %v406 = vsel %vm376, %v403, %v405
    %v407 = vrot.slane %v148, 1
    %v408 = vrot.slane %v149, 1
    %v409 = vsel %vm376, %v407, %v408
    %v410 = vrot.slane %v150, 1
    %v411 = vsel %vm376, %v408, %v410
    %v412 = vrot.slane %v151, 1
    %v413 = vrot.slane %v152, 1
    %v414 = vsel %vm376, %v412, %v413
    %v415 = vrot.slane %v153, 1
    %v416 = vsel %vm376, %v413, %v415
    %v417 = vrot.slane %v154, 1
    %v418 = vrot.slane %v155, 1
    %v419 = vsel %vm376, %v417, %v418
    %v420 = vrot.slane %v156, 1
    %v421 = vsel %vm376, %v418, %v420
    %v422 = vrot.slane %v157, 1
    %v423 = vrot.slane %v158, 1
    %v424 = vsel %vm376, %v422, %v423
    %v425 = vrot.slane %v159, 1
    %v426 = vsel %vm376, %v423, %v425
    %v427 = vrot.slane %v160, 1
    %v428 = vrot.slane %v161, 1
    %v429 = vsel %vm376, %v427, %v428
    %v430 = vrot.slane %v162, 1
    %v431 = vsel %vm376, %v428, %v430
    %v432 = vrot.slane %v163, 1
    %v433 = vrot.slane %v164, 1
    %v434 = vsel %vm376, %v432, %v433
    %v435 = vrot.slane %v165, 1
    %v436 = vsel %vm376, %v433, %v435
    %v437 = vrot.slane %v166, 1
    %v438 = vrot.slane %v167, 1
    %v439 = vsel %vm376, %v437, %v438
    %v440 = vrot.slane %v168, 1
    %v441 = vsel %vm376, %v438, %v440
    %v442 = vrot.slane %v169, 1
    %v443 = vrot.slane %v170, 1
    %v444 = vsel %vm376, %v442, %v443
    %v445 = vrot.slane %v171, 1
    %v446 = vsel %vm376, %v443, %v445
    %v447 = vrot.slane %v172, 1
    %v448 = vrot.slane %v173, 1
    %v449 = vsel %vm376, %v447, %v448
    %v450 = vrot.slane %v174, 1
    %v451 = vsel %vm376, %v448, %v450
    %v452 = vrot.slane %v175, 1
    %v453 = vrot.slane %v176, 1
    %v454 = vsel %vm376, %v452, %v453
    %v455 = vrot.slane %v177, 1
    %v456 = vsel %vm376, %v453, %v455
    %v457 = vrot.slane %v184, 1
    %v458 = vrot.slane %v185, 1
    %v459 = vsel %vm376, %v457, %v458
    %v460 = vrot.slane %v186, 1
    %v461 = vsel %vm376, %v458, %v460
    %v462 = vrot.slane %v187, 1
    %v463 = vrot.slane %v188, 1
    %v464 = vsel %vm376, %v462, %v463
    %v465 = vrot.slane %v189, 1
    %v466 = vsel %vm376, %v463, %v465
    %v467 = vrot.slane %v190, 1
    %v468 = vrot.slane %v191, 1
    %v469 = vsel %vm376, %v467, %v468
    %v470 = vrot.slane %v192, 1
    %v471 = vsel %vm376, %v468, %v470
    %v472 = vrot.slane %v193, 1
    %v473 = vrot.slane %v194, 1
    %v474 = vsel %vm376, %v472, %v473
    %v475 = vrot.slane %v195, 1
    %v476 = vsel %vm376, %v473, %v475
    %v477 = vrot.slane %v196, 1
    %v478 = vrot.slane %v197, 1
    %v479 = vsel %vm376, %v477, %v478
    %v480 = vrot.slane %v198, 1
    %v481 = vsel %vm376, %v478, %v480
    %v482 = vrot.slane %v199, 1
    %v483 = vrot.slane %v200, 1
    %v484 = vsel %vm376, %v482, %v483
    %v485 = vrot.slane %v201, 1
    %v486 = vsel %vm376, %v483, %v485
    %v487 = vrot.slane %v202, 1
    %v488 = vrot.slane %v203, 1
    %v489 = vsel %vm376, %v487, %v488
    %v490 = vrot.slane %v204, 1
    %v491 = vsel %vm376, %v488, %v490
    %v492 = vrot.slane %v205, 1
    %v493 = vrot.slane %v206, 1
    %v494 = vsel %vm376, %v492, %v493
    %v495 = vrot.slane %v207, 1
    %v496 = vsel %vm376, %v493, %v495
    %v497 = vrot.slane %v208, 1
    %v498 = vrot.slane %v209, 1
    %v499 = vsel %vm376, %v497, %v498
    %v500 = vrot.slane %v210, 1
    %v501 = vsel %vm376, %v498, %v500
    %v502 = vrot.slane %v211, 1
    %v503 = vrot.slane %v212, 1
    %v504 = vsel %vm376, %v502, %v503
    %v505 = vrot.slane %v213, 1
    %v506 = vsel %vm376, %v503, %v505
    %v507 = vrot.slane %v214, 1
    %v508 = vrot.slane %v215, 1
    %v509 = vsel %vm376, %v507, %v508
    %v510 = vrot.slane %v216, 1
    %v511 = vsel %vm376, %v508, %v510
    %v512 = vrot.slane %v217, 1
    %v513 = vrot.slane %v218, 1
    %v514 = vsel %vm376, %v512, %v513
    %v515 = vrot.slane %v219, 1
    %v516 = vsel %vm376, %v513, %v515
    %v517 = vrot.slane %v220, 1
    %v518 = vrot.slane %v221, 1
    %v519 = vsel %vm376, %v517, %v518
    %v520 = vrot.slane %v222, 1
    %v521 = vsel %vm376, %v518, %v520
    %v522 = vrot.slane %v223, 1
    %v523 = vrot.slane %v224, 1
    %v524 = vsel %vm376, %v522, %v523
    %v525 = vrot.slane %v225, 1
    %v526 = vsel %vm376, %v523, %v525
    %v527 = vrot.slane %v226, 1
    %v528 = vrot.slane %v227, 1
    %v529 = vsel %vm376, %v527, %v528
    %v530 = vrot.slane %v228, 1
    %v531 = vsel %vm376, %v528, %v530
    %v532 = vrot.slane %v229, 1
    %v533 = vrot.slane %v230, 1
    %v534 = vsel %vm376, %v532, %v533
    %v535 = vrot.slane %v231, 1
    %v536 = vsel %vm376, %v533, %v535
    %v601 = vpack.c.bf16 %v381, %v379
    %v602 = vpack.c.bf16 %v386, %v384
    %v603 = vpack.c.bf16 %v391, %v389
    %v604 = vpack.c.bf16 %v396, %v394
    %v605 = vpack.c.bf16 %v401, %v399
    %v606 = vpack.c.bf16 %v406, %v404
    %v607 = vpack.c.bf16 %v411, %v409
    %v608 = vpack.c.bf16 %v416, %v414
    %v609 = vpack.c.bf16 %v421, %v419
    %v610 = vpack.c.bf16 %v426, %v424
    %v611 = vpack.c.bf16 %v431, %v429
    %v612 = vpack.c.bf16 %v436, %v434
    %v613 = vpack.c.bf16 %v441, %v439
    %v614 = vpack.c.bf16 %v446, %v444
    %v615 = vpack.c.bf16 %v451, %v449
    %v616 = vpack.c.bf16 %v456, %v454
    %v617 = vpack.c.bf16 %v461, %v459
    %v618 = vpack.c.bf16 %v466, %v464
    %v619 = vpack.c.bf16 %v471, %v469
    %v620 = vpack.c.bf16 %v476, %v474
    %v621 = vpack.c.bf16 %v481, %v479
    %v622 = vpack.c.bf16 %v486, %v484
    %v623 = vpack.c.bf16 %v491, %v489
    %v624 = vpack.c.bf16 %v496, %v494
    %v625 = vpack.c.bf16 %v501, %v499
    %v626 = vpack.c.bf16 %v506, %v504
    %v627 = vpack.c.bf16 %v511, %v509
    %v628 = vpack.c.bf16 %v516, %v514
    %v629 = vpack.c.bf16 %v521, %v519
    %v630 = vpack.c.bf16 %v526, %v524
    %v631 = vpack.c.bf16 %v531, %v529
    %v632 = vpack.c.bf16 %v536, %v534
    %v635 = vunpack.c.l.s4 1983009808
    %v636 = vunpack.c.0.s8 %v635
    %v637 = vlaneseq
    %v638 = vshrl.u32 %v637, 7
    %v639 = vsub.s32 %v636, %v638
    %v640 = vrot.slane %v239, %v639
    %v641 = vcombine.high %v640, %v640
    %vm642 = vcmask 23552
    %v644 = vsel %vm642, %v601, 0
    %v647 = vsel %vm642, %v602, 0
    %v650 = vsel %vm642, %v603, 0
    %v653 = vsel %vm642, %v604, 0
    %v656 = vsel %vm642, %v605, 0
    %v659 = vsel %vm642, %v606, 0
    %v662 = vsel %vm642, %v607, 0
    %v665 = vsel %vm642, %v608, 0
    %v668 = vsel %vm642, %v609, 0
    %v671 = vsel %vm642, %v610, 0
    %v674 = vsel %vm642, %v611, 0
    %v677 = vsel %vm642, %v612, 0
    %v680 = vsel %vm642, %v613, 0
    %v683 = vsel %vm642, %v614, 0
    %v686 = vsel %vm642, %v615, 0
    %v689 = vsel %vm642, %v616, 0
    %v692 = vsel %vm642, %v617, 0
    %v695 = vsel %vm642, %v618, 0
    %v698 = vsel %vm642, %v619, 0
    %v701 = vsel %vm642, %v620, 0
    %v704 = vsel %vm642, %v621, 0
    %v707 = vsel %vm642, %v622, 0
    %v710 = vsel %vm642, %v623, 0
    %v713 = vsel %vm642, %v624, 0
    %v716 = vsel %vm642, %v625, 0
    %v719 = vsel %vm642, %v626, 0
    %v722 = vsel %vm642, %v627, 0
    %v725 = vsel %vm642, %v628, 0
    %v728 = vsel %vm642, %v629, 0
    %v731 = vsel %vm642, %v630, 0
    %v734 = vsel %vm642, %v631, 0
    %v737 = vsel %vm642, %v632, 0
    %vm739 = vcmask 1040384
    %vm740 = vcmask 1041408
    %v741 = vsel %vm739, 4294967295, 65535
    %v742 = vsel %vm740, %v741, 0
    %v744 = vand.u32 %v640, %v742
    %v747 = vand.u32 %v641, %v742
    %749 = vmatprep.subr.bf16.mxu0 %v747
    %750 = vmatpush1.bf16.msra.mxu0 %v744
    %751 = vmatprep.subr.bf16.mxu0 0
    %752 = vmatpush1.bf16.msra.mxu0 0
    %753 = vmatprep.subr.bf16.mxu0 0
    %754 = vmatpush1.bf16.msra.mxu0 0
    %755 = vmatprep.subr.bf16.mxu0 0
    %756 = vmatpush1.bf16.msra.mxu0 0
    %757 = vmatprep.subr.bf16.mxu0 0
    %758 = vmatpush1.bf16.msra.mxu0 0
    %759 = vmatprep.subr.bf16.mxu0 0
    %760 = vmatpush1.bf16.msra.mxu0 0
    %761 = vmatprep.subr.bf16.mxu0 0
    %762 = vmatpush1.bf16.msra.mxu0 0
    %763 = vmatprep.subr.bf16.mxu0 0
    %764 = vmatpush1.bf16.msra.mxu0 0
    %765 = vmatprep.subr.bf16.mxu0 0
    %766 = vmatpush1.bf16.msra.mxu0 0
    %767 = vmatprep.subr.bf16.mxu0 0
    %768 = vmatpush1.bf16.msra.mxu0 0
    %769 = vmatprep.subr.bf16.mxu0 0
    %770 = vmatpush1.bf16.msra.mxu0 0
    %771 = vmatprep.subr.bf16.mxu0 0
    %772 = vmatpush1.bf16.msra.mxu0 0
    %773 = vmatprep.subr.bf16.mxu0 0
    %774 = vmatpush1.bf16.msra.mxu0 0
    %775 = vmatprep.subr.bf16.mxu0 0
    %776 = vmatpush1.bf16.msra.mxu0 0
    %777 = vmatprep.subr.bf16.mxu0 0
    %778 = vmatpush1.bf16.msra.mxu0 0
    %779 = vmatprep.subr.bf16.mxu0 0
    %780 = vmatpush1.bf16.msra.mxu0 0
    %781 = vmatprep.mubr.bf16.mxu0 0
    %782 = vmatmul.mubr.bf16.gmra.mrb[0].mxu0 %v644
    %v783 = vpop.f32.mrb[0].mxu0
    %v784 = vadd.f32 0.0, %v783
    %v785 = vpop.f32.mrb[0].mxu0
    %v786 = vadd.f32 0.0, %v785
    %v787 = vpop.f32.mrb[0].mxu0
    %v788 = vadd.f32 0.0, %v787
    %v789 = vpop.f32.mrb[0].mxu0
    %v790 = vadd.f32 0.0, %v789
    %791 = vmatprep.mubr.bf16.mxu0 0
    %792 = vmatmul.mubr.bf16.gmra.mrb[0].mxu0 %v647
    %v793 = vpop.f32.mrb[0].mxu0
    %v794 = vadd.f32 0.0, %v793
    %v795 = vpop.f32.mrb[0].mxu0
    %v796 = vadd.f32 0.0, %v795
    %v797 = vpop.f32.mrb[0].mxu0
    %v798 = vadd.f32 0.0, %v797
    %v799 = vpop.f32.mrb[0].mxu0
    %v800 = vadd.f32 0.0, %v799
    %801 = vmatprep.mubr.bf16.mxu0 0
    %802 = vmatmul.mubr.bf16.gmra.mrb[0].mxu0 %v650
    %v803 = vpop.f32.mrb[0].mxu0
    %v804 = vadd.f32 0.0, %v803
    %v805 = vpop.f32.mrb[0].mxu0
    %v806 = vadd.f32 0.0, %v805
    %v807 = vpop.f32.mrb[0].mxu0
    %v808 = vadd.f32 0.0, %v807
    %v809 = vpop.f32.mrb[0].mxu0
    %v810 = vadd.f32 0.0, %v809
    %811 = vmatprep.mubr.bf16.mxu0 0
    %812 = vmatmul.mubr.bf16.gmra.mrb[0].mxu0 %v653
    %v813 = vpop.f32.mrb[0].mxu0
    %v814 = vadd.f32 0.0, %v813
    %v815 = vpop.f32.mrb[0].mxu0
    %v816 = vadd.f32 0.0, %v815
    %v817 = vpop.f32.mrb[0].mxu0
    %v818 = vadd.f32 0.0, %v817
    %v819 = vpop.f32.mrb[0].mxu0
    %v820 = vadd.f32 0.0, %v819
    %821 = vmatprep.mubr.bf16.mxu0 0
    %822 = vmatmul.mubr.bf16.gmra.mrb[0].mxu0 %v656
    %v823 = vpop.f32.mrb[0].mxu0
    %v824 = vadd.f32 0.0, %v823
    %v825 = vpop.f32.mrb[0].mxu0
    %v826 = vadd.f32 0.0, %v825
    %v827 = vpop.f32.mrb[0].mxu0
    %v828 = vadd.f32 0.0, %v827
    %v829 = vpop.f32.mrb[0].mxu0
    %v830 = vadd.f32 0.0, %v829
    %831 = vmatprep.mubr.bf16.mxu0 0
    %832 = vmatmul.mubr.bf16.gmra.mrb[0].mxu0 %v659
    %v833 = vpop.f32.mrb[0].mxu0
    %v834 = vadd.f32 0.0, %v833
    %v835 = vpop.f32.mrb[0].mxu0
    %v836 = vadd.f32 0.0, %v835
    %v837 = vpop.f32.mrb[0].mxu0
    %v838 = vadd.f32 0.0, %v837
    %v839 = vpop.f32.mrb[0].mxu0
    %v840 = vadd.f32 0.0, %v839
    %841 = vmatprep.mubr.bf16.mxu0 0
    %842 = vmatmul.mubr.bf16.gmra.mrb[0].mxu0 %v662
    %v843 = vpop.f32.mrb[0].mxu0
    %v844 = vadd.f32 0.0, %v843
    %v845 = vpop.f32.mrb[0].mxu0
    %v846 = vadd.f32 0.0, %v845
    %v847 = vpop.f32.mrb[0].mxu0
    %v848 = vadd.f32 0.0, %v847
    %v849 = vpop.f32.mrb[0].mxu0
    %v850 = vadd.f32 0.0, %v849
    %851 = vmatprep.mubr.bf16.mxu0 0
    %852 = vmatmul.mubr.bf16.gmra.mrb[0].mxu0 %v665
    %v853 = vpop.f32.mrb[0].mxu0
    %v854 = vadd.f32 0.0, %v853
    %v855 = vpop.f32.mrb[0].mxu0
    %v856 = vadd.f32 0.0, %v855
    %v857 = vpop.f32.mrb[0].mxu0
    %v858 = vadd.f32 0.0, %v857
    %v859 = vpop.f32.mrb[0].mxu0
    %v860 = vadd.f32 0.0, %v859
    %861 = vmatprep.mubr.bf16.mxu0 0
    %862 = vmatmul.mubr.bf16.gmra.mrb[0].mxu0 %v668
    %v863 = vpop.f32.mrb[0].mxu0
    %v864 = vadd.f32 0.0, %v863
    %v865 = vpop.f32.mrb[0].mxu0
    %v866 = vadd.f32 0.0, %v865
    %v867 = vpop.f32.mrb[0].mxu0
    %v868 = vadd.f32 0.0, %v867
    %v869 = vpop.f32.mrb[0].mxu0
    %v870 = vadd.f32 0.0, %v869
    %871 = vmatprep.mubr.bf16.mxu0 0
    %872 = vmatmul.mubr.bf16.gmra.mrb[0].mxu0 %v671
    %v873 = vpop.f32.mrb[0].mxu0
    %v874 = vadd.f32 0.0, %v873
    %v875 = vpop.f32.mrb[0].mxu0
    %v876 = vadd.f32 0.0, %v875
    %v877 = vpop.f32.mrb[0].mxu0
    %v878 = vadd.f32 0.0, %v877
    %v879 = vpop.f32.mrb[0].mxu0
    %v880 = vadd.f32 0.0, %v879
    %881 = vmatprep.mubr.bf16.mxu0 0
    %882 = vmatmul.mubr.bf16.gmra.mrb[0].mxu0 %v674
    %v883 = vpop.f32.mrb[0].mxu0
    %v884 = vadd.f32 0.0, %v883
    %v885 = vpop.f32.mrb[0].mxu0
    %v886 = vadd.f32 0.0, %v885
    %v887 = vpop.f32.mrb[0].mxu0
    %v888 = vadd.f32 0.0, %v887
    %v889 = vpop.f32.mrb[0].mxu0
    %v890 = vadd.f32 0.0, %v889
    %891 = vmatprep.mubr.bf16.mxu0 0
    %892 = vmatmul.mubr.bf16.gmra.mrb[0].mxu0 %v677
    %v893 = vpop.f32.mrb[0].mxu0
    %v894 = vadd.f32 0.0, %v893
    %v895 = vpop.f32.mrb[0].mxu0
    %v896 = vadd.f32 0.0, %v895
    %v897 = vpop.f32.mrb[0].mxu0
    %v898 = vadd.f32 0.0, %v897
    %v899 = vpop.f32.mrb[0].mxu0
    %v900 = vadd.f32 0.0, %v899
    %901 = vmatprep.mubr.bf16.mxu0 0
    %902 = vmatmul.mubr.bf16.gmra.mrb[0].mxu0 %v680
    %v903 = vpop.f32.mrb[0].mxu0
    %v904 = vadd.f32 0.0, %v903
    %v905 = vpop.f32.mrb[0].mxu0
    %v906 = vadd.f32 0.0, %v905
    %v907 = vpop.f32.mrb[0].mxu0
    %v908 = vadd.f32 0.0, %v907
    %v909 = vpop.f32.mrb[0].mxu0
    %v910 = vadd.f32 0.0, %v909
    %911 = vmatprep.mubr.bf16.mxu0 0
    %912 = vmatmul.mubr.bf16.gmra.mrb[0].mxu0 %v683
    %v913 = vpop.f32.mrb[0].mxu0
    %v914 = vadd.f32 0.0, %v913
    %v915 = vpop.f32.mrb[0].mxu0
    %v916 = vadd.f32 0.0, %v915
    %v917 = vpop.f32.mrb[0].mxu0
    %v918 = vadd.f32 0.0, %v917
    %v919 = vpop.f32.mrb[0].mxu0
    %v920 = vadd.f32 0.0, %v919
    %921 = vmatprep.mubr.bf16.mxu0 0
    %922 = vmatmul.mubr.bf16.gmra.mrb[0].mxu0 %v686
    %v923 = vpop.f32.mrb[0].mxu0
    %v924 = vadd.f32 0.0, %v923
    %v925 = vpop.f32.mrb[0].mxu0
    %v926 = vadd.f32 0.0, %v925
    %v927 = vpop.f32.mrb[0].mxu0
    %v928 = vadd.f32 0.0, %v927
    %v929 = vpop.f32.mrb[0].mxu0
    %v930 = vadd.f32 0.0, %v929
    %931 = vmatprep.mubr.bf16.mxu0 0
    %932 = vmatmul.mubr.bf16.gmra.mrb[0].mxu0 %v689
    %v933 = vpop.f32.mrb[0].mxu0
    %v934 = vadd.f32 0.0, %v933
    %v935 = vpop.f32.mrb[0].mxu0
    %v936 = vadd.f32 0.0, %v935
    %v937 = vpop.f32.mrb[0].mxu0
    %v938 = vadd.f32 0.0, %v937
    %v939 = vpop.f32.mrb[0].mxu0
    %v940 = vadd.f32 0.0, %v939
    %941 = vmatprep.mubr.bf16.mxu0 0
    %942 = vmatmul.mubr.bf16.gmra.mrb[0].mxu0 %v692
    %v943 = vpop.f32.mrb[0].mxu0
    %v944 = vadd.f32 0.0, %v943
    %v945 = vpop.f32.mrb[0].mxu0
    %v946 = vadd.f32 0.0, %v945
    %v947 = vpop.f32.mrb[0].mxu0
    %v948 = vadd.f32 0.0, %v947
    %v949 = vpop.f32.mrb[0].mxu0
    %v950 = vadd.f32 0.0, %v949
    %951 = vmatprep.mubr.bf16.mxu0 0
    %952 = vmatmul.mubr.bf16.gmra.mrb[0].mxu0 %v695
    %v953 = vpop.f32.mrb[0].mxu0
    %v954 = vadd.f32 0.0, %v953
    %v955 = vpop.f32.mrb[0].mxu0
    %v956 = vadd.f32 0.0, %v955
    %v957 = vpop.f32.mrb[0].mxu0
    %v958 = vadd.f32 0.0, %v957
    %v959 = vpop.f32.mrb[0].mxu0
    %v960 = vadd.f32 0.0, %v959
    %961 = vmatprep.mubr.bf16.mxu0 0
    %962 = vmatmul.mubr.bf16.gmra.mrb[0].mxu0 %v698
    %v963 = vpop.f32.mrb[0].mxu0
    %v964 = vadd.f32 0.0, %v963
    %v965 = vpop.f32.mrb[0].mxu0
    %v966 = vadd.f32 0.0, %v965
    %v967 = vpop.f32.mrb[0].mxu0
    %v968 = vadd.f32 0.0, %v967
    %v969 = vpop.f32.mrb[0].mxu0
    %v970 = vadd.f32 0.0, %v969
    %971 = vmatprep.mubr.bf16.mxu0 0
    %972 = vmatmul.mubr.bf16.gmra.mrb[0].mxu0 %v701
    %v973 = vpop.f32.mrb[0].mxu0
    %v974 = vadd.f32 0.0, %v973
    %v975 = vpop.f32.mrb[0].mxu0
    %v976 = vadd.f32 0.0, %v975
    %v977 = vpop.f32.mrb[0].mxu0
    %v978 = vadd.f32 0.0, %v977
    %v979 = vpop.f32.mrb[0].mxu0
    %v980 = vadd.f32 0.0, %v979
    %981 = vmatprep.mubr.bf16.mxu0 0
    %982 = vmatmul.mubr.bf16.gmra.mrb[0].mxu0 %v704
    %v983 = vpop.f32.mrb[0].mxu0
    %v984 = vadd.f32 0.0, %v983
    %v985 = vpop.f32.mrb[0].mxu0
    %v986 = vadd.f32 0.0, %v985
    %v987 = vpop.f32.mrb[0].mxu0
    %v988 = vadd.f32 0.0, %v987
    %v989 = vpop.f32.mrb[0].mxu0
    %v990 = vadd.f32 0.0, %v989
    %991 = vmatprep.mubr.bf16.mxu0 0
    %992 = vmatmul.mubr.bf16.gmra.mrb[0].mxu0 %v707
    %v993 = vpop.f32.mrb[0].mxu0
    %v994 = vadd.f32 0.0, %v993
    %v995 = vpop.f32.mrb[0].mxu0
    %v996 = vadd.f32 0.0, %v995
    %v997 = vpop.f32.mrb[0].mxu0
    %v998 = vadd.f32 0.0, %v997
    %v999 = vpop.f32.mrb[0].mxu0
    %v1000 = vadd.f32 0.0, %v999
    %1001 = vmatprep.mubr.bf16.mxu0 0
    %1002 = vmatmul.mubr.bf16.gmra.mrb[0].mxu0 %v710
    %v1003 = vpop.f32.mrb[0].mxu0
    %v1004 = vadd.f32 0.0, %v1003
    %v1005 = vpop.f32.mrb[0].mxu0
    %v1006 = vadd.f32 0.0, %v1005
    %v1007 = vpop.f32.mrb[0].mxu0
    %v1008 = vadd.f32 0.0, %v1007
    %v1009 = vpop.f32.mrb[0].mxu0
    %v1010 = vadd.f32 0.0, %v1009
    %1011 = vmatprep.mubr.bf16.mxu0 0
    %1012 = vmatmul.mubr.bf16.gmra.mrb[0].mxu0 %v713
    %v1013 = vpop.f32.mrb[0].mxu0
    %v1014 = vadd.f32 0.0, %v1013
    %v1015 = vpop.f32.mrb[0].mxu0
    %v1016 = vadd.f32 0.0, %v1015
    %v1017 = vpop.f32.mrb[0].mxu0
    %v1018 = vadd.f32 0.0, %v1017
    %v1019 = vpop.f32.mrb[0].mxu0
    %v1020 = vadd.f32 0.0, %v1019
    %1021 = vmatprep.mubr.bf16.mxu0 0
    %1022 = vmatmul.mubr.bf16.gmra.mrb[0].mxu0 %v716
    %v1023 = vpop.f32.mrb[0].mxu0
    %v1024 = vadd.f32 0.0, %v1023
    %v1025 = vpop.f32.mrb[0].mxu0
    %v1026 = vadd.f32 0.0, %v1025
    %v1027 = vpop.f32.mrb[0].mxu0
    %v1028 = vadd.f32 0.0, %v1027
    %v1029 = vpop.f32.mrb[0].mxu0
    %v1030 = vadd.f32 0.0, %v1029
    %1031 = vmatprep.mubr.bf16.mxu0 0
    %1032 = vmatmul.mubr.bf16.gmra.mrb[0].mxu0 %v719
    %v1033 = vpop.f32.mrb[0].mxu0
    %v1034 = vadd.f32 0.0, %v1033
    %v1035 = vpop.f32.mrb[0].mxu0
    %v1036 = vadd.f32 0.0, %v1035
    %v1037 = vpop.f32.mrb[0].mxu0
    %v1038 = vadd.f32 0.0, %v1037
    %v1039 = vpop.f32.mrb[0].mxu0
    %v1040 = vadd.f32 0.0, %v1039
    %1041 = vmatprep.mubr.bf16.mxu0 0
    %1042 = vmatmul.mubr.bf16.gmra.mrb[0].mxu0 %v722
    %v1043 = vpop.f32.mrb[0].mxu0
    %v1044 = vadd.f32 0.0, %v1043
    %v1045 = vpop.f32.mrb[0].mxu0
    %v1046 = vadd.f32 0.0, %v1045
    %v1047 = vpop.f32.mrb[0].mxu0
    %v1048 = vadd.f32 0.0, %v1047
    %v1049 = vpop.f32.mrb[0].mxu0
    %v1050 = vadd.f32 0.0, %v1049
    %1051 = vmatprep.mubr.bf16.mxu0 0
    %1052 = vmatmul.mubr.bf16.gmra.mrb[0].mxu0 %v725
    %v1053 = vpop.f32.mrb[0].mxu0
    %v1054 = vadd.f32 0.0, %v1053
    %v1055 = vpop.f32.mrb[0].mxu0
    %v1056 = vadd.f32 0.0, %v1055
    %v1057 = vpop.f32.mrb[0].mxu0
    %v1058 = vadd.f32 0.0, %v1057
    %v1059 = vpop.f32.mrb[0].mxu0
    %v1060 = vadd.f32 0.0, %v1059
    %1061 = vmatprep.mubr.bf16.mxu0 0
    %1062 = vmatmul.mubr.bf16.gmra.mrb[0].mxu0 %v728
    %v1063 = vpop.f32.mrb[0].mxu0
    %v1064 = vadd.f32 0.0, %v1063
    %v1065 = vpop.f32.mrb[0].mxu0
    %v1066 = vadd.f32 0.0, %v1065
    %v1067 = vpop.f32.mrb[0].mxu0
    %v1068 = vadd.f32 0.0, %v1067
    %v1069 = vpop.f32.mrb[0].mxu0
    %v1070 = vadd.f32 0.0, %v1069
    %1071 = vmatprep.mubr.bf16.mxu0 0
    %1072 = vmatmul.mubr.bf16.gmra.mrb[0].mxu0 %v731
    %v1073 = vpop.f32.mrb[0].mxu0
    %v1074 = vadd.f32 0.0, %v1073
    %v1075 = vpop.f32.mrb[0].mxu0
    %v1076 = vadd.f32 0.0, %v1075
    %v1077 = vpop.f32.mrb[0].mxu0
    %v1078 = vadd.f32 0.0, %v1077
    %v1079 = vpop.f32.mrb[0].mxu0
    %v1080 = vadd.f32 0.0, %v1079
    %1081 = vmatprep.mubr.bf16.mxu0 0
    %1082 = vmatmul.mubr.bf16.gmra.mrb[0].mxu0 %v734
    %v1083 = vpop.f32.mrb[0].mxu0
    %v1084 = vadd.f32 0.0, %v1083
    %v1085 = vpop.f32.mrb[0].mxu0
    %v1086 = vadd.f32 0.0, %v1085
    %v1087 = vpop.f32.mrb[0].mxu0
    %v1088 = vadd.f32 0.0, %v1087
    %v1089 = vpop.f32.mrb[0].mxu0
    %v1090 = vadd.f32 0.0, %v1089
    %1091 = vmatprep.mubr.bf16.mxu0 0
    %1092 = vmatmul.mubr.bf16.gmra.mrb[0].mxu0 %v737
    %v1093 = vpop.f32.mrb[0].mxu0
    %v1094 = vadd.f32 0.0, %v1093
    %v1095 = vpop.f32.mrb[0].mxu0
    %v1096 = vadd.f32 0.0, %v1095
    %v1097 = vpop.f32.mrb[0].mxu0
    %v1098 = vadd.f32 0.0, %v1097
    %v1099 = vpop.f32.mrb[0].mxu0
    %v1100 = vadd.f32 0.0, %v1099
    %1101 = vdwg.mxu0
    %v1104 = vunpack.c.l.s4 1983009808
    %v1105 = vunpack.c.0.s8 %v1104
    %v1106 = vlaneseq
    %v1107 = vshrl.u32 %v1106, 7
    %v1108 = vsub.s32 %v1105, %v1107
    %v1109 = vrot.slane %v238, %v1108
    %v1110 = vcombine.high %v1109, %v1109
    %v1112 = vsel %vm642, %v248, 0
    %v1115 = vsel %vm642, %v249, 0
    %v1118 = vsel %vm642, %v250, 0
    %v1121 = vsel %vm642, %v251, 0
    %v1124 = vsel %vm642, %v252, 0
    %v1127 = vsel %vm642, %v253, 0
    %v1130 = vsel %vm642, %v254, 0
    %v1133 = vsel %vm642, %v255, 0
    %v1136 = vsel %vm642, %v256, 0
    %v1139 = vsel %vm642, %v257, 0
    %v1142 = vsel %vm642, %v258, 0
    %v1145 = vsel %vm642, %v259, 0
    %v1148 = vsel %vm642, %v260, 0
    %v1151 = vsel %vm642, %v261, 0
    %v1154 = vsel %vm642, %v262, 0
    %v1157 = vsel %vm642, %v263, 0
    %v1160 = vsel %vm642, %v264, 0
    %v1163 = vsel %vm642, %v265, 0
    %v1166 = vsel %vm642, %v266, 0
    %v1169 = vsel %vm642, %v267, 0
    %v1172 = vsel %vm642, %v268, 0
    %v1175 = vsel %vm642, %v269, 0
    %v1178 = vsel %vm642, %v270, 0
    %v1181 = vsel %vm642, %v271, 0
    %v1184 = vsel %vm642, %v272, 0
    %v1187 = vsel %vm642, %v273, 0
    %v1190 = vsel %vm642, %v274, 0
    %v1193 = vsel %vm642, %v275, 0
    %v1196 = vsel %vm642, %v276, 0
    %v1199 = vsel %vm642, %v277, 0
    %v1202 = vsel %vm642, %v278, 0
    %v1205 = vsel %vm642, %v279, 0
    %v1208 = vand.u32 %v1109, %v742
    %v1211 = vand.u32 %v1110, %v742
    %1213 = vmatprep.subr.bf16.mxu0 %v1211
    %1214 = vmatpush1.bf16.msra.mxu0 %v1208
    %1215 = vmatprep.subr.bf16.mxu0 0
    %1216 = vmatpush1.bf16.msra.mxu0 0
    %1217 = vmatprep.subr.bf16.mxu0 0
    %1218 = vmatpush1.bf16.msra.mxu0 0
    %1219 = vmatprep.subr.bf16.mxu0 0
    %1220 = vmatpush1.bf16.msra.mxu0 0
    %1221 = vmatprep.subr.bf16.mxu0 0
    %1222 = vmatpush1.bf16.msra.mxu0 0
    %1223 = vmatprep.subr.bf16.mxu0 0
    %1224 = vmatpush1.bf16.msra.mxu0 0
    %1225 = vmatprep.subr.bf16.mxu0 0
    %1226 = vmatpush1.bf16.msra.mxu0 0
    %1227 = vmatprep.subr.bf16.mxu0 0
    %1228 = vmatpush1.bf16.msra.mxu0 0
    %1229 = vmatprep.subr.bf16.mxu0 0
    %1230 = vmatpush1.bf16.msra.mxu0 0
    %1231 = vmatprep.subr.bf16.mxu0 0
    %1232 = vmatpush1.bf16.msra.mxu0 0
    %1233 = vmatprep.subr.bf16.mxu0 0
    %1234 = vmatpush1.bf16.msra.mxu0 0
    %1235 = vmatprep.subr.bf16.mxu0 0
    %1236 = vmatpush1.bf16.msra.mxu0 0
    %1237 = vmatprep.subr.bf16.mxu0 0
    %1238 = vmatpush1.bf16.msra.mxu0 0
    %1239 = vmatprep.subr.bf16.mxu0 0
    %1240 = vmatpush1.bf16.msra.mxu0 0
    %1241 = vmatprep.subr.bf16.mxu0 0
    %1242 = vmatpush1.bf16.msra.mxu0 0
    %1243 = vmatprep.subr.bf16.mxu0 0
    %1244 = vmatpush1.bf16.msra.mxu0 0
    %1245 = vmatprep.mubr.bf16.mxu0 0
    %1246 = vmatmul.mubr.bf16.gmra.mrb[0].mxu0 %v1112
    %v1247 = vpop.f32.mrb[0].mxu0
    %v1248 = vadd.f32 %v784, %v1247
    %v1249 = vpop.f32.mrb[0].mxu0
    %v1250 = vadd.f32 %v786, %v1249
    %v1251 = vpop.f32.mrb[0].mxu0
    %v1252 = vadd.f32 %v788, %v1251
    %v1253 = vpop.f32.mrb[0].mxu0
    %v1254 = vadd.f32 %v790, %v1253
    %1255 = vmatprep.mubr.bf16.mxu0 0
    %1256 = vmatmul.mubr.bf16.gmra.mrb[0].mxu0 %v1115
    %v1257 = vpop.f32.mrb[0].mxu0
    %v1258 = vadd.f32 %v794, %v1257
    %v1259 = vpop.f32.mrb[0].mxu0
    %v1260 = vadd.f32 %v796, %v1259
    %v1261 = vpop.f32.mrb[0].mxu0
    %v1262 = vadd.f32 %v798, %v1261
    %v1263 = vpop.f32.mrb[0].mxu0
    %v1264 = vadd.f32 %v800, %v1263
    %1265 = vmatprep.mubr.bf16.mxu0 0
    %1266 = vmatmul.mubr.bf16.gmra.mrb[0].mxu0 %v1118
    %v1267 = vpop.f32.mrb[0].mxu0
    %v1268 = vadd.f32 %v804, %v1267
    %v1269 = vpop.f32.mrb[0].mxu0
    %v1270 = vadd.f32 %v806, %v1269
    %v1271 = vpop.f32.mrb[0].mxu0
    %v1272 = vadd.f32 %v808, %v1271
    %v1273 = vpop.f32.mrb[0].mxu0
    %v1274 = vadd.f32 %v810, %v1273
    %1275 = vmatprep.mubr.bf16.mxu0 0
    %1276 = vmatmul.mubr.bf16.gmra.mrb[0].mxu0 %v1121
    %v1277 = vpop.f32.mrb[0].mxu0
    %v1278 = vadd.f32 %v814, %v1277
    %v1279 = vpop.f32.mrb[0].mxu0
    %v1280 = vadd.f32 %v816, %v1279
    %v1281 = vpop.f32.mrb[0].mxu0
    %v1282 = vadd.f32 %v818, %v1281
    %v1283 = vpop.f32.mrb[0].mxu0
    %v1284 = vadd.f32 %v820, %v1283
    %1285 = vmatprep.mubr.bf16.mxu0 0
    %1286 = vmatmul.mubr.bf16.gmra.mrb[0].mxu0 %v1124
    %v1287 = vpop.f32.mrb[0].mxu0
    %v1288 = vadd.f32 %v824, %v1287
    %v1289 = vpop.f32.mrb[0].mxu0
    %v1290 = vadd.f32 %v826, %v1289
    %v1291 = vpop.f32.mrb[0].mxu0
    %v1292 = vadd.f32 %v828, %v1291
    %v1293 = vpop.f32.mrb[0].mxu0
    %v1294 = vadd.f32 %v830, %v1293
    %1295 = vmatprep.mubr.bf16.mxu0 0
    %1296 = vmatmul.mubr.bf16.gmra.mrb[0].mxu0 %v1127
    %v1297 = vpop.f32.mrb[0].mxu0
    %v1298 = vadd.f32 %v834, %v1297
    %v1299 = vpop.f32.mrb[0].mxu0
    %v1300 = vadd.f32 %v836, %v1299
    %v1301 = vpop.f32.mrb[0].mxu0
    %v1302 = vadd.f32 %v838, %v1301
    %v1303 = vpop.f32.mrb[0].mxu0
    %v1304 = vadd.f32 %v840, %v1303
    %1305 = vmatprep.mubr.bf16.mxu0 0
    %1306 = vmatmul.mubr.bf16.gmra.mrb[0].mxu0 %v1130
    %v1307 = vpop.f32.mrb[0].mxu0
    %v1308 = vadd.f32 %v844, %v1307
    %v1309 = vpop.f32.mrb[0].mxu0
    %v1310 = vadd.f32 %v846, %v1309
    %v1311 = vpop.f32.mrb[0].mxu0
    %v1312 = vadd.f32 %v848, %v1311
    %v1313 = vpop.f32.mrb[0].mxu0
    %v1314 = vadd.f32 %v850, %v1313
    %1315 = vmatprep.mubr.bf16.mxu0 0
    %1316 = vmatmul.mubr.bf16.gmra.mrb[0].mxu0 %v1133
    %v1317 = vpop.f32.mrb[0].mxu0
    %v1318 = vadd.f32 %v854, %v1317
    %v1319 = vpop.f32.mrb[0].mxu0
    %v1320 = vadd.f32 %v856, %v1319
    %v1321 = vpop.f32.mrb[0].mxu0
    %v1322 = vadd.f32 %v858, %v1321
    %v1323 = vpop.f32.mrb[0].mxu0
    %v1324 = vadd.f32 %v860, %v1323
    %1325 = vmatprep.mubr.bf16.mxu0 0
    %1326 = vmatmul.mubr.bf16.gmra.mrb[0].mxu0 %v1136
    %v1327 = vpop.f32.mrb[0].mxu0
    %v1328 = vadd.f32 %v864, %v1327
    %v1329 = vpop.f32.mrb[0].mxu0
    %v1330 = vadd.f32 %v866, %v1329
    %v1331 = vpop.f32.mrb[0].mxu0
    %v1332 = vadd.f32 %v868, %v1331
    %v1333 = vpop.f32.mrb[0].mxu0
    %v1334 = vadd.f32 %v870, %v1333
    %1335 = vmatprep.mubr.bf16.mxu0 0
    %1336 = vmatmul.mubr.bf16.gmra.mrb[0].mxu0 %v1139
    %v1337 = vpop.f32.mrb[0].mxu0
    %v1338 = vadd.f32 %v874, %v1337
    %v1339 = vpop.f32.mrb[0].mxu0
    %v1340 = vadd.f32 %v876, %v1339
    %v1341 = vpop.f32.mrb[0].mxu0
    %v1342 = vadd.f32 %v878, %v1341
    %v1343 = vpop.f32.mrb[0].mxu0
    %v1344 = vadd.f32 %v880, %v1343
    %1345 = vmatprep.mubr.bf16.mxu0 0
    %1346 = vmatmul.mubr.bf16.gmra.mrb[0].mxu0 %v1142
    %v1347 = vpop.f32.mrb[0].mxu0
    %v1348 = vadd.f32 %v884, %v1347
    %v1349 = vpop.f32.mrb[0].mxu0
    %v1350 = vadd.f32 %v886, %v1349
    %v1351 = vpop.f32.mrb[0].mxu0
    %v1352 = vadd.f32 %v888, %v1351
    %v1353 = vpop.f32.mrb[0].mxu0
    %v1354 = vadd.f32 %v890, %v1353
    %1355 = vmatprep.mubr.bf16.mxu0 0
    %1356 = vmatmul.mubr.bf16.gmra.mrb[0].mxu0 %v1145
    %v1357 = vpop.f32.mrb[0].mxu0
    %v1358 = vadd.f32 %v894, %v1357
    %v1359 = vpop.f32.mrb[0].mxu0
    %v1360 = vadd.f32 %v896, %v1359
    %v1361 = vpop.f32.mrb[0].mxu0
    %v1362 = vadd.f32 %v898, %v1361
    %v1363 = vpop.f32.mrb[0].mxu0
    %v1364 = vadd.f32 %v900, %v1363
    %1365 = vmatprep.mubr.bf16.mxu0 0
    %1366 = vmatmul.mubr.bf16.gmra.mrb[0].mxu0 %v1148
    %v1367 = vpop.f32.mrb[0].mxu0
    %v1368 = vadd.f32 %v904, %v1367
    %v1369 = vpop.f32.mrb[0].mxu0
    %v1370 = vadd.f32 %v906, %v1369
    %v1371 = vpop.f32.mrb[0].mxu0
    %v1372 = vadd.f32 %v908, %v1371
    %v1373 = vpop.f32.mrb[0].mxu0
    %v1374 = vadd.f32 %v910, %v1373
    %1375 = vmatprep.mubr.bf16.mxu0 0
    %1376 = vmatmul.mubr.bf16.gmra.mrb[0].mxu0 %v1151
    %v1377 = vpop.f32.mrb[0].mxu0
    %v1378 = vadd.f32 %v914, %v1377
    %v1379 = vpop.f32.mrb[0].mxu0
    %v1380 = vadd.f32 %v916, %v1379
    %v1381 = vpop.f32.mrb[0].mxu0
    %v1382 = vadd.f32 %v918, %v1381
    %v1383 = vpop.f32.mrb[0].mxu0
    %v1384 = vadd.f32 %v920, %v1383
    %1385 = vmatprep.mubr.bf16.mxu0 0
    %1386 = vmatmul.mubr.bf16.gmra.mrb[0].mxu0 %v1154
    %v1387 = vpop.f32.mrb[0].mxu0
    %v1388 = vadd.f32 %v924, %v1387
    %v1389 = vpop.f32.mrb[0].mxu0
    %v1390 = vadd.f32 %v926, %v1389
    %v1391 = vpop.f32.mrb[0].mxu0
    %v1392 = vadd.f32 %v928, %v1391
    %v1393 = vpop.f32.mrb[0].mxu0
    %v1394 = vadd.f32 %v930, %v1393
    %1395 = vmatprep.mubr.bf16.mxu0 0
    %1396 = vmatmul.mubr.bf16.gmra.mrb[0].mxu0 %v1157
    %v1397 = vpop.f32.mrb[0].mxu0
    %v1398 = vadd.f32 %v934, %v1397
    %v1399 = vpop.f32.mrb[0].mxu0
    %v1400 = vadd.f32 %v936, %v1399
    %v1401 = vpop.f32.mrb[0].mxu0
    %v1402 = vadd.f32 %v938, %v1401
    %v1403 = vpop.f32.mrb[0].mxu0
    %v1404 = vadd.f32 %v940, %v1403
    %1405 = vmatprep.mubr.bf16.mxu0 0
    %1406 = vmatmul.mubr.bf16.gmra.mrb[0].mxu0 %v1160
    %v1407 = vpop.f32.mrb[0].mxu0
    %v1408 = vadd.f32 %v944, %v1407
    %v1409 = vpop.f32.mrb[0].mxu0
    %v1410 = vadd.f32 %v946, %v1409
    %v1411 = vpop.f32.mrb[0].mxu0
    %v1412 = vadd.f32 %v948, %v1411
    %v1413 = vpop.f32.mrb[0].mxu0
    %v1414 = vadd.f32 %v950, %v1413
    %1415 = vmatprep.mubr.bf16.mxu0 0
    %1416 = vmatmul.mubr.bf16.gmra.mrb[0].mxu0 %v1163
    %v1417 = vpop.f32.mrb[0].mxu0
    %v1418 = vadd.f32 %v954, %v1417
    %v1419 = vpop.f32.mrb[0].mxu0
    %v1420 = vadd.f32 %v956, %v1419
    %v1421 = vpop.f32.mrb[0].mxu0
    %v1422 = vadd.f32 %v958, %v1421
    %v1423 = vpop.f32.mrb[0].mxu0
    %v1424 = vadd.f32 %v960, %v1423
    %1425 = vmatprep.mubr.bf16.mxu0 0
    %1426 = vmatmul.mubr.bf16.gmra.mrb[0].mxu0 %v1166
    %v1427 = vpop.f32.mrb[0].mxu0
    %v1428 = vadd.f32 %v964, %v1427
    %v1429 = vpop.f32.mrb[0].mxu0
    %v1430 = vadd.f32 %v966, %v1429
    %v1431 = vpop.f32.mrb[0].mxu0
    %v1432 = vadd.f32 %v968, %v1431
    %v1433 = vpop.f32.mrb[0].mxu0
    %v1434 = vadd.f32 %v970, %v1433
    %1435 = vmatprep.mubr.bf16.mxu0 0
    %1436 = vmatmul.mubr.bf16.gmra.mrb[0].mxu0 %v1169
    %v1437 = vpop.f32.mrb[0].mxu0
    %v1438 = vadd.f32 %v974, %v1437
    %v1439 = vpop.f32.mrb[0].mxu0
    %v1440 = vadd.f32 %v976, %v1439
    %v1441 = vpop.f32.mrb[0].mxu0
    %v1442 = vadd.f32 %v978, %v1441
    %v1443 = vpop.f32.mrb[0].mxu0
    %v1444 = vadd.f32 %v980, %v1443
    %1445 = vmatprep.mubr.bf16.mxu0 0
    %1446 = vmatmul.mubr.bf16.gmra.mrb[0].mxu0 %v1172
    %v1447 = vpop.f32.mrb[0].mxu0
    %v1448 = vadd.f32 %v984, %v1447
    %v1449 = vpop.f32.mrb[0].mxu0
    %v1450 = vadd.f32 %v986, %v1449
    %v1451 = vpop.f32.mrb[0].mxu0
    %v1452 = vadd.f32 %v988, %v1451
    %v1453 = vpop.f32.mrb[0].mxu0
    %v1454 = vadd.f32 %v990, %v1453
    %1455 = vmatprep.mubr.bf16.mxu0 0
    %1456 = vmatmul.mubr.bf16.gmra.mrb[0].mxu0 %v1175
    %v1457 = vpop.f32.mrb[0].mxu0
    %v1458 = vadd.f32 %v994, %v1457
    %v1459 = vpop.f32.mrb[0].mxu0
    %v1460 = vadd.f32 %v996, %v1459
    %v1461 = vpop.f32.mrb[0].mxu0
    %v1462 = vadd.f32 %v998, %v1461
    %v1463 = vpop.f32.mrb[0].mxu0
    %v1464 = vadd.f32 %v1000, %v1463
    %1465 = vmatprep.mubr.bf16.mxu0 0
    %1466 = vmatmul.mubr.bf16.gmra.mrb[0].mxu0 %v1178
    %v1467 = vpop.f32.mrb[0].mxu0
    %v1468 = vadd.f32 %v1004, %v1467
    %v1469 = vpop.f32.mrb[0].mxu0
    %v1470 = vadd.f32 %v1006, %v1469
    %v1471 = vpop.f32.mrb[0].mxu0
    %v1472 = vadd.f32 %v1008, %v1471
    %v1473 = vpop.f32.mrb[0].mxu0
    %v1474 = vadd.f32 %v1010, %v1473
    %1475 = vmatprep.mubr.bf16.mxu0 0
    %1476 = vmatmul.mubr.bf16.gmra.mrb[0].mxu0 %v1181
    %v1477 = vpop.f32.mrb[0].mxu0
    %v1478 = vadd.f32 %v1014, %v1477
    %v1479 = vpop.f32.mrb[0].mxu0
    %v1480 = vadd.f32 %v1016, %v1479
    %v1481 = vpop.f32.mrb[0].mxu0
    %v1482 = vadd.f32 %v1018, %v1481
    %v1483 = vpop.f32.mrb[0].mxu0
    %v1484 = vadd.f32 %v1020, %v1483
    %1485 = vmatprep.mubr.bf16.mxu0 0
    %1486 = vmatmul.mubr.bf16.gmra.mrb[0].mxu0 %v1184
    %v1487 = vpop.f32.mrb[0].mxu0
    %v1488 = vadd.f32 %v1024, %v1487
    %v1489 = vpop.f32.mrb[0].mxu0
    %v1490 = vadd.f32 %v1026, %v1489
    %v1491 = vpop.f32.mrb[0].mxu0
    %v1492 = vadd.f32 %v1028, %v1491
    %v1493 = vpop.f32.mrb[0].mxu0
    %v1494 = vadd.f32 %v1030, %v1493
    %1495 = vmatprep.mubr.bf16.mxu0 0
    %1496 = vmatmul.mubr.bf16.gmra.mrb[0].mxu0 %v1187
    %v1497 = vpop.f32.mrb[0].mxu0
    %v1498 = vadd.f32 %v1034, %v1497
    %v1499 = vpop.f32.mrb[0].mxu0
    %v1500 = vadd.f32 %v1036, %v1499
    %v1501 = vpop.f32.mrb[0].mxu0
    %v1502 = vadd.f32 %v1038, %v1501
    %v1503 = vpop.f32.mrb[0].mxu0
    %v1504 = vadd.f32 %v1040, %v1503
    %1505 = vmatprep.mubr.bf16.mxu0 0
    %1506 = vmatmul.mubr.bf16.gmra.mrb[0].mxu0 %v1190
    %v1507 = vpop.f32.mrb[0].mxu0
    %v1508 = vadd.f32 %v1044, %v1507
    %v1509 = vpop.f32.mrb[0].mxu0
    %v1510 = vadd.f32 %v1046, %v1509
    %v1511 = vpop.f32.mrb[0].mxu0
    %v1512 = vadd.f32 %v1048, %v1511
    %v1513 = vpop.f32.mrb[0].mxu0
    %v1514 = vadd.f32 %v1050, %v1513
    %1515 = vmatprep.mubr.bf16.mxu0 0
    %1516 = vmatmul.mubr.bf16.gmra.mrb[0].mxu0 %v1193
    %v1517 = vpop.f32.mrb[0].mxu0
    %v1518 = vadd.f32 %v1054, %v1517
    %v1519 = vpop.f32.mrb[0].mxu0
    %v1520 = vadd.f32 %v1056, %v1519
    %v1521 = vpop.f32.mrb[0].mxu0
    %v1522 = vadd.f32 %v1058, %v1521
    %v1523 = vpop.f32.mrb[0].mxu0
    %v1524 = vadd.f32 %v1060, %v1523
    %1525 = vmatprep.mubr.bf16.mxu0 0
    %1526 = vmatmul.mubr.bf16.gmra.mrb[0].mxu0 %v1196
    %v1527 = vpop.f32.mrb[0].mxu0
    %v1528 = vadd.f32 %v1064, %v1527
    %v1529 = vpop.f32.mrb[0].mxu0
    %v1530 = vadd.f32 %v1066, %v1529
    %v1531 = vpop.f32.mrb[0].mxu0
    %v1532 = vadd.f32 %v1068, %v1531
    %v1533 = vpop.f32.mrb[0].mxu0
    %v1534 = vadd.f32 %v1070, %v1533
    %1535 = vmatprep.mubr.bf16.mxu0 0
    %1536 = vmatmul.mubr.bf16.gmra.mrb[0].mxu0 %v1199
    %v1537 = vpop.f32.mrb[0].mxu0
    %v1538 = vadd.f32 %v1074, %v1537
    %v1539 = vpop.f32.mrb[0].mxu0
    %v1540 = vadd.f32 %v1076, %v1539
    %v1541 = vpop.f32.mrb[0].mxu0
    %v1542 = vadd.f32 %v1078, %v1541
    %v1543 = vpop.f32.mrb[0].mxu0
    %v1544 = vadd.f32 %v1080, %v1543
    %1545 = vmatprep.mubr.bf16.mxu0 0
    %1546 = vmatmul.mubr.bf16.gmra.mrb[0].mxu0 %v1202
    %v1547 = vpop.f32.mrb[0].mxu0
    %v1548 = vadd.f32 %v1084, %v1547
    %v1549 = vpop.f32.mrb[0].mxu0
    %v1550 = vadd.f32 %v1086, %v1549
    %v1551 = vpop.f32.mrb[0].mxu0
    %v1552 = vadd.f32 %v1088, %v1551
    %v1553 = vpop.f32.mrb[0].mxu0
    %v1554 = vadd.f32 %v1090, %v1553
    %1555 = vmatprep.mubr.bf16.mxu0 0
    %1556 = vmatmul.mubr.bf16.gmra.mrb[0].mxu0 %v1205
    %v1557 = vpop.f32.mrb[0].mxu0
    %v1558 = vadd.f32 %v1094, %v1557
    %v1559 = vpop.f32.mrb[0].mxu0
    %v1560 = vadd.f32 %v1096, %v1559
    %v1561 = vpop.f32.mrb[0].mxu0
    %v1562 = vadd.f32 %v1098, %v1561
    %v1563 = vpop.f32.mrb[0].mxu0
    %v1564 = vadd.f32 %v1100, %v1563
    %1565 = vdwg.mxu0
    %vm1566 = vcmask 1045504
    %v1567 = vrot.slane %v130, 2
    %v1568 = vrot.slane %v131, 2
    %v1569 = vsel %vm1566, %v1567, %v1568
    %v1570 = vrot.slane %v132, 2
    %v1571 = vsel %vm1566, %v1568, %v1570
    %v1572 = vrot.slane %v133, 2
    %v1573 = vrot.slane %v134, 2
    %v1574 = vsel %vm1566, %v1572, %v1573
    %v1575 = vrot.slane %v135, 2
    %v1576 = vsel %vm1566, %v1573, %v1575
    %v1577 = vrot.slane %v136, 2
    %v1578 = vrot.slane %v137, 2
    %v1579 = vsel %vm1566, %v1577, %v1578
    %v1580 = vrot.slane %v138, 2
    %v1581 = vsel %vm1566, %v1578, %v1580
    %v1582 = vrot.slane %v139, 2
    %v1583 = vrot.slane %v140, 2
    %v1584 = vsel %vm1566, %v1582, %v1583
    %v1585 = vrot.slane %v141, 2
    %v1586 = vsel %vm1566, %v1583, %v1585
    %v1587 = vrot.slane %v142, 2
    %v1588 = vrot.slane %v143, 2
    %v1589 = vsel %vm1566, %v1587, %v1588
    %v1590 = vrot.slane %v144, 2
    %v1591 = vsel %vm1566, %v1588, %v1590
    %v1592 = vrot.slane %v145, 2
    %v1593 = vrot.slane %v146, 2
    %v1594 = vsel %vm1566, %v1592, %v1593
    %v1595 = vrot.slane %v147, 2
    %v1596 = vsel %vm1566, %v1593, %v1595
    %v1597 = vrot.slane %v148, 2
    %v1598 = vrot.slane %v149, 2
    %v1599 = vsel %vm1566, %v1597, %v1598
    %v1600 = vrot.slane %v150, 2
    %v1601 = vsel %vm1566, %v1598, %v1600
    %v1602 = vrot.slane %v151, 2
    %v1603 = vrot.slane %v152, 2
    %v1604 = vsel %vm1566, %v1602, %v1603
    %v1605 = vrot.slane %v153, 2
    %v1606 = vsel %vm1566, %v1603, %v1605
    %v1607 = vrot.slane %v154, 2
    %v1608 = vrot.slane %v155, 2
    %v1609 = vsel %vm1566, %v1607, %v1608
    %v1610 = vrot.slane %v156, 2
    %v1611 = vsel %vm1566, %v1608, %v1610
    %v1612 = vrot.slane %v157, 2
    %v1613 = vrot.slane %v158, 2
    %v1614 = vsel %vm1566, %v1612, %v1613
    %v1615 = vrot.slane %v159, 2
    %v1616 = vsel %vm1566, %v1613, %v1615
    %v1617 = vrot.slane %v160, 2
    %v1618 = vrot.slane %v161, 2
    %v1619 = vsel %vm1566, %v1617, %v1618
    %v1620 = vrot.slane %v162, 2
    %v1621 = vsel %vm1566, %v1618, %v1620
    %v1622 = vrot.slane %v163, 2
    %v1623 = vrot.slane %v164, 2
    %v1624 = vsel %vm1566, %v1622, %v1623
    %v1625 = vrot.slane %v165, 2
    %v1626 = vsel %vm1566, %v1623, %v1625
    %v1627 = vrot.slane %v166, 2
    %v1628 = vrot.slane %v167, 2
    %v1629 = vsel %vm1566, %v1627, %v1628
    %v1630 = vrot.slane %v168, 2
    %v1631 = vsel %vm1566, %v1628, %v1630
    %v1632 = vrot.slane %v169, 2
    %v1633 = vrot.slane %v170, 2
    %v1634 = vsel %vm1566, %v1632, %v1633
    %v1635 = vrot.slane %v171, 2
    %v1636 = vsel %vm1566, %v1633, %v1635
    %v1637 = vrot.slane %v172, 2
    %v1638 = vrot.slane %v173, 2
    %v1639 = vsel %vm1566, %v1637, %v1638
    %v1640 = vrot.slane %v174, 2
    %v1641 = vsel %vm1566, %v1638, %v1640
    %v1642 = vrot.slane %v175, 2
    %v1643 = vrot.slane %v176, 2
    %v1644 = vsel %vm1566, %v1642, %v1643
    %v1645 = vrot.slane %v177, 2
    %v1646 = vsel %vm1566, %v1643, %v1645
    %v1647 = vrot.slane %v184, 2
    %v1648 = vrot.slane %v185, 2
    %v1649 = vsel %vm1566, %v1647, %v1648
    %v1650 = vrot.slane %v186, 2
    %v1651 = vsel %vm1566, %v1648, %v1650
    %v1652 = vrot.slane %v187, 2
    %v1653 = vrot.slane %v188, 2
    %v1654 = vsel %vm1566, %v1652, %v1653
    %v1655 = vrot.slane %v189, 2
    %v1656 = vsel %vm1566, %v1653, %v1655
    %v1657 = vrot.slane %v190, 2
    %v1658 = vrot.slane %v191, 2
    %v1659 = vsel %vm1566, %v1657, %v1658
    %v1660 = vrot.slane %v192, 2
    %v1661 = vsel %vm1566, %v1658, %v1660
    %v1662 = vrot.slane %v193, 2
    %v1663 = vrot.slane %v194, 2
    %v1664 = vsel %vm1566, %v1662, %v1663
    %v1665 = vrot.slane %v195, 2
    %v1666 = vsel %vm1566, %v1663, %v1665
    %v1667 = vrot.slane %v196, 2
    %v1668 = vrot.slane %v197, 2
    %v1669 = vsel %vm1566, %v1667, %v1668
    %v1670 = vrot.slane %v198, 2
    %v1671 = vsel %vm1566, %v1668, %v1670
    %v1672 = vrot.slane %v199, 2
    %v1673 = vrot.slane %v200, 2
    %v1674 = vsel %vm1566, %v1672, %v1673
    %v1675 = vrot.slane %v201, 2
    %v1676 = vsel %vm1566, %v1673, %v1675
    %v1677 = vrot.slane %v202, 2
    %v1678 = vrot.slane %v203, 2
    %v1679 = vsel %vm1566, %v1677, %v1678
    %v1680 = vrot.slane %v204, 2
    %v1681 = vsel %vm1566, %v1678, %v1680
    %v1682 = vrot.slane %v205, 2
    %v1683 = vrot.slane %v206, 2
    %v1684 = vsel %vm1566, %v1682, %v1683
    %v1685 = vrot.slane %v207, 2
    %v1686 = vsel %vm1566, %v1683, %v1685
    %v1687 = vrot.slane %v208, 2
    %v1688 = vrot.slane %v209, 2
    %v1689 = vsel %vm1566, %v1687, %v1688
    %v1690 = vrot.slane %v210, 2
    %v1691 = vsel %vm1566, %v1688, %v1690
    %v1692 = vrot.slane %v211, 2
    %v1693 = vrot.slane %v212, 2
    %v1694 = vsel %vm1566, %v1692, %v1693
    %v1695 = vrot.slane %v213, 2
    %v1696 = vsel %vm1566, %v1693, %v1695
    %v1697 = vrot.slane %v214, 2
    %v1698 = vrot.slane %v215, 2
    %v1699 = vsel %vm1566, %v1697, %v1698
    %v1700 = vrot.slane %v216, 2
    %v1701 = vsel %vm1566, %v1698, %v1700
    %v1702 = vrot.slane %v217, 2
    %v1703 = vrot.slane %v218, 2
    %v1704 = vsel %vm1566, %v1702, %v1703
    %v1705 = vrot.slane %v219, 2
    %v1706 = vsel %vm1566, %v1703, %v1705
    %v1707 = vrot.slane %v220, 2
    %v1708 = vrot.slane %v221, 2
    %v1709 = vsel %vm1566, %v1707, %v1708
    %v1710 = vrot.slane %v222, 2
    %v1711 = vsel %vm1566, %v1708, %v1710
    %v1712 = vrot.slane %v223, 2
    %v1713 = vrot.slane %v224, 2
    %v1714 = vsel %vm1566, %v1712, %v1713
    %v1715 = vrot.slane %v225, 2
    %v1716 = vsel %vm1566, %v1713, %v1715
    %v1717 = vrot.slane %v226, 2
    %v1718 = vrot.slane %v227, 2
    %v1719 = vsel %vm1566, %v1717, %v1718
    %v1720 = vrot.slane %v228, 2
    %v1721 = vsel %vm1566, %v1718, %v1720
    %v1722 = vrot.slane %v229, 2
    %v1723 = vrot.slane %v230, 2
    %v1724 = vsel %vm1566, %v1722, %v1723
    %v1725 = vrot.slane %v231, 2
    %v1726 = vsel %vm1566, %v1723, %v1725
    %v1791 = vpack.c.bf16 %v1571, %v1569
    %v1792 = vpack.c.bf16 %v1576, %v1574
    %v1793 = vpack.c.bf16 %v1581, %v1579
    %v1794 = vpack.c.bf16 %v1586, %v1584
    %v1795 = vpack.c.bf16 %v1591, %v1589
    %v1796 = vpack.c.bf16 %v1596, %v1594
    %v1797 = vpack.c.bf16 %v1601, %v1599
    %v1798 = vpack.c.bf16 %v1606, %v1604
    %v1799 = vpack.c.bf16 %v1611, %v1609
    %v1800 = vpack.c.bf16 %v1616, %v1614
    %v1801 = vpack.c.bf16 %v1621, %v1619
    %v1802 = vpack.c.bf16 %v1626, %v1624
    %v1803 = vpack.c.bf16 %v1631, %v1629
    %v1804 = vpack.c.bf16 %v1636, %v1634
    %v1805 = vpack.c.bf16 %v1641, %v1639
    %v1806 = vpack.c.bf16 %v1646, %v1644
    %v1807 = vpack.c.bf16 %v1651, %v1649
    %v1808 = vpack.c.bf16 %v1656, %v1654
    %v1809 = vpack.c.bf16 %v1661, %v1659
    %v1810 = vpack.c.bf16 %v1666, %v1664
    %v1811 = vpack.c.bf16 %v1671, %v1669
    %v1812 = vpack.c.bf16 %v1676, %v1674
    %v1813 = vpack.c.bf16 %v1681, %v1679
    %v1814 = vpack.c.bf16 %v1686, %v1684
    %v1815 = vpack.c.bf16 %v1691, %v1689
    %v1816 = vpack.c.bf16 %v1696, %v1694
    %v1817 = vpack.c.bf16 %v1701, %v1699
    %v1818 = vpack.c.bf16 %v1706, %v1704
    %v1819 = vpack.c.bf16 %v1711, %v1709
    %v1820 = vpack.c.bf16 %v1716, %v1714
    %v1821 = vpack.c.bf16 %v1721, %v1719
    %v1822 = vpack.c.bf16 %v1726, %v1724
    %v1825 = vunpack.c.l.s4 1983009808
    %v1826 = vunpack.c.0.s8 %v1825
    %v1827 = vlaneseq
    %v1828 = vshrl.u32 %v1827, 7
    %v1829 = vsub.s32 %v1826, %v1828
    %v1830 = vrot.slane %v240, %v1829
    %v1831 = vcombine.high %v1830, %v1830
    %v1833 = vsel %vm642, %v1791, 0
    %v1836 = vsel %vm642, %v1792, 0
    %v1839 = vsel %vm642, %v1793, 0
    %v1842 = vsel %vm642, %v1794, 0
    %v1845 = vsel %vm642, %v1795, 0
    %v1848 = vsel %vm642, %v1796, 0
    %v1851 = vsel %vm642, %v1797, 0
    %v1854 = vsel %vm642, %v1798, 0
    %v1857 = vsel %vm642, %v1799, 0
    %v1860 = vsel %vm642, %v1800, 0
    %v1863 = vsel %vm642, %v1801, 0
    %v1866 = vsel %vm642, %v1802, 0
    %v1869 = vsel %vm642, %v1803, 0
    %v1872 = vsel %vm642, %v1804, 0
    %v1875 = vsel %vm642, %v1805, 0
    %v1878 = vsel %vm642, %v1806, 0
    %v1881 = vsel %vm642, %v1807, 0
    %v1884 = vsel %vm642, %v1808, 0
    %v1887 = vsel %vm642, %v1809, 0
    %v1890 = vsel %vm642, %v1810, 0
    %v1893 = vsel %vm642, %v1811, 0
    %v1896 = vsel %vm642, %v1812, 0
    %v1899 = vsel %vm642, %v1813, 0
    %v1902 = vsel %vm642, %v1814, 0
    %v1905 = vsel %vm642, %v1815, 0
    %v1908 = vsel %vm642, %v1816, 0
    %v1911 = vsel %vm642, %v1817, 0
    %v1914 = vsel %vm642, %v1818, 0
    %v1917 = vsel %vm642, %v1819, 0
    %v1920 = vsel %vm642, %v1820, 0
    %v1923 = vsel %vm642, %v1821, 0
    %v1926 = vsel %vm642, %v1822, 0
    %v1929 = vand.u32 %v1830, %v742
    %v1932 = vand.u32 %v1831, %v742
    %1934 = vmatprep.subr.bf16.mxu0 %v1932
    %1935 = vmatpush1.bf16.msra.mxu0 %v1929
    %1936 = vmatprep.subr.bf16.mxu0 0
    %1937 = vmatpush1.bf16.msra.mxu0 0
    %1938 = vmatprep.subr.bf16.mxu0 0
    %1939 = vmatpush1.bf16.msra.mxu0 0
    %1940 = vmatprep.subr.bf16.mxu0 0
    %1941 = vmatpush1.bf16.msra.mxu0 0
    %1942 = vmatprep.subr.bf16.mxu0 0
    %1943 = vmatpush1.bf16.msra.mxu0 0
    %1944 = vmatprep.subr.bf16.mxu0 0
    %1945 = vmatpush1.bf16.msra.mxu0 0
    %1946 = vmatprep.subr.bf16.mxu0 0
    %1947 = vmatpush1.bf16.msra.mxu0 0
    %1948 = vmatprep.subr.bf16.mxu0 0
    %1949 = vmatpush1.bf16.msra.mxu0 0
    %1950 = vmatprep.subr.bf16.mxu0 0
    %1951 = vmatpush1.bf16.msra.mxu0 0
    %1952 = vmatprep.subr.bf16.mxu0 0
    %1953 = vmatpush1.bf16.msra.mxu0 0
    %1954 = vmatprep.subr.bf16.mxu0 0
    %1955 = vmatpush1.bf16.msra.mxu0 0
    %1956 = vmatprep.subr.bf16.mxu0 0
    %1957 = vmatpush1.bf16.msra.mxu0 0
    %1958 = vmatprep.subr.bf16.mxu0 0
    %1959 = vmatpush1.bf16.msra.mxu0 0
    %1960 = vmatprep.subr.bf16.mxu0 0
    %1961 = vmatpush1.bf16.msra.mxu0 0
    %1962 = vmatprep.subr.bf16.mxu0 0
    %1963 = vmatpush1.bf16.msra.mxu0 0
    %1964 = vmatprep.subr.bf16.mxu0 0
    %1965 = vmatpush1.bf16.msra.mxu0 0
    %1966 = vmatprep.mubr.bf16.mxu0 0
    %1967 = vmatmul.mubr.bf16.gmra.mrb[0].mxu0 %v1833
    %v1968 = vpop.f32.mrb[0].mxu0
    %v1969 = vadd.f32 0.0, %v1968
    %v1970 = vpop.f32.mrb[0].mxu0
    %v1971 = vadd.f32 0.0, %v1970
    %v1972 = vpop.f32.mrb[0].mxu0
    %v1973 = vadd.f32 0.0, %v1972
    %v1974 = vpop.f32.mrb[0].mxu0
    %v1975 = vadd.f32 0.0, %v1974
    %1976 = vmatprep.mubr.bf16.mxu0 0
    %1977 = vmatmul.mubr.bf16.gmra.mrb[0].mxu0 %v1836
    %v1978 = vpop.f32.mrb[0].mxu0
    %v1979 = vadd.f32 0.0, %v1978
    %v1980 = vpop.f32.mrb[0].mxu0
    %v1981 = vadd.f32 0.0, %v1980
    %v1982 = vpop.f32.mrb[0].mxu0
    %v1983 = vadd.f32 0.0, %v1982
    %v1984 = vpop.f32.mrb[0].mxu0
    %v1985 = vadd.f32 0.0, %v1984
    %1986 = vmatprep.mubr.bf16.mxu0 0
    %1987 = vmatmul.mubr.bf16.gmra.mrb[0].mxu0 %v1839
    %v1988 = vpop.f32.mrb[0].mxu0
    %v1989 = vadd.f32 0.0, %v1988
    %v1990 = vpop.f32.mrb[0].mxu0
    %v1991 = vadd.f32 0.0, %v1990
    %v1992 = vpop.f32.mrb[0].mxu0
    %v1993 = vadd.f32 0.0, %v1992
    %v1994 = vpop.f32.mrb[0].mxu0
    %v1995 = vadd.f32 0.0, %v1994
    %1996 = vmatprep.mubr.bf16.mxu0 0
    %1997 = vmatmul.mubr.bf16.gmra.mrb[0].mxu0 %v1842
    %v1998 = vpop.f32.mrb[0].mxu0
    %v1999 = vadd.f32 0.0, %v1998
    %v2000 = vpop.f32.mrb[0].mxu0
    %v2001 = vadd.f32 0.0, %v2000
    %v2002 = vpop.f32.mrb[0].mxu0
    %v2003 = vadd.f32 0.0, %v2002
    %v2004 = vpop.f32.mrb[0].mxu0
    %v2005 = vadd.f32 0.0, %v2004
    %2006 = vmatprep.mubr.bf16.mxu0 0
    %2007 = vmatmul.mubr.bf16.gmra.mrb[0].mxu0 %v1845
    %v2008 = vpop.f32.mrb[0].mxu0
    %v2009 = vadd.f32 0.0, %v2008
    %v2010 = vpop.f32.mrb[0].mxu0
    %v2011 = vadd.f32 0.0, %v2010
    %v2012 = vpop.f32.mrb[0].mxu0
    %v2013 = vadd.f32 0.0, %v2012
    %v2014 = vpop.f32.mrb[0].mxu0
    %v2015 = vadd.f32 0.0, %v2014
    %2016 = vmatprep.mubr.bf16.mxu0 0
    %2017 = vmatmul.mubr.bf16.gmra.mrb[0].mxu0 %v1848
    %v2018 = vpop.f32.mrb[0].mxu0
    %v2019 = vadd.f32 0.0, %v2018
    %v2020 = vpop.f32.mrb[0].mxu0
    %v2021 = vadd.f32 0.0, %v2020
    %v2022 = vpop.f32.mrb[0].mxu0
    %v2023 = vadd.f32 0.0, %v2022
    %v2024 = vpop.f32.mrb[0].mxu0
    %v2025 = vadd.f32 0.0, %v2024
    %2026 = vmatprep.mubr.bf16.mxu0 0
    %2027 = vmatmul.mubr.bf16.gmra.mrb[0].mxu0 %v1851
    %v2028 = vpop.f32.mrb[0].mxu0
    %v2029 = vadd.f32 0.0, %v2028
    %v2030 = vpop.f32.mrb[0].mxu0
    %v2031 = vadd.f32 0.0, %v2030
    %v2032 = vpop.f32.mrb[0].mxu0
    %v2033 = vadd.f32 0.0, %v2032
    %v2034 = vpop.f32.mrb[0].mxu0
    %v2035 = vadd.f32 0.0, %v2034
    %2036 = vmatprep.mubr.bf16.mxu0 0
    %2037 = vmatmul.mubr.bf16.gmra.mrb[0].mxu0 %v1854
    %v2038 = vpop.f32.mrb[0].mxu0
    %v2039 = vadd.f32 0.0, %v2038
    %v2040 = vpop.f32.mrb[0].mxu0
    %v2041 = vadd.f32 0.0, %v2040
    %v2042 = vpop.f32.mrb[0].mxu0
    %v2043 = vadd.f32 0.0, %v2042
    %v2044 = vpop.f32.mrb[0].mxu0
    %v2045 = vadd.f32 0.0, %v2044
    %2046 = vmatprep.mubr.bf16.mxu0 0
    %2047 = vmatmul.mubr.bf16.gmra.mrb[0].mxu0 %v1857
    %v2048 = vpop.f32.mrb[0].mxu0
    %v2049 = vadd.f32 0.0, %v2048
    %v2050 = vpop.f32.mrb[0].mxu0
    %v2051 = vadd.f32 0.0, %v2050
    %v2052 = vpop.f32.mrb[0].mxu0
    %v2053 = vadd.f32 0.0, %v2052
    %v2054 = vpop.f32.mrb[0].mxu0
    %v2055 = vadd.f32 0.0, %v2054
    %2056 = vmatprep.mubr.bf16.mxu0 0
    %2057 = vmatmul.mubr.bf16.gmra.mrb[0].mxu0 %v1860
    %v2058 = vpop.f32.mrb[0].mxu0
    %v2059 = vadd.f32 0.0, %v2058
    %v2060 = vpop.f32.mrb[0].mxu0
    %v2061 = vadd.f32 0.0, %v2060
    %v2062 = vpop.f32.mrb[0].mxu0
    %v2063 = vadd.f32 0.0, %v2062
    %v2064 = vpop.f32.mrb[0].mxu0
    %v2065 = vadd.f32 0.0, %v2064
    %2066 = vmatprep.mubr.bf16.mxu0 0
    %2067 = vmatmul.mubr.bf16.gmra.mrb[0].mxu0 %v1863
    %v2068 = vpop.f32.mrb[0].mxu0
    %v2069 = vadd.f32 0.0, %v2068
    %v2070 = vpop.f32.mrb[0].mxu0
    %v2071 = vadd.f32 0.0, %v2070
    %v2072 = vpop.f32.mrb[0].mxu0
    %v2073 = vadd.f32 0.0, %v2072
    %v2074 = vpop.f32.mrb[0].mxu0
    %v2075 = vadd.f32 0.0, %v2074
    %2076 = vmatprep.mubr.bf16.mxu0 0
    %2077 = vmatmul.mubr.bf16.gmra.mrb[0].mxu0 %v1866
    %v2078 = vpop.f32.mrb[0].mxu0
    %v2079 = vadd.f32 0.0, %v2078
    %v2080 = vpop.f32.mrb[0].mxu0
    %v2081 = vadd.f32 0.0, %v2080
    %v2082 = vpop.f32.mrb[0].mxu0
    %v2083 = vadd.f32 0.0, %v2082
    %v2084 = vpop.f32.mrb[0].mxu0
    %v2085 = vadd.f32 0.0, %v2084
    %2086 = vmatprep.mubr.bf16.mxu0 0
    %2087 = vmatmul.mubr.bf16.gmra.mrb[0].mxu0 %v1869
    %v2088 = vpop.f32.mrb[0].mxu0
    %v2089 = vadd.f32 0.0, %v2088
    %v2090 = vpop.f32.mrb[0].mxu0
    %v2091 = vadd.f32 0.0, %v2090
    %v2092 = vpop.f32.mrb[0].mxu0
    %v2093 = vadd.f32 0.0, %v2092
    %v2094 = vpop.f32.mrb[0].mxu0
    %v2095 = vadd.f32 0.0, %v2094
    %2096 = vmatprep.mubr.bf16.mxu0 0
    %2097 = vmatmul.mubr.bf16.gmra.mrb[0].mxu0 %v1872
    %v2098 = vpop.f32.mrb[0].mxu0
    %v2099 = vadd.f32 0.0, %v2098
    %v2100 = vpop.f32.mrb[0].mxu0
    %v2101 = vadd.f32 0.0, %v2100
    %v2102 = vpop.f32.mrb[0].mxu0
    %v2103 = vadd.f32 0.0, %v2102
    %v2104 = vpop.f32.mrb[0].mxu0
    %v2105 = vadd.f32 0.0, %v2104
    %2106 = vmatprep.mubr.bf16.mxu0 0
    %2107 = vmatmul.mubr.bf16.gmra.mrb[0].mxu0 %v1875
    %v2108 = vpop.f32.mrb[0].mxu0
    %v2109 = vadd.f32 0.0, %v2108
    %v2110 = vpop.f32.mrb[0].mxu0
    %v2111 = vadd.f32 0.0, %v2110
    %v2112 = vpop.f32.mrb[0].mxu0
    %v2113 = vadd.f32 0.0, %v2112
    %v2114 = vpop.f32.mrb[0].mxu0
    %v2115 = vadd.f32 0.0, %v2114
    %2116 = vmatprep.mubr.bf16.mxu0 0
    %2117 = vmatmul.mubr.bf16.gmra.mrb[0].mxu0 %v1878
    %v2118 = vpop.f32.mrb[0].mxu0
    %v2119 = vadd.f32 0.0, %v2118
    %v2120 = vpop.f32.mrb[0].mxu0
    %v2121 = vadd.f32 0.0, %v2120
    %v2122 = vpop.f32.mrb[0].mxu0
    %v2123 = vadd.f32 0.0, %v2122
    %v2124 = vpop.f32.mrb[0].mxu0
    %v2125 = vadd.f32 0.0, %v2124
    %2126 = vmatprep.mubr.bf16.mxu0 0
    %2127 = vmatmul.mubr.bf16.gmra.mrb[0].mxu0 %v1881
    %v2128 = vpop.f32.mrb[0].mxu0
    %v2129 = vadd.f32 0.0, %v2128
    %v2130 = vpop.f32.mrb[0].mxu0
    %v2131 = vadd.f32 0.0, %v2130
    %v2132 = vpop.f32.mrb[0].mxu0
    %v2133 = vadd.f32 0.0, %v2132
    %v2134 = vpop.f32.mrb[0].mxu0
    %v2135 = vadd.f32 0.0, %v2134
    %2136 = vmatprep.mubr.bf16.mxu0 0
    %2137 = vmatmul.mubr.bf16.gmra.mrb[0].mxu0 %v1884
    %v2138 = vpop.f32.mrb[0].mxu0
    %v2139 = vadd.f32 0.0, %v2138
    %v2140 = vpop.f32.mrb[0].mxu0
    %v2141 = vadd.f32 0.0, %v2140
    %v2142 = vpop.f32.mrb[0].mxu0
    %v2143 = vadd.f32 0.0, %v2142
    %v2144 = vpop.f32.mrb[0].mxu0
    %v2145 = vadd.f32 0.0, %v2144
    %2146 = vmatprep.mubr.bf16.mxu0 0
    %2147 = vmatmul.mubr.bf16.gmra.mrb[0].mxu0 %v1887
    %v2148 = vpop.f32.mrb[0].mxu0
    %v2149 = vadd.f32 0.0, %v2148
    %v2150 = vpop.f32.mrb[0].mxu0
    %v2151 = vadd.f32 0.0, %v2150
    %v2152 = vpop.f32.mrb[0].mxu0
    %v2153 = vadd.f32 0.0, %v2152
    %v2154 = vpop.f32.mrb[0].mxu0
    %v2155 = vadd.f32 0.0, %v2154
    %2156 = vmatprep.mubr.bf16.mxu0 0
    %2157 = vmatmul.mubr.bf16.gmra.mrb[0].mxu0 %v1890
    %v2158 = vpop.f32.mrb[0].mxu0
    %v2159 = vadd.f32 0.0, %v2158
    %v2160 = vpop.f32.mrb[0].mxu0
    %v2161 = vadd.f32 0.0, %v2160
    %v2162 = vpop.f32.mrb[0].mxu0
    %v2163 = vadd.f32 0.0, %v2162
    %v2164 = vpop.f32.mrb[0].mxu0
    %v2165 = vadd.f32 0.0, %v2164
    %2166 = vmatprep.mubr.bf16.mxu0 0
    %2167 = vmatmul.mubr.bf16.gmra.mrb[0].mxu0 %v1893
    %v2168 = vpop.f32.mrb[0].mxu0
    %v2169 = vadd.f32 0.0, %v2168
    %v2170 = vpop.f32.mrb[0].mxu0
    %v2171 = vadd.f32 0.0, %v2170
    %v2172 = vpop.f32.mrb[0].mxu0
    %v2173 = vadd.f32 0.0, %v2172
    %v2174 = vpop.f32.mrb[0].mxu0
    %v2175 = vadd.f32 0.0, %v2174
    %2176 = vmatprep.mubr.bf16.mxu0 0
    %2177 = vmatmul.mubr.bf16.gmra.mrb[0].mxu0 %v1896
    %v2178 = vpop.f32.mrb[0].mxu0
    %v2179 = vadd.f32 0.0, %v2178
    %v2180 = vpop.f32.mrb[0].mxu0
    %v2181 = vadd.f32 0.0, %v2180
    %v2182 = vpop.f32.mrb[0].mxu0
    %v2183 = vadd.f32 0.0, %v2182
    %v2184 = vpop.f32.mrb[0].mxu0
    %v2185 = vadd.f32 0.0, %v2184
    %2186 = vmatprep.mubr.bf16.mxu0 0
    %2187 = vmatmul.mubr.bf16.gmra.mrb[0].mxu0 %v1899
    %v2188 = vpop.f32.mrb[0].mxu0
    %v2189 = vadd.f32 0.0, %v2188
    %v2190 = vpop.f32.mrb[0].mxu0
    %v2191 = vadd.f32 0.0, %v2190
    %v2192 = vpop.f32.mrb[0].mxu0
    %v2193 = vadd.f32 0.0, %v2192
    %v2194 = vpop.f32.mrb[0].mxu0
    %v2195 = vadd.f32 0.0, %v2194
    %2196 = vmatprep.mubr.bf16.mxu0 0
    %2197 = vmatmul.mubr.bf16.gmra.mrb[0].mxu0 %v1902
    %v2198 = vpop.f32.mrb[0].mxu0
    %v2199 = vadd.f32 0.0, %v2198
    %v2200 = vpop.f32.mrb[0].mxu0
    %v2201 = vadd.f32 0.0, %v2200
    %v2202 = vpop.f32.mrb[0].mxu0
    %v2203 = vadd.f32 0.0, %v2202
    %v2204 = vpop.f32.mrb[0].mxu0
    %v2205 = vadd.f32 0.0, %v2204
    %2206 = vmatprep.mubr.bf16.mxu0 0
    %2207 = vmatmul.mubr.bf16.gmra.mrb[0].mxu0 %v1905
    %v2208 = vpop.f32.mrb[0].mxu0
    %v2209 = vadd.f32 0.0, %v2208
    %v2210 = vpop.f32.mrb[0].mxu0
    %v2211 = vadd.f32 0.0, %v2210
    %v2212 = vpop.f32.mrb[0].mxu0
    %v2213 = vadd.f32 0.0, %v2212
    %v2214 = vpop.f32.mrb[0].mxu0
    %v2215 = vadd.f32 0.0, %v2214
    %2216 = vmatprep.mubr.bf16.mxu0 0
    %2217 = vmatmul.mubr.bf16.gmra.mrb[0].mxu0 %v1908
    %v2218 = vpop.f32.mrb[0].mxu0
    %v2219 = vadd.f32 0.0, %v2218
    %v2220 = vpop.f32.mrb[0].mxu0
    %v2221 = vadd.f32 0.0, %v2220
    %v2222 = vpop.f32.mrb[0].mxu0
    %v2223 = vadd.f32 0.0, %v2222
    %v2224 = vpop.f32.mrb[0].mxu0
    %v2225 = vadd.f32 0.0, %v2224
    %2226 = vmatprep.mubr.bf16.mxu0 0
    %2227 = vmatmul.mubr.bf16.gmra.mrb[0].mxu0 %v1911
    %v2228 = vpop.f32.mrb[0].mxu0
    %v2229 = vadd.f32 0.0, %v2228
    %v2230 = vpop.f32.mrb[0].mxu0
    %v2231 = vadd.f32 0.0, %v2230
    %v2232 = vpop.f32.mrb[0].mxu0
    %v2233 = vadd.f32 0.0, %v2232
    %v2234 = vpop.f32.mrb[0].mxu0
    %v2235 = vadd.f32 0.0, %v2234
    %2236 = vmatprep.mubr.bf16.mxu0 0
    %2237 = vmatmul.mubr.bf16.gmra.mrb[0].mxu0 %v1914
    %v2238 = vpop.f32.mrb[0].mxu0
    %v2239 = vadd.f32 0.0, %v2238
    %v2240 = vpop.f32.mrb[0].mxu0
    %v2241 = vadd.f32 0.0, %v2240
    %v2242 = vpop.f32.mrb[0].mxu0
    %v2243 = vadd.f32 0.0, %v2242
    %v2244 = vpop.f32.mrb[0].mxu0
    %v2245 = vadd.f32 0.0, %v2244
    %2246 = vmatprep.mubr.bf16.mxu0 0
    %2247 = vmatmul.mubr.bf16.gmra.mrb[0].mxu0 %v1917
    %v2248 = vpop.f32.mrb[0].mxu0
    %v2249 = vadd.f32 0.0, %v2248
    %v2250 = vpop.f32.mrb[0].mxu0
    %v2251 = vadd.f32 0.0, %v2250
    %v2252 = vpop.f32.mrb[0].mxu0
    %v2253 = vadd.f32 0.0, %v2252
    %v2254 = vpop.f32.mrb[0].mxu0
    %v2255 = vadd.f32 0.0, %v2254
    %2256 = vmatprep.mubr.bf16.mxu0 0
    %2257 = vmatmul.mubr.bf16.gmra.mrb[0].mxu0 %v1920
    %v2258 = vpop.f32.mrb[0].mxu0
    %v2259 = vadd.f32 0.0, %v2258
    %v2260 = vpop.f32.mrb[0].mxu0
    %v2261 = vadd.f32 0.0, %v2260
    %v2262 = vpop.f32.mrb[0].mxu0
    %v2263 = vadd.f32 0.0, %v2262
    %v2264 = vpop.f32.mrb[0].mxu0
    %v2265 = vadd.f32 0.0, %v2264
    %2266 = vmatprep.mubr.bf16.mxu0 0
    %2267 = vmatmul.mubr.bf16.gmra.mrb[0].mxu0 %v1923
    %v2268 = vpop.f32.mrb[0].mxu0
    %v2269 = vadd.f32 0.0, %v2268
    %v2270 = vpop.f32.mrb[0].mxu0
    %v2271 = vadd.f32 0.0, %v2270
    %v2272 = vpop.f32.mrb[0].mxu0
    %v2273 = vadd.f32 0.0, %v2272
    %v2274 = vpop.f32.mrb[0].mxu0
    %v2275 = vadd.f32 0.0, %v2274
    %2276 = vmatprep.mubr.bf16.mxu0 0
    %2277 = vmatmul.mubr.bf16.gmra.mrb[0].mxu0 %v1926
    %v2278 = vpop.f32.mrb[0].mxu0
    %v2279 = vadd.f32 0.0, %v2278
    %v2280 = vpop.f32.mrb[0].mxu0
    %v2281 = vadd.f32 0.0, %v2280
    %v2282 = vpop.f32.mrb[0].mxu0
    %v2283 = vadd.f32 0.0, %v2282
    %v2284 = vpop.f32.mrb[0].mxu0
    %v2285 = vadd.f32 0.0, %v2284
    %2286 = vdwg.mxu0
    %v2287 = vadd.f32 %v1248, %v1969
    %v2288 = vadd.f32 %v1250, %v1971
    %v2289 = vadd.f32 %v1252, %v1973
    %v2290 = vadd.f32 %v1254, %v1975
    %v2291 = vadd.f32 %v1258, %v1979
    %v2292 = vadd.f32 %v1260, %v1981
    %v2293 = vadd.f32 %v1262, %v1983
    %v2294 = vadd.f32 %v1264, %v1985
    %v2295 = vadd.f32 %v1268, %v1989
    %v2296 = vadd.f32 %v1270, %v1991
    %v2297 = vadd.f32 %v1272, %v1993
    %v2298 = vadd.f32 %v1274, %v1995
    %v2299 = vadd.f32 %v1278, %v1999
    %v2300 = vadd.f32 %v1280, %v2001
    %v2301 = vadd.f32 %v1282, %v2003
    %v2302 = vadd.f32 %v1284, %v2005
    %v2303 = vadd.f32 %v1288, %v2009
    %v2304 = vadd.f32 %v1290, %v2011
    %v2305 = vadd.f32 %v1292, %v2013
    %v2306 = vadd.f32 %v1294, %v2015
    %v2307 = vadd.f32 %v1298, %v2019
    %v2308 = vadd.f32 %v1300, %v2021
    %v2309 = vadd.f32 %v1302, %v2023
    %v2310 = vadd.f32 %v1304, %v2025
    %v2311 = vadd.f32 %v1308, %v2029
    %v2312 = vadd.f32 %v1310, %v2031
    %v2313 = vadd.f32 %v1312, %v2033
    %v2314 = vadd.f32 %v1314, %v2035
    %v2315 = vadd.f32 %v1318, %v2039
    %v2316 = vadd.f32 %v1320, %v2041
    %v2317 = vadd.f32 %v1322, %v2043
    %v2318 = vadd.f32 %v1324, %v2045
    %v2319 = vadd.f32 %v1328, %v2049
    %v2320 = vadd.f32 %v1330, %v2051
    %v2321 = vadd.f32 %v1332, %v2053
    %v2322 = vadd.f32 %v1334, %v2055
    %v2323 = vadd.f32 %v1338, %v2059
    %v2324 = vadd.f32 %v1340, %v2061
    %v2325 = vadd.f32 %v1342, %v2063
    %v2326 = vadd.f32 %v1344, %v2065
    %v2327 = vadd.f32 %v1348, %v2069
    %v2328 = vadd.f32 %v1350, %v2071
    %v2329 = vadd.f32 %v1352, %v2073
    %v2330 = vadd.f32 %v1354, %v2075
    %v2331 = vadd.f32 %v1358, %v2079
    %v2332 = vadd.f32 %v1360, %v2081
    %v2333 = vadd.f32 %v1362, %v2083
    %v2334 = vadd.f32 %v1364, %v2085
    %v2335 = vadd.f32 %v1368, %v2089
    %v2336 = vadd.f32 %v1370, %v2091
    %v2337 = vadd.f32 %v1372, %v2093
    %v2338 = vadd.f32 %v1374, %v2095
    %v2339 = vadd.f32 %v1378, %v2099
    %v2340 = vadd.f32 %v1380, %v2101
    %v2341 = vadd.f32 %v1382, %v2103
    %v2342 = vadd.f32 %v1384, %v2105
    %v2343 = vadd.f32 %v1388, %v2109
    %v2344 = vadd.f32 %v1390, %v2111
    %v2345 = vadd.f32 %v1392, %v2113
    %v2346 = vadd.f32 %v1394, %v2115
    %v2347 = vadd.f32 %v1398, %v2119
    %v2348 = vadd.f32 %v1400, %v2121
    %v2349 = vadd.f32 %v1402, %v2123
    %v2350 = vadd.f32 %v1404, %v2125
    %v2351 = vadd.f32 %v1408, %v2129
    %v2352 = vadd.f32 %v1410, %v2131
    %v2353 = vadd.f32 %v1412, %v2133
    %v2354 = vadd.f32 %v1414, %v2135
    %v2355 = vadd.f32 %v1418, %v2139
    %v2356 = vadd.f32 %v1420, %v2141
    %v2357 = vadd.f32 %v1422, %v2143
    %v2358 = vadd.f32 %v1424, %v2145
    %v2359 = vadd.f32 %v1428, %v2149
    %v2360 = vadd.f32 %v1430, %v2151
    %v2361 = vadd.f32 %v1432, %v2153
    %v2362 = vadd.f32 %v1434, %v2155
    %v2363 = vadd.f32 %v1438, %v2159
    %v2364 = vadd.f32 %v1440, %v2161
    %v2365 = vadd.f32 %v1442, %v2163
    %v2366 = vadd.f32 %v1444, %v2165
    %v2367 = vadd.f32 %v1448, %v2169
    %v2368 = vadd.f32 %v1450, %v2171
    %v2369 = vadd.f32 %v1452, %v2173
    %v2370 = vadd.f32 %v1454, %v2175
    %v2371 = vadd.f32 %v1458, %v2179
    %v2372 = vadd.f32 %v1460, %v2181
    %v2373 = vadd.f32 %v1462, %v2183
    %v2374 = vadd.f32 %v1464, %v2185
    %v2375 = vadd.f32 %v1468, %v2189
    %v2376 = vadd.f32 %v1470, %v2191
    %v2377 = vadd.f32 %v1472, %v2193
    %v2378 = vadd.f32 %v1474, %v2195
    %v2379 = vadd.f32 %v1478, %v2199
    %v2380 = vadd.f32 %v1480, %v2201
    %v2381 = vadd.f32 %v1482, %v2203
    %v2382 = vadd.f32 %v1484, %v2205
    %v2383 = vadd.f32 %v1488, %v2209
    %v2384 = vadd.f32 %v1490, %v2211
    %v2385 = vadd.f32 %v1492, %v2213
    %v2386 = vadd.f32 %v1494, %v2215
    %v2387 = vadd.f32 %v1498, %v2219
    %v2388 = vadd.f32 %v1500, %v2221
    %v2389 = vadd.f32 %v1502, %v2223
    %v2390 = vadd.f32 %v1504, %v2225
    %v2391 = vadd.f32 %v1508, %v2229
    %v2392 = vadd.f32 %v1510, %v2231
    %v2393 = vadd.f32 %v1512, %v2233
    %v2394 = vadd.f32 %v1514, %v2235
    %v2395 = vadd.f32 %v1518, %v2239
    %v2396 = vadd.f32 %v1520, %v2241
    %v2397 = vadd.f32 %v1522, %v2243
    %v2398 = vadd.f32 %v1524, %v2245
    %v2399 = vadd.f32 %v1528, %v2249
    %v2400 = vadd.f32 %v1530, %v2251
    %v2401 = vadd.f32 %v1532, %v2253
    %v2402 = vadd.f32 %v1534, %v2255
    %v2403 = vadd.f32 %v1538, %v2259
    %v2404 = vadd.f32 %v1540, %v2261
    %v2405 = vadd.f32 %v1542, %v2263
    %v2406 = vadd.f32 %v1544, %v2265
    %v2407 = vadd.f32 %v1548, %v2269
    %v2408 = vadd.f32 %v1550, %v2271
    %v2409 = vadd.f32 %v1552, %v2273
    %v2410 = vadd.f32 %v1554, %v2275
    %v2411 = vadd.f32 %v1558, %v2279
    %v2412 = vadd.f32 %v1560, %v2281
    %v2413 = vadd.f32 %v1562, %v2283
    %v2414 = vadd.f32 %v1564, %v2285
    %v2415 = vpack.c.bf16 %v179, %v178
    %v2416 = vpack.c.bf16 %v233, %v232
    %v2419 = vunpack.c.l.s4 1983009808
    %v2420 = vunpack.c.0.s8 %v2419
    %v2421 = vlaneseq
    %v2422 = vshrl.u32 %v2421, 7
    %v2423 = vsub.s32 %v2420, %v2422
    %v2424 = vrot.slane %v241, %v2423
    %v2425 = vcombine.high %v2424, %v2424
    %v2427 = vsel %vm642, %v2415, 0
    %v2430 = vsel %vm642, %v2416, 0
    %v2433 = vand.u32 %v2424, %v742
    %v2436 = vand.u32 %v2425, %v742
    %2438 = vmatprep.subr.bf16.mxu0 %v2436
    %2439 = vmatpush1.bf16.msra.mxu0 %v2433
    %2440 = vmatprep.subr.bf16.mxu0 0
    %2441 = vmatpush1.bf16.msra.mxu0 0
    %2442 = vmatprep.subr.bf16.mxu0 0
    %2443 = vmatpush1.bf16.msra.mxu0 0
    %2444 = vmatprep.subr.bf16.mxu0 0
    %2445 = vmatpush1.bf16.msra.mxu0 0
    %2446 = vmatprep.subr.bf16.mxu0 0
    %2447 = vmatpush1.bf16.msra.mxu0 0
    %2448 = vmatprep.subr.bf16.mxu0 0
    %2449 = vmatpush1.bf16.msra.mxu0 0
    %2450 = vmatprep.subr.bf16.mxu0 0
    %2451 = vmatpush1.bf16.msra.mxu0 0
    %2452 = vmatprep.subr.bf16.mxu0 0
    %2453 = vmatpush1.bf16.msra.mxu0 0
    %2454 = vmatprep.subr.bf16.mxu0 0
    %2455 = vmatpush1.bf16.msra.mxu0 0
    %2456 = vmatprep.subr.bf16.mxu0 0
    %2457 = vmatpush1.bf16.msra.mxu0 0
    %2458 = vmatprep.subr.bf16.mxu0 0
    %2459 = vmatpush1.bf16.msra.mxu0 0
    %2460 = vmatprep.subr.bf16.mxu0 0
    %2461 = vmatpush1.bf16.msra.mxu0 0
    %2462 = vmatprep.subr.bf16.mxu0 0
    %2463 = vmatpush1.bf16.msra.mxu0 0
    %2464 = vmatprep.subr.bf16.mxu0 0
    %2465 = vmatpush1.bf16.msra.mxu0 0
    %2466 = vmatprep.subr.bf16.mxu0 0
    %2467 = vmatpush1.bf16.msra.mxu0 0
    %2468 = vmatprep.subr.bf16.mxu0 0
    %2469 = vmatpush1.bf16.msra.mxu0 0
    %2470 = vmatprep.mubr.bf16.mxu0 0
    %2471 = vmatmul.mubr.bf16.gmra.mrb[0].mxu0 %v1115
    %v2472 = vpop.f32.mrb[0].mxu0
    %v2473 = vadd.f32 0.0, %v2472
    %v2474 = vpop.f32.mrb[0].mxu0
    %v2475 = vadd.f32 0.0, %v2474
    %v2476 = vpop.f32.mrb[0].mxu0
    %v2477 = vadd.f32 0.0, %v2476
    %v2478 = vpop.f32.mrb[0].mxu0
    %v2479 = vadd.f32 0.0, %v2478
    %2480 = vmatprep.mubr.bf16.mxu0 0
    %2481 = vmatmul.mubr.bf16.gmra.mrb[0].mxu0 %v1118
    %v2482 = vpop.f32.mrb[0].mxu0
    %v2483 = vadd.f32 0.0, %v2482
    %v2484 = vpop.f32.mrb[0].mxu0
    %v2485 = vadd.f32 0.0, %v2484
    %v2486 = vpop.f32.mrb[0].mxu0
    %v2487 = vadd.f32 0.0, %v2486
    %v2488 = vpop.f32.mrb[0].mxu0
    %v2489 = vadd.f32 0.0, %v2488
    %2490 = vmatprep.mubr.bf16.mxu0 0
    %2491 = vmatmul.mubr.bf16.gmra.mrb[0].mxu0 %v1121
    %v2492 = vpop.f32.mrb[0].mxu0
    %v2493 = vadd.f32 0.0, %v2492
    %v2494 = vpop.f32.mrb[0].mxu0
    %v2495 = vadd.f32 0.0, %v2494
    %v2496 = vpop.f32.mrb[0].mxu0
    %v2497 = vadd.f32 0.0, %v2496
    %v2498 = vpop.f32.mrb[0].mxu0
    %v2499 = vadd.f32 0.0, %v2498
    %2500 = vmatprep.mubr.bf16.mxu0 0
    %2501 = vmatmul.mubr.bf16.gmra.mrb[0].mxu0 %v1124
    %v2502 = vpop.f32.mrb[0].mxu0
    %v2503 = vadd.f32 0.0, %v2502
    %v2504 = vpop.f32.mrb[0].mxu0
    %v2505 = vadd.f32 0.0, %v2504
    %v2506 = vpop.f32.mrb[0].mxu0
    %v2507 = vadd.f32 0.0, %v2506
    %v2508 = vpop.f32.mrb[0].mxu0
    %v2509 = vadd.f32 0.0, %v2508
    %2510 = vmatprep.mubr.bf16.mxu0 0
    %2511 = vmatmul.mubr.bf16.gmra.mrb[0].mxu0 %v1127
    %v2512 = vpop.f32.mrb[0].mxu0
    %v2513 = vadd.f32 0.0, %v2512
    %v2514 = vpop.f32.mrb[0].mxu0
    %v2515 = vadd.f32 0.0, %v2514
    %v2516 = vpop.f32.mrb[0].mxu0
    %v2517 = vadd.f32 0.0, %v2516
    %v2518 = vpop.f32.mrb[0].mxu0
    %v2519 = vadd.f32 0.0, %v2518
    %2520 = vmatprep.mubr.bf16.mxu0 0
    %2521 = vmatmul.mubr.bf16.gmra.mrb[0].mxu0 %v1130
    %v2522 = vpop.f32.mrb[0].mxu0
    %v2523 = vadd.f32 0.0, %v2522
    %v2524 = vpop.f32.mrb[0].mxu0
    %v2525 = vadd.f32 0.0, %v2524
    %v2526 = vpop.f32.mrb[0].mxu0
    %v2527 = vadd.f32 0.0, %v2526
    %v2528 = vpop.f32.mrb[0].mxu0
    %v2529 = vadd.f32 0.0, %v2528
    %2530 = vmatprep.mubr.bf16.mxu0 0
    %2531 = vmatmul.mubr.bf16.gmra.mrb[0].mxu0 %v1133
    %v2532 = vpop.f32.mrb[0].mxu0
    %v2533 = vadd.f32 0.0, %v2532
    %v2534 = vpop.f32.mrb[0].mxu0
    %v2535 = vadd.f32 0.0, %v2534
    %v2536 = vpop.f32.mrb[0].mxu0
    %v2537 = vadd.f32 0.0, %v2536
    %v2538 = vpop.f32.mrb[0].mxu0
    %v2539 = vadd.f32 0.0, %v2538
    %2540 = vmatprep.mubr.bf16.mxu0 0
    %2541 = vmatmul.mubr.bf16.gmra.mrb[0].mxu0 %v1136
    %v2542 = vpop.f32.mrb[0].mxu0
    %v2543 = vadd.f32 0.0, %v2542
    %v2544 = vpop.f32.mrb[0].mxu0
    %v2545 = vadd.f32 0.0, %v2544
    %v2546 = vpop.f32.mrb[0].mxu0
    %v2547 = vadd.f32 0.0, %v2546
    %v2548 = vpop.f32.mrb[0].mxu0
    %v2549 = vadd.f32 0.0, %v2548
    %2550 = vmatprep.mubr.bf16.mxu0 0
    %2551 = vmatmul.mubr.bf16.gmra.mrb[0].mxu0 %v1139
    %v2552 = vpop.f32.mrb[0].mxu0
    %v2553 = vadd.f32 0.0, %v2552
    %v2554 = vpop.f32.mrb[0].mxu0
    %v2555 = vadd.f32 0.0, %v2554
    %v2556 = vpop.f32.mrb[0].mxu0
    %v2557 = vadd.f32 0.0, %v2556
    %v2558 = vpop.f32.mrb[0].mxu0
    %v2559 = vadd.f32 0.0, %v2558
    %2560 = vmatprep.mubr.bf16.mxu0 0
    %2561 = vmatmul.mubr.bf16.gmra.mrb[0].mxu0 %v1142
    %v2562 = vpop.f32.mrb[0].mxu0
    %v2563 = vadd.f32 0.0, %v2562
    %v2564 = vpop.f32.mrb[0].mxu0
    %v2565 = vadd.f32 0.0, %v2564
    %v2566 = vpop.f32.mrb[0].mxu0
    %v2567 = vadd.f32 0.0, %v2566
    %v2568 = vpop.f32.mrb[0].mxu0
    %v2569 = vadd.f32 0.0, %v2568
    %2570 = vmatprep.mubr.bf16.mxu0 0
    %2571 = vmatmul.mubr.bf16.gmra.mrb[0].mxu0 %v1145
    %v2572 = vpop.f32.mrb[0].mxu0
    %v2573 = vadd.f32 0.0, %v2572
    %v2574 = vpop.f32.mrb[0].mxu0
    %v2575 = vadd.f32 0.0, %v2574
    %v2576 = vpop.f32.mrb[0].mxu0
    %v2577 = vadd.f32 0.0, %v2576
    %v2578 = vpop.f32.mrb[0].mxu0
    %v2579 = vadd.f32 0.0, %v2578
    %2580 = vmatprep.mubr.bf16.mxu0 0
    %2581 = vmatmul.mubr.bf16.gmra.mrb[0].mxu0 %v1148
    %v2582 = vpop.f32.mrb[0].mxu0
    %v2583 = vadd.f32 0.0, %v2582
    %v2584 = vpop.f32.mrb[0].mxu0
    %v2585 = vadd.f32 0.0, %v2584
    %v2586 = vpop.f32.mrb[0].mxu0
    %v2587 = vadd.f32 0.0, %v2586
    %v2588 = vpop.f32.mrb[0].mxu0
    %v2589 = vadd.f32 0.0, %v2588
    %2590 = vmatprep.mubr.bf16.mxu0 0
    %2591 = vmatmul.mubr.bf16.gmra.mrb[0].mxu0 %v1151
    %v2592 = vpop.f32.mrb[0].mxu0
    %v2593 = vadd.f32 0.0, %v2592
    %v2594 = vpop.f32.mrb[0].mxu0
    %v2595 = vadd.f32 0.0, %v2594
    %v2596 = vpop.f32.mrb[0].mxu0
    %v2597 = vadd.f32 0.0, %v2596
    %v2598 = vpop.f32.mrb[0].mxu0
    %v2599 = vadd.f32 0.0, %v2598
    %2600 = vmatprep.mubr.bf16.mxu0 0
    %2601 = vmatmul.mubr.bf16.gmra.mrb[0].mxu0 %v1154
    %v2602 = vpop.f32.mrb[0].mxu0
    %v2603 = vadd.f32 0.0, %v2602
    %v2604 = vpop.f32.mrb[0].mxu0
    %v2605 = vadd.f32 0.0, %v2604
    %v2606 = vpop.f32.mrb[0].mxu0
    %v2607 = vadd.f32 0.0, %v2606
    %v2608 = vpop.f32.mrb[0].mxu0
    %v2609 = vadd.f32 0.0, %v2608
    %2610 = vmatprep.mubr.bf16.mxu0 0
    %2611 = vmatmul.mubr.bf16.gmra.mrb[0].mxu0 %v1157
    %v2612 = vpop.f32.mrb[0].mxu0
    %v2613 = vadd.f32 0.0, %v2612
    %v2614 = vpop.f32.mrb[0].mxu0
    %v2615 = vadd.f32 0.0, %v2614
    %v2616 = vpop.f32.mrb[0].mxu0
    %v2617 = vadd.f32 0.0, %v2616
    %v2618 = vpop.f32.mrb[0].mxu0
    %v2619 = vadd.f32 0.0, %v2618
    %2620 = vmatprep.mubr.bf16.mxu0 0
    %2621 = vmatmul.mubr.bf16.gmra.mrb[0].mxu0 %v2427
    %v2622 = vpop.f32.mrb[0].mxu0
    %v2623 = vadd.f32 0.0, %v2622
    %v2624 = vpop.f32.mrb[0].mxu0
    %v2625 = vadd.f32 0.0, %v2624
    %v2626 = vpop.f32.mrb[0].mxu0
    %v2627 = vadd.f32 0.0, %v2626
    %v2628 = vpop.f32.mrb[0].mxu0
    %v2629 = vadd.f32 0.0, %v2628
    %2630 = vmatprep.mubr.bf16.mxu0 0
    %2631 = vmatmul.mubr.bf16.gmra.mrb[0].mxu0 %v1163
    %v2632 = vpop.f32.mrb[0].mxu0
    %v2633 = vadd.f32 0.0, %v2632
    %v2634 = vpop.f32.mrb[0].mxu0
    %v2635 = vadd.f32 0.0, %v2634
    %v2636 = vpop.f32.mrb[0].mxu0
    %v2637 = vadd.f32 0.0, %v2636
    %v2638 = vpop.f32.mrb[0].mxu0
    %v2639 = vadd.f32 0.0, %v2638
    %2640 = vmatprep.mubr.bf16.mxu0 0
    %2641 = vmatmul.mubr.bf16.gmra.mrb[0].mxu0 %v1166
    %v2642 = vpop.f32.mrb[0].mxu0
    %v2643 = vadd.f32 0.0, %v2642
    %v2644 = vpop.f32.mrb[0].mxu0
    %v2645 = vadd.f32 0.0, %v2644
    %v2646 = vpop.f32.mrb[0].mxu0
    %v2647 = vadd.f32 0.0, %v2646
    %v2648 = vpop.f32.mrb[0].mxu0
    %v2649 = vadd.f32 0.0, %v2648
    %2650 = vmatprep.mubr.bf16.mxu0 0
    %2651 = vmatmul.mubr.bf16.gmra.mrb[0].mxu0 %v1169
    %v2652 = vpop.f32.mrb[0].mxu0
    %v2653 = vadd.f32 0.0, %v2652
    %v2654 = vpop.f32.mrb[0].mxu0
    %v2655 = vadd.f32 0.0, %v2654
    %v2656 = vpop.f32.mrb[0].mxu0
    %v2657 = vadd.f32 0.0, %v2656
    %v2658 = vpop.f32.mrb[0].mxu0
    %v2659 = vadd.f32 0.0, %v2658
    %2660 = vmatprep.mubr.bf16.mxu0 0
    %2661 = vmatmul.mubr.bf16.gmra.mrb[0].mxu0 %v1172
    %v2662 = vpop.f32.mrb[0].mxu0
    %v2663 = vadd.f32 0.0, %v2662
    %v2664 = vpop.f32.mrb[0].mxu0
    %v2665 = vadd.f32 0.0, %v2664
    %v2666 = vpop.f32.mrb[0].mxu0
    %v2667 = vadd.f32 0.0, %v2666
    %v2668 = vpop.f32.mrb[0].mxu0
    %v2669 = vadd.f32 0.0, %v2668
    %2670 = vmatprep.mubr.bf16.mxu0 0
    %2671 = vmatmul.mubr.bf16.gmra.mrb[0].mxu0 %v1175
    %v2672 = vpop.f32.mrb[0].mxu0
    %v2673 = vadd.f32 0.0, %v2672
    %v2674 = vpop.f32.mrb[0].mxu0
    %v2675 = vadd.f32 0.0, %v2674
    %v2676 = vpop.f32.mrb[0].mxu0
    %v2677 = vadd.f32 0.0, %v2676
    %v2678 = vpop.f32.mrb[0].mxu0
    %v2679 = vadd.f32 0.0, %v2678
    %2680 = vmatprep.mubr.bf16.mxu0 0
    %2681 = vmatmul.mubr.bf16.gmra.mrb[0].mxu0 %v1178
    %v2682 = vpop.f32.mrb[0].mxu0
    %v2683 = vadd.f32 0.0, %v2682
    %v2684 = vpop.f32.mrb[0].mxu0
    %v2685 = vadd.f32 0.0, %v2684
    %v2686 = vpop.f32.mrb[0].mxu0
    %v2687 = vadd.f32 0.0, %v2686
    %v2688 = vpop.f32.mrb[0].mxu0
    %v2689 = vadd.f32 0.0, %v2688
    %2690 = vmatprep.mubr.bf16.mxu0 0
    %2691 = vmatmul.mubr.bf16.gmra.mrb[0].mxu0 %v1181
    %v2692 = vpop.f32.mrb[0].mxu0
    %v2693 = vadd.f32 0.0, %v2692
    %v2694 = vpop.f32.mrb[0].mxu0
    %v2695 = vadd.f32 0.0, %v2694
    %v2696 = vpop.f32.mrb[0].mxu0
    %v2697 = vadd.f32 0.0, %v2696
    %v2698 = vpop.f32.mrb[0].mxu0
    %v2699 = vadd.f32 0.0, %v2698
    %2700 = vmatprep.mubr.bf16.mxu0 0
    %2701 = vmatmul.mubr.bf16.gmra.mrb[0].mxu0 %v1184
    %v2702 = vpop.f32.mrb[0].mxu0
    %v2703 = vadd.f32 0.0, %v2702
    %v2704 = vpop.f32.mrb[0].mxu0
    %v2705 = vadd.f32 0.0, %v2704
    %v2706 = vpop.f32.mrb[0].mxu0
    %v2707 = vadd.f32 0.0, %v2706
    %v2708 = vpop.f32.mrb[0].mxu0
    %v2709 = vadd.f32 0.0, %v2708
    %2710 = vmatprep.mubr.bf16.mxu0 0
    %2711 = vmatmul.mubr.bf16.gmra.mrb[0].mxu0 %v1187
    %v2712 = vpop.f32.mrb[0].mxu0
    %v2713 = vadd.f32 0.0, %v2712
    %v2714 = vpop.f32.mrb[0].mxu0
    %v2715 = vadd.f32 0.0, %v2714
    %v2716 = vpop.f32.mrb[0].mxu0
    %v2717 = vadd.f32 0.0, %v2716
    %v2718 = vpop.f32.mrb[0].mxu0
    %v2719 = vadd.f32 0.0, %v2718
    %2720 = vmatprep.mubr.bf16.mxu0 0
    %2721 = vmatmul.mubr.bf16.gmra.mrb[0].mxu0 %v1190
    %v2722 = vpop.f32.mrb[0].mxu0
    %v2723 = vadd.f32 0.0, %v2722
    %v2724 = vpop.f32.mrb[0].mxu0
    %v2725 = vadd.f32 0.0, %v2724
    %v2726 = vpop.f32.mrb[0].mxu0
    %v2727 = vadd.f32 0.0, %v2726
    %v2728 = vpop.f32.mrb[0].mxu0
    %v2729 = vadd.f32 0.0, %v2728
    %2730 = vmatprep.mubr.bf16.mxu0 0
    %2731 = vmatmul.mubr.bf16.gmra.mrb[0].mxu0 %v1193
    %v2732 = vpop.f32.mrb[0].mxu0
    %v2733 = vadd.f32 0.0, %v2732
    %v2734 = vpop.f32.mrb[0].mxu0
    %v2735 = vadd.f32 0.0, %v2734
    %v2736 = vpop.f32.mrb[0].mxu0
    %v2737 = vadd.f32 0.0, %v2736
    %v2738 = vpop.f32.mrb[0].mxu0
    %v2739 = vadd.f32 0.0, %v2738
    %2740 = vmatprep.mubr.bf16.mxu0 0
    %2741 = vmatmul.mubr.bf16.gmra.mrb[0].mxu0 %v1196
    %v2742 = vpop.f32.mrb[0].mxu0
    %v2743 = vadd.f32 0.0, %v2742
    %v2744 = vpop.f32.mrb[0].mxu0
    %v2745 = vadd.f32 0.0, %v2744
    %v2746 = vpop.f32.mrb[0].mxu0
    %v2747 = vadd.f32 0.0, %v2746
    %v2748 = vpop.f32.mrb[0].mxu0
    %v2749 = vadd.f32 0.0, %v2748
    %2750 = vmatprep.mubr.bf16.mxu0 0
    %2751 = vmatmul.mubr.bf16.gmra.mrb[0].mxu0 %v1199
    %v2752 = vpop.f32.mrb[0].mxu0
    %v2753 = vadd.f32 0.0, %v2752
    %v2754 = vpop.f32.mrb[0].mxu0
    %v2755 = vadd.f32 0.0, %v2754
    %v2756 = vpop.f32.mrb[0].mxu0
    %v2757 = vadd.f32 0.0, %v2756
    %v2758 = vpop.f32.mrb[0].mxu0
    %v2759 = vadd.f32 0.0, %v2758
    %2760 = vmatprep.mubr.bf16.mxu0 0
    %2761 = vmatmul.mubr.bf16.gmra.mrb[0].mxu0 %v1202
    %v2762 = vpop.f32.mrb[0].mxu0
    %v2763 = vadd.f32 0.0, %v2762
    %v2764 = vpop.f32.mrb[0].mxu0
    %v2765 = vadd.f32 0.0, %v2764
    %v2766 = vpop.f32.mrb[0].mxu0
    %v2767 = vadd.f32 0.0, %v2766
    %v2768 = vpop.f32.mrb[0].mxu0
    %v2769 = vadd.f32 0.0, %v2768
    %2770 = vmatprep.mubr.bf16.mxu0 0
    %2771 = vmatmul.mubr.bf16.gmra.mrb[0].mxu0 %v1205
    %v2772 = vpop.f32.mrb[0].mxu0
    %v2773 = vadd.f32 0.0, %v2772
    %v2774 = vpop.f32.mrb[0].mxu0
    %v2775 = vadd.f32 0.0, %v2774
    %v2776 = vpop.f32.mrb[0].mxu0
    %v2777 = vadd.f32 0.0, %v2776
    %v2778 = vpop.f32.mrb[0].mxu0
    %v2779 = vadd.f32 0.0, %v2778
    %2780 = vmatprep.mubr.bf16.mxu0 0
    %2781 = vmatmul.mubr.bf16.gmra.mrb[0].mxu0 %v2430
    %v2782 = vpop.f32.mrb[0].mxu0
    %v2783 = vadd.f32 0.0, %v2782
    %v2784 = vpop.f32.mrb[0].mxu0
    %v2785 = vadd.f32 0.0, %v2784
    %v2786 = vpop.f32.mrb[0].mxu0
    %v2787 = vadd.f32 0.0, %v2786
    %v2788 = vpop.f32.mrb[0].mxu0
    %v2789 = vadd.f32 0.0, %v2788
    %2790 = vdwg.mxu0
    %v2791 = vadd.f32 %v2287, %v2473
    %v2792 = vadd.f32 %v2288, %v2475
    %v2793 = vadd.f32 %v2289, %v2477
    %v2794 = vadd.f32 %v2290, %v2479
    %v2795 = vadd.f32 %v2291, %v2483
    %v2796 = vadd.f32 %v2292, %v2485
    %v2797 = vadd.f32 %v2293, %v2487
    %v2798 = vadd.f32 %v2294, %v2489
    %v2799 = vadd.f32 %v2295, %v2493
    %v2800 = vadd.f32 %v2296, %v2495
    %v2801 = vadd.f32 %v2297, %v2497
    %v2802 = vadd.f32 %v2298, %v2499
    %v2803 = vadd.f32 %v2299, %v2503
    %v2804 = vadd.f32 %v2300, %v2505
    %v2805 = vadd.f32 %v2301, %v2507
    %v2806 = vadd.f32 %v2302, %v2509
    %v2807 = vadd.f32 %v2303, %v2513
    %v2808 = vadd.f32 %v2304, %v2515
    %v2809 = vadd.f32 %v2305, %v2517
    %v2810 = vadd.f32 %v2306, %v2519
    %v2811 = vadd.f32 %v2307, %v2523
    %v2812 = vadd.f32 %v2308, %v2525
    %v2813 = vadd.f32 %v2309, %v2527
    %v2814 = vadd.f32 %v2310, %v2529
    %v2815 = vadd.f32 %v2311, %v2533
    %v2816 = vadd.f32 %v2312, %v2535
    %v2817 = vadd.f32 %v2313, %v2537
    %v2818 = vadd.f32 %v2314, %v2539
    %v2819 = vadd.f32 %v2315, %v2543
    %v2820 = vadd.f32 %v2316, %v2545
    %v2821 = vadd.f32 %v2317, %v2547
    %v2822 = vadd.f32 %v2318, %v2549
    %v2823 = vadd.f32 %v2319, %v2553
    %v2824 = vadd.f32 %v2320, %v2555
    %v2825 = vadd.f32 %v2321, %v2557
    %v2826 = vadd.f32 %v2322, %v2559
    %v2827 = vadd.f32 %v2323, %v2563
    %v2828 = vadd.f32 %v2324, %v2565
    %v2829 = vadd.f32 %v2325, %v2567
    %v2830 = vadd.f32 %v2326, %v2569
    %v2831 = vadd.f32 %v2327, %v2573
    %v2832 = vadd.f32 %v2328, %v2575
    %v2833 = vadd.f32 %v2329, %v2577
    %v2834 = vadd.f32 %v2330, %v2579
    %v2835 = vadd.f32 %v2331, %v2583
    %v2836 = vadd.f32 %v2332, %v2585
    %v2837 = vadd.f32 %v2333, %v2587
    %v2838 = vadd.f32 %v2334, %v2589
    %v2839 = vadd.f32 %v2335, %v2593
    %v2840 = vadd.f32 %v2336, %v2595
    %v2841 = vadd.f32 %v2337, %v2597
    %v2842 = vadd.f32 %v2338, %v2599
    %v2843 = vadd.f32 %v2339, %v2603
    %v2844 = vadd.f32 %v2340, %v2605
    %v2845 = vadd.f32 %v2341, %v2607
    %v2846 = vadd.f32 %v2342, %v2609
    %v2847 = vadd.f32 %v2343, %v2613
    %v2848 = vadd.f32 %v2344, %v2615
    %v2849 = vadd.f32 %v2345, %v2617
    %v2850 = vadd.f32 %v2346, %v2619
    %v2851 = vadd.f32 %v2347, %v2623
    %v2852 = vadd.f32 %v2348, %v2625
    %v2853 = vadd.f32 %v2349, %v2627
    %v2854 = vadd.f32 %v2350, %v2629
    %v2855 = vadd.f32 %v2351, %v2633
    %v2856 = vadd.f32 %v2352, %v2635
    %v2857 = vadd.f32 %v2353, %v2637
    %v2858 = vadd.f32 %v2354, %v2639
    %v2859 = vadd.f32 %v2355, %v2643
    %v2860 = vadd.f32 %v2356, %v2645
    %v2861 = vadd.f32 %v2357, %v2647
    %v2862 = vadd.f32 %v2358, %v2649
    %v2863 = vadd.f32 %v2359, %v2653
    %v2864 = vadd.f32 %v2360, %v2655
    %v2865 = vadd.f32 %v2361, %v2657
    %v2866 = vadd.f32 %v2362, %v2659
    %v2867 = vadd.f32 %v2363, %v2663
    %v2868 = vadd.f32 %v2364, %v2665
    %v2869 = vadd.f32 %v2365, %v2667
    %v2870 = vadd.f32 %v2366, %v2669
    %v2871 = vadd.f32 %v2367, %v2673
    %v2872 = vadd.f32 %v2368, %v2675
    %v2873 = vadd.f32 %v2369, %v2677
    %v2874 = vadd.f32 %v2370, %v2679
    %v2875 = vadd.f32 %v2371, %v2683
    %v2876 = vadd.f32 %v2372, %v2685
    %v2877 = vadd.f32 %v2373, %v2687
    %v2878 = vadd.f32 %v2374, %v2689
    %v2879 = vadd.f32 %v2375, %v2693
    %v2880 = vadd.f32 %v2376, %v2695
    %v2881 = vadd.f32 %v2377, %v2697
    %v2882 = vadd.f32 %v2378, %v2699
    %v2883 = vadd.f32 %v2379, %v2703
    %v2884 = vadd.f32 %v2380, %v2705
    %v2885 = vadd.f32 %v2381, %v2707
    %v2886 = vadd.f32 %v2382, %v2709
    %v2887 = vadd.f32 %v2383, %v2713
    %v2888 = vadd.f32 %v2384, %v2715
    %v2889 = vadd.f32 %v2385, %v2717
    %v2890 = vadd.f32 %v2386, %v2719
    %v2891 = vadd.f32 %v2387, %v2723
    %v2892 = vadd.f32 %v2388, %v2725
    %v2893 = vadd.f32 %v2389, %v2727
    %v2894 = vadd.f32 %v2390, %v2729
    %v2895 = vadd.f32 %v2391, %v2733
    %v2896 = vadd.f32 %v2392, %v2735
    %v2897 = vadd.f32 %v2393, %v2737
    %v2898 = vadd.f32 %v2394, %v2739
    %v2899 = vadd.f32 %v2395, %v2743
    %v2900 = vadd.f32 %v2396, %v2745
    %v2901 = vadd.f32 %v2397, %v2747
    %v2902 = vadd.f32 %v2398, %v2749
    %v2903 = vadd.f32 %v2399, %v2753
    %v2904 = vadd.f32 %v2400, %v2755
    %v2905 = vadd.f32 %v2401, %v2757
    %v2906 = vadd.f32 %v2402, %v2759
    %v2907 = vadd.f32 %v2403, %v2763
    %v2908 = vadd.f32 %v2404, %v2765
    %v2909 = vadd.f32 %v2405, %v2767
    %v2910 = vadd.f32 %v2406, %v2769
    %v2911 = vadd.f32 %v2407, %v2773
    %v2912 = vadd.f32 %v2408, %v2775
    %v2913 = vadd.f32 %v2409, %v2777
    %v2914 = vadd.f32 %v2410, %v2779
    %v2915 = vadd.f32 %v2411, %v2783
    %v2916 = vadd.f32 %v2412, %v2785
    %v2917 = vadd.f32 %v2413, %v2787
    %v2918 = vadd.f32 %v2414, %v2789
    %v2925 = vrot.slane %v178, 1
    %v2926 = vrot.slane %v179, 1
    %v2927 = vsel %vm376, %v2925, %v2926
    %v2928 = vrot.slane %v180, 1
    %v2929 = vsel %vm376, %v2926, %v2928
    %v2930 = vrot.slane %v232, 1
    %v2931 = vrot.slane %v233, 1
    %v2932 = vsel %vm376, %v2930, %v2931
    %v2933 = vrot.slane %v234, 1
    %v2934 = vsel %vm376, %v2931, %v2933
    %v2939 = vpack.c.bf16 %v2929, %v2927
    %v2940 = vpack.c.bf16 %v2934, %v2932
    %v2943 = vunpack.c.l.s4 1983009808
    %v2944 = vunpack.c.0.s8 %v2943
    %v2945 = vlaneseq
    %v2946 = vshrl.u32 %v2945, 7
    %v2947 = vsub.s32 %v2944, %v2946
    %v2948 = vrot.slane %v242, %v2947
    %v2949 = vcombine.high %v2948, %v2948
    %v2951 = vsel %vm642, %v2939, 0
    %v2954 = vsel %vm642, %v2940, 0
    %v2957 = vand.u32 %v2948, %v742
    %v2960 = vand.u32 %v2949, %v742
    %2962 = vmatprep.subr.bf16.mxu0 %v2960
    %2963 = vmatpush1.bf16.msra.mxu0 %v2957
    %2964 = vmatprep.subr.bf16.mxu0 0
    %2965 = vmatpush1.bf16.msra.mxu0 0
    %2966 = vmatprep.subr.bf16.mxu0 0
    %2967 = vmatpush1.bf16.msra.mxu0 0
    %2968 = vmatprep.subr.bf16.mxu0 0
    %2969 = vmatpush1.bf16.msra.mxu0 0
    %2970 = vmatprep.subr.bf16.mxu0 0
    %2971 = vmatpush1.bf16.msra.mxu0 0
    %2972 = vmatprep.subr.bf16.mxu0 0
    %2973 = vmatpush1.bf16.msra.mxu0 0
    %2974 = vmatprep.subr.bf16.mxu0 0
    %2975 = vmatpush1.bf16.msra.mxu0 0
    %2976 = vmatprep.subr.bf16.mxu0 0
    %2977 = vmatpush1.bf16.msra.mxu0 0
    %2978 = vmatprep.subr.bf16.mxu0 0
    %2979 = vmatpush1.bf16.msra.mxu0 0
    %2980 = vmatprep.subr.bf16.mxu0 0
    %2981 = vmatpush1.bf16.msra.mxu0 0
    %2982 = vmatprep.subr.bf16.mxu0 0
    %2983 = vmatpush1.bf16.msra.mxu0 0
    %2984 = vmatprep.subr.bf16.mxu0 0
    %2985 = vmatpush1.bf16.msra.mxu0 0
    %2986 = vmatprep.subr.bf16.mxu0 0
    %2987 = vmatpush1.bf16.msra.mxu0 0
    %2988 = vmatprep.subr.bf16.mxu0 0
    %2989 = vmatpush1.bf16.msra.mxu0 0
    %2990 = vmatprep.subr.bf16.mxu0 0
    %2991 = vmatpush1.bf16.msra.mxu0 0
    %2992 = vmatprep.subr.bf16.mxu0 0
    %2993 = vmatpush1.bf16.msra.mxu0 0
    %2994 = vmatprep.mubr.bf16.mxu0 0
    %2995 = vmatmul.mubr.bf16.gmra.mrb[0].mxu0 %v647
    %v2996 = vpop.f32.mrb[0].mxu0
    %v2997 = vadd.f32 0.0, %v2996
    %v2998 = vpop.f32.mrb[0].mxu0
    %v2999 = vadd.f32 0.0, %v2998
    %v3000 = vpop.f32.mrb[0].mxu0
    %v3001 = vadd.f32 0.0, %v3000
    %v3002 = vpop.f32.mrb[0].mxu0
    %v3003 = vadd.f32 0.0, %v3002
    %3004 = vmatprep.mubr.bf16.mxu0 0
    %3005 = vmatmul.mubr.bf16.gmra.mrb[0].mxu0 %v650
    %v3006 = vpop.f32.mrb[0].mxu0
    %v3007 = vadd.f32 0.0, %v3006
    %v3008 = vpop.f32.mrb[0].mxu0
    %v3009 = vadd.f32 0.0, %v3008
    %v3010 = vpop.f32.mrb[0].mxu0
    %v3011 = vadd.f32 0.0, %v3010
    %v3012 = vpop.f32.mrb[0].mxu0
    %v3013 = vadd.f32 0.0, %v3012
    %3014 = vmatprep.mubr.bf16.mxu0 0
    %3015 = vmatmul.mubr.bf16.gmra.mrb[0].mxu0 %v653
    %v3016 = vpop.f32.mrb[0].mxu0
    %v3017 = vadd.f32 0.0, %v3016
    %v3018 = vpop.f32.mrb[0].mxu0
    %v3019 = vadd.f32 0.0, %v3018
    %v3020 = vpop.f32.mrb[0].mxu0
    %v3021 = vadd.f32 0.0, %v3020
    %v3022 = vpop.f32.mrb[0].mxu0
    %v3023 = vadd.f32 0.0, %v3022
    %3024 = vmatprep.mubr.bf16.mxu0 0
    %3025 = vmatmul.mubr.bf16.gmra.mrb[0].mxu0 %v656
    %v3026 = vpop.f32.mrb[0].mxu0
    %v3027 = vadd.f32 0.0, %v3026
    %v3028 = vpop.f32.mrb[0].mxu0
    %v3029 = vadd.f32 0.0, %v3028
    %v3030 = vpop.f32.mrb[0].mxu0
    %v3031 = vadd.f32 0.0, %v3030
    %v3032 = vpop.f32.mrb[0].mxu0
    %v3033 = vadd.f32 0.0, %v3032
    %3034 = vmatprep.mubr.bf16.mxu0 0
    %3035 = vmatmul.mubr.bf16.gmra.mrb[0].mxu0 %v659
    %v3036 = vpop.f32.mrb[0].mxu0
    %v3037 = vadd.f32 0.0, %v3036
    %v3038 = vpop.f32.mrb[0].mxu0
    %v3039 = vadd.f32 0.0, %v3038
    %v3040 = vpop.f32.mrb[0].mxu0
    %v3041 = vadd.f32 0.0, %v3040
    %v3042 = vpop.f32.mrb[0].mxu0
    %v3043 = vadd.f32 0.0, %v3042
    %3044 = vmatprep.mubr.bf16.mxu0 0
    %3045 = vmatmul.mubr.bf16.gmra.mrb[0].mxu0 %v662
    %v3046 = vpop.f32.mrb[0].mxu0
    %v3047 = vadd.f32 0.0, %v3046
    %v3048 = vpop.f32.mrb[0].mxu0
    %v3049 = vadd.f32 0.0, %v3048
    %v3050 = vpop.f32.mrb[0].mxu0
    %v3051 = vadd.f32 0.0, %v3050
    %v3052 = vpop.f32.mrb[0].mxu0
    %v3053 = vadd.f32 0.0, %v3052
    %3054 = vmatprep.mubr.bf16.mxu0 0
    %3055 = vmatmul.mubr.bf16.gmra.mrb[0].mxu0 %v665
    %v3056 = vpop.f32.mrb[0].mxu0
    %v3057 = vadd.f32 0.0, %v3056
    %v3058 = vpop.f32.mrb[0].mxu0
    %v3059 = vadd.f32 0.0, %v3058
    %v3060 = vpop.f32.mrb[0].mxu0
    %v3061 = vadd.f32 0.0, %v3060
    %v3062 = vpop.f32.mrb[0].mxu0
    %v3063 = vadd.f32 0.0, %v3062
    %3064 = vmatprep.mubr.bf16.mxu0 0
    %3065 = vmatmul.mubr.bf16.gmra.mrb[0].mxu0 %v668
    %v3066 = vpop.f32.mrb[0].mxu0
    %v3067 = vadd.f32 0.0, %v3066
    %v3068 = vpop.f32.mrb[0].mxu0
    %v3069 = vadd.f32 0.0, %v3068
    %v3070 = vpop.f32.mrb[0].mxu0
    %v3071 = vadd.f32 0.0, %v3070
    %v3072 = vpop.f32.mrb[0].mxu0
    %v3073 = vadd.f32 0.0, %v3072
    %3074 = vmatprep.mubr.bf16.mxu0 0
    %3075 = vmatmul.mubr.bf16.gmra.mrb[0].mxu0 %v671
    %v3076 = vpop.f32.mrb[0].mxu0
    %v3077 = vadd.f32 0.0, %v3076
    %v3078 = vpop.f32.mrb[0].mxu0
    %v3079 = vadd.f32 0.0, %v3078
    %v3080 = vpop.f32.mrb[0].mxu0
    %v3081 = vadd.f32 0.0, %v3080
    %v3082 = vpop.f32.mrb[0].mxu0
    %v3083 = vadd.f32 0.0, %v3082
    %3084 = vmatprep.mubr.bf16.mxu0 0
    %3085 = vmatmul.mubr.bf16.gmra.mrb[0].mxu0 %v674
    %v3086 = vpop.f32.mrb[0].mxu0
    %v3087 = vadd.f32 0.0, %v3086
    %v3088 = vpop.f32.mrb[0].mxu0
    %v3089 = vadd.f32 0.0, %v3088
    %v3090 = vpop.f32.mrb[0].mxu0
    %v3091 = vadd.f32 0.0, %v3090
    %v3092 = vpop.f32.mrb[0].mxu0
    %v3093 = vadd.f32 0.0, %v3092
    %3094 = vmatprep.mubr.bf16.mxu0 0
    %3095 = vmatmul.mubr.bf16.gmra.mrb[0].mxu0 %v677
    %v3096 = vpop.f32.mrb[0].mxu0
    %v3097 = vadd.f32 0.0, %v3096
    %v3098 = vpop.f32.mrb[0].mxu0
    %v3099 = vadd.f32 0.0, %v3098
    %v3100 = vpop.f32.mrb[0].mxu0
    %v3101 = vadd.f32 0.0, %v3100
    %v3102 = vpop.f32.mrb[0].mxu0
    %v3103 = vadd.f32 0.0, %v3102
    %3104 = vmatprep.mubr.bf16.mxu0 0
    %3105 = vmatmul.mubr.bf16.gmra.mrb[0].mxu0 %v680
    %v3106 = vpop.f32.mrb[0].mxu0
    %v3107 = vadd.f32 0.0, %v3106
    %v3108 = vpop.f32.mrb[0].mxu0
    %v3109 = vadd.f32 0.0, %v3108
    %v3110 = vpop.f32.mrb[0].mxu0
    %v3111 = vadd.f32 0.0, %v3110
    %v3112 = vpop.f32.mrb[0].mxu0
    %v3113 = vadd.f32 0.0, %v3112
    %3114 = vmatprep.mubr.bf16.mxu0 0
    %3115 = vmatmul.mubr.bf16.gmra.mrb[0].mxu0 %v683
    %v3116 = vpop.f32.mrb[0].mxu0
    %v3117 = vadd.f32 0.0, %v3116
    %v3118 = vpop.f32.mrb[0].mxu0
    %v3119 = vadd.f32 0.0, %v3118
    %v3120 = vpop.f32.mrb[0].mxu0
    %v3121 = vadd.f32 0.0, %v3120
    %v3122 = vpop.f32.mrb[0].mxu0
    %v3123 = vadd.f32 0.0, %v3122
    %3124 = vmatprep.mubr.bf16.mxu0 0
    %3125 = vmatmul.mubr.bf16.gmra.mrb[0].mxu0 %v686
    %v3126 = vpop.f32.mrb[0].mxu0
    %v3127 = vadd.f32 0.0, %v3126
    %v3128 = vpop.f32.mrb[0].mxu0
    %v3129 = vadd.f32 0.0, %v3128
    %v3130 = vpop.f32.mrb[0].mxu0
    %v3131 = vadd.f32 0.0, %v3130
    %v3132 = vpop.f32.mrb[0].mxu0
    %v3133 = vadd.f32 0.0, %v3132
    %3134 = vmatprep.mubr.bf16.mxu0 0
    %3135 = vmatmul.mubr.bf16.gmra.mrb[0].mxu0 %v689
    %v3136 = vpop.f32.mrb[0].mxu0
    %v3137 = vadd.f32 0.0, %v3136
    %v3138 = vpop.f32.mrb[0].mxu0
    %v3139 = vadd.f32 0.0, %v3138
    %v3140 = vpop.f32.mrb[0].mxu0
    %v3141 = vadd.f32 0.0, %v3140
    %v3142 = vpop.f32.mrb[0].mxu0
    %v3143 = vadd.f32 0.0, %v3142
    %3144 = vmatprep.mubr.bf16.mxu0 0
    %3145 = vmatmul.mubr.bf16.gmra.mrb[0].mxu0 %v2951
    %v3146 = vpop.f32.mrb[0].mxu0
    %v3147 = vadd.f32 0.0, %v3146
    %v3148 = vpop.f32.mrb[0].mxu0
    %v3149 = vadd.f32 0.0, %v3148
    %v3150 = vpop.f32.mrb[0].mxu0
    %v3151 = vadd.f32 0.0, %v3150
    %v3152 = vpop.f32.mrb[0].mxu0
    %v3153 = vadd.f32 0.0, %v3152
    %3154 = vmatprep.mubr.bf16.mxu0 0
    %3155 = vmatmul.mubr.bf16.gmra.mrb[0].mxu0 %v695
    %v3156 = vpop.f32.mrb[0].mxu0
    %v3157 = vadd.f32 0.0, %v3156
    %v3158 = vpop.f32.mrb[0].mxu0
    %v3159 = vadd.f32 0.0, %v3158
    %v3160 = vpop.f32.mrb[0].mxu0
    %v3161 = vadd.f32 0.0, %v3160
    %v3162 = vpop.f32.mrb[0].mxu0
    %v3163 = vadd.f32 0.0, %v3162
    %3164 = vmatprep.mubr.bf16.mxu0 0
    %3165 = vmatmul.mubr.bf16.gmra.mrb[0].mxu0 %v698
    %v3166 = vpop.f32.mrb[0].mxu0
    %v3167 = vadd.f32 0.0, %v3166
    %v3168 = vpop.f32.mrb[0].mxu0
    %v3169 = vadd.f32 0.0, %v3168
    %v3170 = vpop.f32.mrb[0].mxu0
    %v3171 = vadd.f32 0.0, %v3170
    %v3172 = vpop.f32.mrb[0].mxu0
    %v3173 = vadd.f32 0.0, %v3172
    %3174 = vmatprep.mubr.bf16.mxu0 0
    %3175 = vmatmul.mubr.bf16.gmra.mrb[0].mxu0 %v701
    %v3176 = vpop.f32.mrb[0].mxu0
    %v3177 = vadd.f32 0.0, %v3176
    %v3178 = vpop.f32.mrb[0].mxu0
    %v3179 = vadd.f32 0.0, %v3178
    %v3180 = vpop.f32.mrb[0].mxu0
    %v3181 = vadd.f32 0.0, %v3180
    %v3182 = vpop.f32.mrb[0].mxu0
    %v3183 = vadd.f32 0.0, %v3182
    %3184 = vmatprep.mubr.bf16.mxu0 0
    %3185 = vmatmul.mubr.bf16.gmra.mrb[0].mxu0 %v704
    %v3186 = vpop.f32.mrb[0].mxu0
    %v3187 = vadd.f32 0.0, %v3186
    %v3188 = vpop.f32.mrb[0].mxu0
    %v3189 = vadd.f32 0.0, %v3188
    %v3190 = vpop.f32.mrb[0].mxu0
    %v3191 = vadd.f32 0.0, %v3190
    %v3192 = vpop.f32.mrb[0].mxu0
    %v3193 = vadd.f32 0.0, %v3192
    %3194 = vmatprep.mubr.bf16.mxu0 0
    %3195 = vmatmul.mubr.bf16.gmra.mrb[0].mxu0 %v707
    %v3196 = vpop.f32.mrb[0].mxu0
    %v3197 = vadd.f32 0.0, %v3196
    %v3198 = vpop.f32.mrb[0].mxu0
    %v3199 = vadd.f32 0.0, %v3198
    %v3200 = vpop.f32.mrb[0].mxu0
    %v3201 = vadd.f32 0.0, %v3200
    %v3202 = vpop.f32.mrb[0].mxu0
    %v3203 = vadd.f32 0.0, %v3202
    %3204 = vmatprep.mubr.bf16.mxu0 0
    %3205 = vmatmul.mubr.bf16.gmra.mrb[0].mxu0 %v710
    %v3206 = vpop.f32.mrb[0].mxu0
    %v3207 = vadd.f32 0.0, %v3206
    %v3208 = vpop.f32.mrb[0].mxu0
    %v3209 = vadd.f32 0.0, %v3208
    %v3210 = vpop.f32.mrb[0].mxu0
    %v3211 = vadd.f32 0.0, %v3210
    %v3212 = vpop.f32.mrb[0].mxu0
    %v3213 = vadd.f32 0.0, %v3212
    %3214 = vmatprep.mubr.bf16.mxu0 0
    %3215 = vmatmul.mubr.bf16.gmra.mrb[0].mxu0 %v713
    %v3216 = vpop.f32.mrb[0].mxu0
    %v3217 = vadd.f32 0.0, %v3216
    %v3218 = vpop.f32.mrb[0].mxu0
    %v3219 = vadd.f32 0.0, %v3218
    %v3220 = vpop.f32.mrb[0].mxu0
    %v3221 = vadd.f32 0.0, %v3220
    %v3222 = vpop.f32.mrb[0].mxu0
    %v3223 = vadd.f32 0.0, %v3222
    %3224 = vmatprep.mubr.bf16.mxu0 0
    %3225 = vmatmul.mubr.bf16.gmra.mrb[0].mxu0 %v716
    %v3226 = vpop.f32.mrb[0].mxu0
    %v3227 = vadd.f32 0.0, %v3226
    %v3228 = vpop.f32.mrb[0].mxu0
    %v3229 = vadd.f32 0.0, %v3228
    %v3230 = vpop.f32.mrb[0].mxu0
    %v3231 = vadd.f32 0.0, %v3230
    %v3232 = vpop.f32.mrb[0].mxu0
    %v3233 = vadd.f32 0.0, %v3232
    %3234 = vmatprep.mubr.bf16.mxu0 0
    %3235 = vmatmul.mubr.bf16.gmra.mrb[0].mxu0 %v719
    %v3236 = vpop.f32.mrb[0].mxu0
    %v3237 = vadd.f32 0.0, %v3236
    %v3238 = vpop.f32.mrb[0].mxu0
    %v3239 = vadd.f32 0.0, %v3238
    %v3240 = vpop.f32.mrb[0].mxu0
    %v3241 = vadd.f32 0.0, %v3240
    %v3242 = vpop.f32.mrb[0].mxu0
    %v3243 = vadd.f32 0.0, %v3242
    %3244 = vmatprep.mubr.bf16.mxu0 0
    %3245 = vmatmul.mubr.bf16.gmra.mrb[0].mxu0 %v722
    %v3246 = vpop.f32.mrb[0].mxu0
    %v3247 = vadd.f32 0.0, %v3246
    %v3248 = vpop.f32.mrb[0].mxu0
    %v3249 = vadd.f32 0.0, %v3248
    %v3250 = vpop.f32.mrb[0].mxu0
    %v3251 = vadd.f32 0.0, %v3250
    %v3252 = vpop.f32.mrb[0].mxu0
    %v3253 = vadd.f32 0.0, %v3252
    %3254 = vmatprep.mubr.bf16.mxu0 0
    %3255 = vmatmul.mubr.bf16.gmra.mrb[0].mxu0 %v725
    %v3256 = vpop.f32.mrb[0].mxu0
    %v3257 = vadd.f32 0.0, %v3256
    %v3258 = vpop.f32.mrb[0].mxu0
    %v3259 = vadd.f32 0.0, %v3258
    %v3260 = vpop.f32.mrb[0].mxu0
    %v3261 = vadd.f32 0.0, %v3260
    %v3262 = vpop.f32.mrb[0].mxu0
    %v3263 = vadd.f32 0.0, %v3262
    %3264 = vmatprep.mubr.bf16.mxu0 0
    %3265 = vmatmul.mubr.bf16.gmra.mrb[0].mxu0 %v728
    %v3266 = vpop.f32.mrb[0].mxu0
    %v3267 = vadd.f32 0.0, %v3266
    %v3268 = vpop.f32.mrb[0].mxu0
    %v3269 = vadd.f32 0.0, %v3268
    %v3270 = vpop.f32.mrb[0].mxu0
    %v3271 = vadd.f32 0.0, %v3270
    %v3272 = vpop.f32.mrb[0].mxu0
    %v3273 = vadd.f32 0.0, %v3272
    %3274 = vmatprep.mubr.bf16.mxu0 0
    %3275 = vmatmul.mubr.bf16.gmra.mrb[0].mxu0 %v731
    %v3276 = vpop.f32.mrb[0].mxu0
    %v3277 = vadd.f32 0.0, %v3276
    %v3278 = vpop.f32.mrb[0].mxu0
    %v3279 = vadd.f32 0.0, %v3278
    %v3280 = vpop.f32.mrb[0].mxu0
    %v3281 = vadd.f32 0.0, %v3280
    %v3282 = vpop.f32.mrb[0].mxu0
    %v3283 = vadd.f32 0.0, %v3282
    %3284 = vmatprep.mubr.bf16.mxu0 0
    %3285 = vmatmul.mubr.bf16.gmra.mrb[0].mxu0 %v734
    %v3286 = vpop.f32.mrb[0].mxu0
    %v3287 = vadd.f32 0.0, %v3286
    %v3288 = vpop.f32.mrb[0].mxu0
    %v3289 = vadd.f32 0.0, %v3288
    %v3290 = vpop.f32.mrb[0].mxu0
    %v3291 = vadd.f32 0.0, %v3290
    %v3292 = vpop.f32.mrb[0].mxu0
    %v3293 = vadd.f32 0.0, %v3292
    %3294 = vmatprep.mubr.bf16.mxu0 0
    %3295 = vmatmul.mubr.bf16.gmra.mrb[0].mxu0 %v737
    %v3296 = vpop.f32.mrb[0].mxu0
    %v3297 = vadd.f32 0.0, %v3296
    %v3298 = vpop.f32.mrb[0].mxu0
    %v3299 = vadd.f32 0.0, %v3298
    %v3300 = vpop.f32.mrb[0].mxu0
    %v3301 = vadd.f32 0.0, %v3300
    %v3302 = vpop.f32.mrb[0].mxu0
    %v3303 = vadd.f32 0.0, %v3302
    %3304 = vmatprep.mubr.bf16.mxu0 0
    %3305 = vmatmul.mubr.bf16.gmra.mrb[0].mxu0 %v2954
    %v3306 = vpop.f32.mrb[0].mxu0
    %v3307 = vadd.f32 0.0, %v3306
    %v3308 = vpop.f32.mrb[0].mxu0
    %v3309 = vadd.f32 0.0, %v3308
    %v3310 = vpop.f32.mrb[0].mxu0
    %v3311 = vadd.f32 0.0, %v3310
    %v3312 = vpop.f32.mrb[0].mxu0
    %v3313 = vadd.f32 0.0, %v3312
    %3314 = vdwg.mxu0
    %v3315 = vadd.f32 %v2791, %v2997
    %v3316 = vadd.f32 %v2792, %v2999
    %v3317 = vadd.f32 %v2793, %v3001
    %v3318 = vadd.f32 %v2794, %v3003
    %v3319 = vadd.f32 %v2795, %v3007
    %v3320 = vadd.f32 %v2796, %v3009
    %v3321 = vadd.f32 %v2797, %v3011
    %v3322 = vadd.f32 %v2798, %v3013
    %v3323 = vadd.f32 %v2799, %v3017
    %v3324 = vadd.f32 %v2800, %v3019
    %v3325 = vadd.f32 %v2801, %v3021
    %v3326 = vadd.f32 %v2802, %v3023
    %v3327 = vadd.f32 %v2803, %v3027
    %v3328 = vadd.f32 %v2804, %v3029
    %v3329 = vadd.f32 %v2805, %v3031
    %v3330 = vadd.f32 %v2806, %v3033
    %v3331 = vadd.f32 %v2807, %v3037
    %v3332 = vadd.f32 %v2808, %v3039
    %v3333 = vadd.f32 %v2809, %v3041
    %v3334 = vadd.f32 %v2810, %v3043
    %v3335 = vadd.f32 %v2811, %v3047
    %v3336 = vadd.f32 %v2812, %v3049
    %v3337 = vadd.f32 %v2813, %v3051
    %v3338 = vadd.f32 %v2814, %v3053
    %v3339 = vadd.f32 %v2815, %v3057
    %v3340 = vadd.f32 %v2816, %v3059
    %v3341 = vadd.f32 %v2817, %v3061
    %v3342 = vadd.f32 %v2818, %v3063
    %v3343 = vadd.f32 %v2819, %v3067
    %v3344 = vadd.f32 %v2820, %v3069
    %v3345 = vadd.f32 %v2821, %v3071
    %v3346 = vadd.f32 %v2822, %v3073
    %v3347 = vadd.f32 %v2823, %v3077
    %v3348 = vadd.f32 %v2824, %v3079
    %v3349 = vadd.f32 %v2825, %v3081
    %v3350 = vadd.f32 %v2826, %v3083
    %v3351 = vadd.f32 %v2827, %v3087
    %v3352 = vadd.f32 %v2828, %v3089
    %v3353 = vadd.f32 %v2829, %v3091
    %v3354 = vadd.f32 %v2830, %v3093
    %v3355 = vadd.f32 %v2831, %v3097
    %v3356 = vadd.f32 %v2832, %v3099
    %v3357 = vadd.f32 %v2833, %v3101
    %v3358 = vadd.f32 %v2834, %v3103
    %v3359 = vadd.f32 %v2835, %v3107
    %v3360 = vadd.f32 %v2836, %v3109
    %v3361 = vadd.f32 %v2837, %v3111
    %v3362 = vadd.f32 %v2838, %v3113
    %v3363 = vadd.f32 %v2839, %v3117
    %v3364 = vadd.f32 %v2840, %v3119
    %v3365 = vadd.f32 %v2841, %v3121
    %v3366 = vadd.f32 %v2842, %v3123
    %v3367 = vadd.f32 %v2843, %v3127
    %v3368 = vadd.f32 %v2844, %v3129
    %v3369 = vadd.f32 %v2845, %v3131
    %v3370 = vadd.f32 %v2846, %v3133
    %v3371 = vadd.f32 %v2847, %v3137
    %v3372 = vadd.f32 %v2848, %v3139
    %v3373 = vadd.f32 %v2849, %v3141
    %v3374 = vadd.f32 %v2850, %v3143
    %v3375 = vadd.f32 %v2851, %v3147
    %v3376 = vadd.f32 %v2852, %v3149
    %v3377 = vadd.f32 %v2853, %v3151
    %v3378 = vadd.f32 %v2854, %v3153
    %v3379 = vadd.f32 %v2855, %v3157
    %v3380 = vadd.f32 %v2856, %v3159
    %v3381 = vadd.f32 %v2857, %v3161
    %v3382 = vadd.f32 %v2858, %v3163
    %v3383 = vadd.f32 %v2859, %v3167
    %v3384 = vadd.f32 %v2860, %v3169
    %v3385 = vadd.f32 %v2861, %v3171
    %v3386 = vadd.f32 %v2862, %v3173
    %v3387 = vadd.f32 %v2863, %v3177
    %v3388 = vadd.f32 %v2864, %v3179
    %v3389 = vadd.f32 %v2865, %v3181
    %v3390 = vadd.f32 %v2866, %v3183
    %v3391 = vadd.f32 %v2867, %v3187
    %v3392 = vadd.f32 %v2868, %v3189
    %v3393 = vadd.f32 %v2869, %v3191
    %v3394 = vadd.f32 %v2870, %v3193
    %v3395 = vadd.f32 %v2871, %v3197
    %v3396 = vadd.f32 %v2872, %v3199
    %v3397 = vadd.f32 %v2873, %v3201
    %v3398 = vadd.f32 %v2874, %v3203
    %v3399 = vadd.f32 %v2875, %v3207
    %v3400 = vadd.f32 %v2876, %v3209
    %v3401 = vadd.f32 %v2877, %v3211
    %v3402 = vadd.f32 %v2878, %v3213
    %v3403 = vadd.f32 %v2879, %v3217
    %v3404 = vadd.f32 %v2880, %v3219
    %v3405 = vadd.f32 %v2881, %v3221
    %v3406 = vadd.f32 %v2882, %v3223
    %v3407 = vadd.f32 %v2883, %v3227
    %v3408 = vadd.f32 %v2884, %v3229
    %v3409 = vadd.f32 %v2885, %v3231
    %v3410 = vadd.f32 %v2886, %v3233
    %v3411 = vadd.f32 %v2887, %v3237
    %v3412 = vadd.f32 %v2888, %v3239
    %v3413 = vadd.f32 %v2889, %v3241
    %v3414 = vadd.f32 %v2890, %v3243
    %v3415 = vadd.f32 %v2891, %v3247
    %v3416 = vadd.f32 %v2892, %v3249
    %v3417 = vadd.f32 %v2893, %v3251
    %v3418 = vadd.f32 %v2894, %v3253
    %v3419 = vadd.f32 %v2895, %v3257
    %v3420 = vadd.f32 %v2896, %v3259
    %v3421 = vadd.f32 %v2897, %v3261
    %v3422 = vadd.f32 %v2898, %v3263
    %v3423 = vadd.f32 %v2899, %v3267
    %v3424 = vadd.f32 %v2900, %v3269
    %v3425 = vadd.f32 %v2901, %v3271
    %v3426 = vadd.f32 %v2902, %v3273
    %v3427 = vadd.f32 %v2903, %v3277
    %v3428 = vadd.f32 %v2904, %v3279
    %v3429 = vadd.f32 %v2905, %v3281
    %v3430 = vadd.f32 %v2906, %v3283
    %v3431 = vadd.f32 %v2907, %v3287
    %v3432 = vadd.f32 %v2908, %v3289
    %v3433 = vadd.f32 %v2909, %v3291
    %v3434 = vadd.f32 %v2910, %v3293
    %v3435 = vadd.f32 %v2911, %v3297
    %v3436 = vadd.f32 %v2912, %v3299
    %v3437 = vadd.f32 %v2913, %v3301
    %v3438 = vadd.f32 %v2914, %v3303
    %v3439 = vadd.f32 %v2915, %v3307
    %v3440 = vadd.f32 %v2916, %v3309
    %v3441 = vadd.f32 %v2917, %v3311
    %v3442 = vadd.f32 %v2918, %v3313
    %v3443 = vrot.slane %v178, 2
    %v3444 = vrot.slane %v179, 2
    %v3445 = vsel %vm1566, %v3443, %v3444
    %v3446 = vrot.slane %v180, 2
    %v3447 = vsel %vm1566, %v3444, %v3446
    %v3448 = vrot.slane %v232, 2
    %v3449 = vrot.slane %v233, 2
    %v3450 = vsel %vm1566, %v3448, %v3449
    %v3451 = vrot.slane %v234, 2
    %v3452 = vsel %vm1566, %v3449, %v3451
    %v3457 = vpack.c.bf16 %v3447, %v3445
    %v3458 = vpack.c.bf16 %v3452, %v3450
    %v3461 = vunpack.c.l.s4 1983009808
    %v3462 = vunpack.c.0.s8 %v3461
    %v3463 = vlaneseq
    %v3464 = vshrl.u32 %v3463, 7
    %v3465 = vsub.s32 %v3462, %v3464
    %v3466 = vrot.slane %v243, %v3465
    %v3467 = vcombine.high %v3466, %v3466
    %v3469 = vsel %vm642, %v3457, 0
    %v3472 = vsel %vm642, %v3458, 0
    %v3475 = vand.u32 %v3466, %v742
    %v3478 = vand.u32 %v3467, %v742
    %3480 = vmatprep.subr.bf16.mxu0 %v3478
    %3481 = vmatpush1.bf16.msra.mxu0 %v3475
    %3482 = vmatprep.subr.bf16.mxu0 0
    %3483 = vmatpush1.bf16.msra.mxu0 0
    %3484 = vmatprep.subr.bf16.mxu0 0
    %3485 = vmatpush1.bf16.msra.mxu0 0
    %3486 = vmatprep.subr.bf16.mxu0 0
    %3487 = vmatpush1.bf16.msra.mxu0 0
    %3488 = vmatprep.subr.bf16.mxu0 0
    %3489 = vmatpush1.bf16.msra.mxu0 0
    %3490 = vmatprep.subr.bf16.mxu0 0
    %3491 = vmatpush1.bf16.msra.mxu0 0
    %3492 = vmatprep.subr.bf16.mxu0 0
    %3493 = vmatpush1.bf16.msra.mxu0 0
    %3494 = vmatprep.subr.bf16.mxu0 0
    %3495 = vmatpush1.bf16.msra.mxu0 0
    %3496 = vmatprep.subr.bf16.mxu0 0
    %3497 = vmatpush1.bf16.msra.mxu0 0
    %3498 = vmatprep.subr.bf16.mxu0 0
    %3499 = vmatpush1.bf16.msra.mxu0 0
    %3500 = vmatprep.subr.bf16.mxu0 0
    %3501 = vmatpush1.bf16.msra.mxu0 0
    %3502 = vmatprep.subr.bf16.mxu0 0
    %3503 = vmatpush1.bf16.msra.mxu0 0
    %3504 = vmatprep.subr.bf16.mxu0 0
    %3505 = vmatpush1.bf16.msra.mxu0 0
    %3506 = vmatprep.subr.bf16.mxu0 0
    %3507 = vmatpush1.bf16.msra.mxu0 0
    %3508 = vmatprep.subr.bf16.mxu0 0
    %3509 = vmatpush1.bf16.msra.mxu0 0
    %3510 = vmatprep.subr.bf16.mxu0 0
    %3511 = vmatpush1.bf16.msra.mxu0 0
    %3512 = vmatprep.mubr.bf16.mxu0 0
    %3513 = vmatmul.mubr.bf16.gmra.mrb[0].mxu0 %v1836
    %v3514 = vpop.f32.mrb[0].mxu0
    %v3515 = vadd.f32 0.0, %v3514
    %v3516 = vpop.f32.mrb[0].mxu0
    %v3517 = vadd.f32 0.0, %v3516
    %v3518 = vpop.f32.mrb[0].mxu0
    %v3519 = vadd.f32 0.0, %v3518
    %v3520 = vpop.f32.mrb[0].mxu0
    %v3521 = vadd.f32 0.0, %v3520
    %3522 = vmatprep.mubr.bf16.mxu0 0
    %3523 = vmatmul.mubr.bf16.gmra.mrb[0].mxu0 %v1839
    %v3524 = vpop.f32.mrb[0].mxu0
    %v3525 = vadd.f32 0.0, %v3524
    %v3526 = vpop.f32.mrb[0].mxu0
    %v3527 = vadd.f32 0.0, %v3526
    %v3528 = vpop.f32.mrb[0].mxu0
    %v3529 = vadd.f32 0.0, %v3528
    %v3530 = vpop.f32.mrb[0].mxu0
    %v3531 = vadd.f32 0.0, %v3530
    %3532 = vmatprep.mubr.bf16.mxu0 0
    %3533 = vmatmul.mubr.bf16.gmra.mrb[0].mxu0 %v1842
    %v3534 = vpop.f32.mrb[0].mxu0
    %v3535 = vadd.f32 0.0, %v3534
    %v3536 = vpop.f32.mrb[0].mxu0
    %v3537 = vadd.f32 0.0, %v3536
    %v3538 = vpop.f32.mrb[0].mxu0
    %v3539 = vadd.f32 0.0, %v3538
    %v3540 = vpop.f32.mrb[0].mxu0
    %v3541 = vadd.f32 0.0, %v3540
    %3542 = vmatprep.mubr.bf16.mxu0 0
    %3543 = vmatmul.mubr.bf16.gmra.mrb[0].mxu0 %v1845
    %v3544 = vpop.f32.mrb[0].mxu0
    %v3545 = vadd.f32 0.0, %v3544
    %v3546 = vpop.f32.mrb[0].mxu0
    %v3547 = vadd.f32 0.0, %v3546
    %v3548 = vpop.f32.mrb[0].mxu0
    %v3549 = vadd.f32 0.0, %v3548
    %v3550 = vpop.f32.mrb[0].mxu0
    %v3551 = vadd.f32 0.0, %v3550
    %3552 = vmatprep.mubr.bf16.mxu0 0
    %3553 = vmatmul.mubr.bf16.gmra.mrb[0].mxu0 %v1848
    %v3554 = vpop.f32.mrb[0].mxu0
    %v3555 = vadd.f32 0.0, %v3554
    %v3556 = vpop.f32.mrb[0].mxu0
    %v3557 = vadd.f32 0.0, %v3556
    %v3558 = vpop.f32.mrb[0].mxu0
    %v3559 = vadd.f32 0.0, %v3558
    %v3560 = vpop.f32.mrb[0].mxu0
    %v3561 = vadd.f32 0.0, %v3560
    %3562 = vmatprep.mubr.bf16.mxu0 0
    %3563 = vmatmul.mubr.bf16.gmra.mrb[0].mxu0 %v1851
    %v3564 = vpop.f32.mrb[0].mxu0
    %v3565 = vadd.f32 0.0, %v3564
    %v3566 = vpop.f32.mrb[0].mxu0
    %v3567 = vadd.f32 0.0, %v3566
    %v3568 = vpop.f32.mrb[0].mxu0
    %v3569 = vadd.f32 0.0, %v3568
    %v3570 = vpop.f32.mrb[0].mxu0
    %v3571 = vadd.f32 0.0, %v3570
    %3572 = vmatprep.mubr.bf16.mxu0 0
    %3573 = vmatmul.mubr.bf16.gmra.mrb[0].mxu0 %v1854
    %v3574 = vpop.f32.mrb[0].mxu0
    %v3575 = vadd.f32 0.0, %v3574
    %v3576 = vpop.f32.mrb[0].mxu0
    %v3577 = vadd.f32 0.0, %v3576
    %v3578 = vpop.f32.mrb[0].mxu0
    %v3579 = vadd.f32 0.0, %v3578
    %v3580 = vpop.f32.mrb[0].mxu0
    %v3581 = vadd.f32 0.0, %v3580
    %3582 = vmatprep.mubr.bf16.mxu0 0
    %3583 = vmatmul.mubr.bf16.gmra.mrb[0].mxu0 %v1857
    %v3584 = vpop.f32.mrb[0].mxu0
    %v3585 = vadd.f32 0.0, %v3584
    %v3586 = vpop.f32.mrb[0].mxu0
    %v3587 = vadd.f32 0.0, %v3586
    %v3588 = vpop.f32.mrb[0].mxu0
    %v3589 = vadd.f32 0.0, %v3588
    %v3590 = vpop.f32.mrb[0].mxu0
    %v3591 = vadd.f32 0.0, %v3590
    %3592 = vmatprep.mubr.bf16.mxu0 0
    %3593 = vmatmul.mubr.bf16.gmra.mrb[0].mxu0 %v1860
    %v3594 = vpop.f32.mrb[0].mxu0
    %v3595 = vadd.f32 0.0, %v3594
    %v3596 = vpop.f32.mrb[0].mxu0
    %v3597 = vadd.f32 0.0, %v3596
    %v3598 = vpop.f32.mrb[0].mxu0
    %v3599 = vadd.f32 0.0, %v3598
    %v3600 = vpop.f32.mrb[0].mxu0
    %v3601 = vadd.f32 0.0, %v3600
    %3602 = vmatprep.mubr.bf16.mxu0 0
    %3603 = vmatmul.mubr.bf16.gmra.mrb[0].mxu0 %v1863
    %v3604 = vpop.f32.mrb[0].mxu0
    %v3605 = vadd.f32 0.0, %v3604
    %v3606 = vpop.f32.mrb[0].mxu0
    %v3607 = vadd.f32 0.0, %v3606
    %v3608 = vpop.f32.mrb[0].mxu0
    %v3609 = vadd.f32 0.0, %v3608
    %v3610 = vpop.f32.mrb[0].mxu0
    %v3611 = vadd.f32 0.0, %v3610
    %3612 = vmatprep.mubr.bf16.mxu0 0
    %3613 = vmatmul.mubr.bf16.gmra.mrb[0].mxu0 %v1866
    %v3614 = vpop.f32.mrb[0].mxu0
    %v3615 = vadd.f32 0.0, %v3614
    %v3616 = vpop.f32.mrb[0].mxu0
    %v3617 = vadd.f32 0.0, %v3616
    %v3618 = vpop.f32.mrb[0].mxu0
    %v3619 = vadd.f32 0.0, %v3618
    %v3620 = vpop.f32.mrb[0].mxu0
    %v3621 = vadd.f32 0.0, %v3620
    %3622 = vmatprep.mubr.bf16.mxu0 0
    %3623 = vmatmul.mubr.bf16.gmra.mrb[0].mxu0 %v1869
    %v3624 = vpop.f32.mrb[0].mxu0
    %v3625 = vadd.f32 0.0, %v3624
    %v3626 = vpop.f32.mrb[0].mxu0
    %v3627 = vadd.f32 0.0, %v3626
    %v3628 = vpop.f32.mrb[0].mxu0
    %v3629 = vadd.f32 0.0, %v3628
    %v3630 = vpop.f32.mrb[0].mxu0
    %v3631 = vadd.f32 0.0, %v3630
    %3632 = vmatprep.mubr.bf16.mxu0 0
    %3633 = vmatmul.mubr.bf16.gmra.mrb[0].mxu0 %v1872
    %v3634 = vpop.f32.mrb[0].mxu0
    %v3635 = vadd.f32 0.0, %v3634
    %v3636 = vpop.f32.mrb[0].mxu0
    %v3637 = vadd.f32 0.0, %v3636
    %v3638 = vpop.f32.mrb[0].mxu0
    %v3639 = vadd.f32 0.0, %v3638
    %v3640 = vpop.f32.mrb[0].mxu0
    %v3641 = vadd.f32 0.0, %v3640
    %3642 = vmatprep.mubr.bf16.mxu0 0
    %3643 = vmatmul.mubr.bf16.gmra.mrb[0].mxu0 %v1875
    %v3644 = vpop.f32.mrb[0].mxu0
    %v3645 = vadd.f32 0.0, %v3644
    %v3646 = vpop.f32.mrb[0].mxu0
    %v3647 = vadd.f32 0.0, %v3646
    %v3648 = vpop.f32.mrb[0].mxu0
    %v3649 = vadd.f32 0.0, %v3648
    %v3650 = vpop.f32.mrb[0].mxu0
    %v3651 = vadd.f32 0.0, %v3650
    %3652 = vmatprep.mubr.bf16.mxu0 0
    %3653 = vmatmul.mubr.bf16.gmra.mrb[0].mxu0 %v1878
    %v3654 = vpop.f32.mrb[0].mxu0
    %v3655 = vadd.f32 0.0, %v3654
    %v3656 = vpop.f32.mrb[0].mxu0
    %v3657 = vadd.f32 0.0, %v3656
    %v3658 = vpop.f32.mrb[0].mxu0
    %v3659 = vadd.f32 0.0, %v3658
    %v3660 = vpop.f32.mrb[0].mxu0
    %v3661 = vadd.f32 0.0, %v3660
    %3662 = vmatprep.mubr.bf16.mxu0 0
    %3663 = vmatmul.mubr.bf16.gmra.mrb[0].mxu0 %v3469
    %v3664 = vpop.f32.mrb[0].mxu0
    %v3665 = vadd.f32 0.0, %v3664
    %v3666 = vpop.f32.mrb[0].mxu0
    %v3667 = vadd.f32 0.0, %v3666
    %v3668 = vpop.f32.mrb[0].mxu0
    %v3669 = vadd.f32 0.0, %v3668
    %v3670 = vpop.f32.mrb[0].mxu0
    %v3671 = vadd.f32 0.0, %v3670
    %3672 = vmatprep.mubr.bf16.mxu0 0
    %3673 = vmatmul.mubr.bf16.gmra.mrb[0].mxu0 %v1884
    %v3674 = vpop.f32.mrb[0].mxu0
    %v3675 = vadd.f32 0.0, %v3674
    %v3676 = vpop.f32.mrb[0].mxu0
    %v3677 = vadd.f32 0.0, %v3676
    %v3678 = vpop.f32.mrb[0].mxu0
    %v3679 = vadd.f32 0.0, %v3678
    %v3680 = vpop.f32.mrb[0].mxu0
    %v3681 = vadd.f32 0.0, %v3680
    %3682 = vmatprep.mubr.bf16.mxu0 0
    %3683 = vmatmul.mubr.bf16.gmra.mrb[0].mxu0 %v1887
    %v3684 = vpop.f32.mrb[0].mxu0
    %v3685 = vadd.f32 0.0, %v3684
    %v3686 = vpop.f32.mrb[0].mxu0
    %v3687 = vadd.f32 0.0, %v3686
    %v3688 = vpop.f32.mrb[0].mxu0
    %v3689 = vadd.f32 0.0, %v3688
    %v3690 = vpop.f32.mrb[0].mxu0
    %v3691 = vadd.f32 0.0, %v3690
    %3692 = vmatprep.mubr.bf16.mxu0 0
    %3693 = vmatmul.mubr.bf16.gmra.mrb[0].mxu0 %v1890
    %v3694 = vpop.f32.mrb[0].mxu0
    %v3695 = vadd.f32 0.0, %v3694
    %v3696 = vpop.f32.mrb[0].mxu0
    %v3697 = vadd.f32 0.0, %v3696
    %v3698 = vpop.f32.mrb[0].mxu0
    %v3699 = vadd.f32 0.0, %v3698
    %v3700 = vpop.f32.mrb[0].mxu0
    %v3701 = vadd.f32 0.0, %v3700
    %3702 = vmatprep.mubr.bf16.mxu0 0
    %3703 = vmatmul.mubr.bf16.gmra.mrb[0].mxu0 %v1893
    %v3704 = vpop.f32.mrb[0].mxu0
    %v3705 = vadd.f32 0.0, %v3704
    %v3706 = vpop.f32.mrb[0].mxu0
    %v3707 = vadd.f32 0.0, %v3706
    %v3708 = vpop.f32.mrb[0].mxu0
    %v3709 = vadd.f32 0.0, %v3708
    %v3710 = vpop.f32.mrb[0].mxu0
    %v3711 = vadd.f32 0.0, %v3710
    %3712 = vmatprep.mubr.bf16.mxu0 0
    %3713 = vmatmul.mubr.bf16.gmra.mrb[0].mxu0 %v1896
    %v3714 = vpop.f32.mrb[0].mxu0
    %v3715 = vadd.f32 0.0, %v3714
    %v3716 = vpop.f32.mrb[0].mxu0
    %v3717 = vadd.f32 0.0, %v3716
    %v3718 = vpop.f32.mrb[0].mxu0
    %v3719 = vadd.f32 0.0, %v3718
    %v3720 = vpop.f32.mrb[0].mxu0
    %v3721 = vadd.f32 0.0, %v3720
    %3722 = vmatprep.mubr.bf16.mxu0 0
    %3723 = vmatmul.mubr.bf16.gmra.mrb[0].mxu0 %v1899
    %v3724 = vpop.f32.mrb[0].mxu0
    %v3725 = vadd.f32 0.0, %v3724
    %v3726 = vpop.f32.mrb[0].mxu0
    %v3727 = vadd.f32 0.0, %v3726
    %v3728 = vpop.f32.mrb[0].mxu0
    %v3729 = vadd.f32 0.0, %v3728
    %v3730 = vpop.f32.mrb[0].mxu0
    %v3731 = vadd.f32 0.0, %v3730
    %3732 = vmatprep.mubr.bf16.mxu0 0
    %3733 = vmatmul.mubr.bf16.gmra.mrb[0].mxu0 %v1902
    %v3734 = vpop.f32.mrb[0].mxu0
    %v3735 = vadd.f32 0.0, %v3734
    %v3736 = vpop.f32.mrb[0].mxu0
    %v3737 = vadd.f32 0.0, %v3736
    %v3738 = vpop.f32.mrb[0].mxu0
    %v3739 = vadd.f32 0.0, %v3738
    %v3740 = vpop.f32.mrb[0].mxu0
    %v3741 = vadd.f32 0.0, %v3740
    %3742 = vmatprep.mubr.bf16.mxu0 0
    %3743 = vmatmul.mubr.bf16.gmra.mrb[0].mxu0 %v1905
    %v3744 = vpop.f32.mrb[0].mxu0
    %v3745 = vadd.f32 0.0, %v3744
    %v3746 = vpop.f32.mrb[0].mxu0
    %v3747 = vadd.f32 0.0, %v3746
    %v3748 = vpop.f32.mrb[0].mxu0
    %v3749 = vadd.f32 0.0, %v3748
    %v3750 = vpop.f32.mrb[0].mxu0
    %v3751 = vadd.f32 0.0, %v3750
    %3752 = vmatprep.mubr.bf16.mxu0 0
    %3753 = vmatmul.mubr.bf16.gmra.mrb[0].mxu0 %v1908
    %v3754 = vpop.f32.mrb[0].mxu0
    %v3755 = vadd.f32 0.0, %v3754
    %v3756 = vpop.f32.mrb[0].mxu0
    %v3757 = vadd.f32 0.0, %v3756
    %v3758 = vpop.f32.mrb[0].mxu0
    %v3759 = vadd.f32 0.0, %v3758
    %v3760 = vpop.f32.mrb[0].mxu0
    %v3761 = vadd.f32 0.0, %v3760
    %3762 = vmatprep.mubr.bf16.mxu0 0
    %3763 = vmatmul.mubr.bf16.gmra.mrb[0].mxu0 %v1911
    %v3764 = vpop.f32.mrb[0].mxu0
    %v3765 = vadd.f32 0.0, %v3764
    %v3766 = vpop.f32.mrb[0].mxu0
    %v3767 = vadd.f32 0.0, %v3766
    %v3768 = vpop.f32.mrb[0].mxu0
    %v3769 = vadd.f32 0.0, %v3768
    %v3770 = vpop.f32.mrb[0].mxu0
    %v3771 = vadd.f32 0.0, %v3770
    %3772 = vmatprep.mubr.bf16.mxu0 0
    %3773 = vmatmul.mubr.bf16.gmra.mrb[0].mxu0 %v1914
    %v3774 = vpop.f32.mrb[0].mxu0
    %v3775 = vadd.f32 0.0, %v3774
    %v3776 = vpop.f32.mrb[0].mxu0
    %v3777 = vadd.f32 0.0, %v3776
    %v3778 = vpop.f32.mrb[0].mxu0
    %v3779 = vadd.f32 0.0, %v3778
    %v3780 = vpop.f32.mrb[0].mxu0
    %v3781 = vadd.f32 0.0, %v3780
    %3782 = vmatprep.mubr.bf16.mxu0 0
    %3783 = vmatmul.mubr.bf16.gmra.mrb[0].mxu0 %v1917
    %v3784 = vpop.f32.mrb[0].mxu0
    %v3785 = vadd.f32 0.0, %v3784
    %v3786 = vpop.f32.mrb[0].mxu0
    %v3787 = vadd.f32 0.0, %v3786
    %v3788 = vpop.f32.mrb[0].mxu0
    %v3789 = vadd.f32 0.0, %v3788
    %v3790 = vpop.f32.mrb[0].mxu0
    %v3791 = vadd.f32 0.0, %v3790
    %3792 = vmatprep.mubr.bf16.mxu0 0
    %3793 = vmatmul.mubr.bf16.gmra.mrb[0].mxu0 %v1920
    %v3794 = vpop.f32.mrb[0].mxu0
    %v3795 = vadd.f32 0.0, %v3794
    %v3796 = vpop.f32.mrb[0].mxu0
    %v3797 = vadd.f32 0.0, %v3796
    %v3798 = vpop.f32.mrb[0].mxu0
    %v3799 = vadd.f32 0.0, %v3798
    %v3800 = vpop.f32.mrb[0].mxu0
    %v3801 = vadd.f32 0.0, %v3800
    %3802 = vmatprep.mubr.bf16.mxu0 0
    %3803 = vmatmul.mubr.bf16.gmra.mrb[0].mxu0 %v1923
    %v3804 = vpop.f32.mrb[0].mxu0
    %v3805 = vadd.f32 0.0, %v3804
    %v3806 = vpop.f32.mrb[0].mxu0
    %v3807 = vadd.f32 0.0, %v3806
    %v3808 = vpop.f32.mrb[0].mxu0
    %v3809 = vadd.f32 0.0, %v3808
    %v3810 = vpop.f32.mrb[0].mxu0
    %v3811 = vadd.f32 0.0, %v3810
    %3812 = vmatprep.mubr.bf16.mxu0 0
    %3813 = vmatmul.mubr.bf16.gmra.mrb[0].mxu0 %v1926
    %v3814 = vpop.f32.mrb[0].mxu0
    %v3815 = vadd.f32 0.0, %v3814
    %v3816 = vpop.f32.mrb[0].mxu0
    %v3817 = vadd.f32 0.0, %v3816
    %v3818 = vpop.f32.mrb[0].mxu0
    %v3819 = vadd.f32 0.0, %v3818
    %v3820 = vpop.f32.mrb[0].mxu0
    %v3821 = vadd.f32 0.0, %v3820
    %3822 = vmatprep.mubr.bf16.mxu0 0
    %3823 = vmatmul.mubr.bf16.gmra.mrb[0].mxu0 %v3472
    %v3824 = vpop.f32.mrb[0].mxu0
    %v3825 = vadd.f32 0.0, %v3824
    %v3826 = vpop.f32.mrb[0].mxu0
    %v3827 = vadd.f32 0.0, %v3826
    %v3828 = vpop.f32.mrb[0].mxu0
    %v3829 = vadd.f32 0.0, %v3828
    %v3830 = vpop.f32.mrb[0].mxu0
    %v3831 = vadd.f32 0.0, %v3830
    %3832 = vdwg.mxu0
    %v3833 = vadd.f32 %v3315, %v3515
    %v3834 = vadd.f32 %v3316, %v3517
    %v3835 = vadd.f32 %v3317, %v3519
    %v3836 = vadd.f32 %v3318, %v3521
    %v3837 = vadd.f32 %v3319, %v3525
    %v3838 = vadd.f32 %v3320, %v3527
    %v3839 = vadd.f32 %v3321, %v3529
    %v3840 = vadd.f32 %v3322, %v3531
    %v3841 = vadd.f32 %v3323, %v3535
    %v3842 = vadd.f32 %v3324, %v3537
    %v3843 = vadd.f32 %v3325, %v3539
    %v3844 = vadd.f32 %v3326, %v3541
    %v3845 = vadd.f32 %v3327, %v3545
    %v3846 = vadd.f32 %v3328, %v3547
    %v3847 = vadd.f32 %v3329, %v3549
    %v3848 = vadd.f32 %v3330, %v3551
    %v3849 = vadd.f32 %v3331, %v3555
    %v3850 = vadd.f32 %v3332, %v3557
    %v3851 = vadd.f32 %v3333, %v3559
    %v3852 = vadd.f32 %v3334, %v3561
    %v3853 = vadd.f32 %v3335, %v3565
    %v3854 = vadd.f32 %v3336, %v3567
    %v3855 = vadd.f32 %v3337, %v3569
    %v3856 = vadd.f32 %v3338, %v3571
    %v3857 = vadd.f32 %v3339, %v3575
    %v3858 = vadd.f32 %v3340, %v3577
    %v3859 = vadd.f32 %v3341, %v3579
    %v3860 = vadd.f32 %v3342, %v3581
    %v3861 = vadd.f32 %v3343, %v3585
    %v3862 = vadd.f32 %v3344, %v3587
    %v3863 = vadd.f32 %v3345, %v3589
    %v3864 = vadd.f32 %v3346, %v3591
    %v3865 = vadd.f32 %v3347, %v3595
    %v3866 = vadd.f32 %v3348, %v3597
    %v3867 = vadd.f32 %v3349, %v3599
    %v3868 = vadd.f32 %v3350, %v3601
    %v3869 = vadd.f32 %v3351, %v3605
    %v3870 = vadd.f32 %v3352, %v3607
    %v3871 = vadd.f32 %v3353, %v3609
    %v3872 = vadd.f32 %v3354, %v3611
    %v3873 = vadd.f32 %v3355, %v3615
    %v3874 = vadd.f32 %v3356, %v3617
    %v3875 = vadd.f32 %v3357, %v3619
    %v3876 = vadd.f32 %v3358, %v3621
    %v3877 = vadd.f32 %v3359, %v3625
    %v3878 = vadd.f32 %v3360, %v3627
    %v3879 = vadd.f32 %v3361, %v3629
    %v3880 = vadd.f32 %v3362, %v3631
    %v3881 = vadd.f32 %v3363, %v3635
    %v3882 = vadd.f32 %v3364, %v3637
    %v3883 = vadd.f32 %v3365, %v3639
    %v3884 = vadd.f32 %v3366, %v3641
    %v3885 = vadd.f32 %v3367, %v3645
    %v3886 = vadd.f32 %v3368, %v3647
    %v3887 = vadd.f32 %v3369, %v3649
    %v3888 = vadd.f32 %v3370, %v3651
    %v3889 = vadd.f32 %v3371, %v3655
    %v3890 = vadd.f32 %v3372, %v3657
    %v3891 = vadd.f32 %v3373, %v3659
    %v3892 = vadd.f32 %v3374, %v3661
    %v3893 = vadd.f32 %v3375, %v3665
    %v3894 = vadd.f32 %v3376, %v3667
    %v3895 = vadd.f32 %v3377, %v3669
    %v3896 = vadd.f32 %v3378, %v3671
    %v3897 = vadd.f32 %v3379, %v3675
    %v3898 = vadd.f32 %v3380, %v3677
    %v3899 = vadd.f32 %v3381, %v3679
    %v3900 = vadd.f32 %v3382, %v3681
    %v3901 = vadd.f32 %v3383, %v3685
    %v3902 = vadd.f32 %v3384, %v3687
    %v3903 = vadd.f32 %v3385, %v3689
    %v3904 = vadd.f32 %v3386, %v3691
    %v3905 = vadd.f32 %v3387, %v3695
    %v3906 = vadd.f32 %v3388, %v3697
    %v3907 = vadd.f32 %v3389, %v3699
    %v3908 = vadd.f32 %v3390, %v3701
    %v3909 = vadd.f32 %v3391, %v3705
    %v3910 = vadd.f32 %v3392, %v3707
    %v3911 = vadd.f32 %v3393, %v3709
    %v3912 = vadd.f32 %v3394, %v3711
    %v3913 = vadd.f32 %v3395, %v3715
    %v3914 = vadd.f32 %v3396, %v3717
    %v3915 = vadd.f32 %v3397, %v3719
    %v3916 = vadd.f32 %v3398, %v3721
    %v3917 = vadd.f32 %v3399, %v3725
    %v3918 = vadd.f32 %v3400, %v3727
    %v3919 = vadd.f32 %v3401, %v3729
    %v3920 = vadd.f32 %v3402, %v3731
    %v3921 = vadd.f32 %v3403, %v3735
    %v3922 = vadd.f32 %v3404, %v3737
    %v3923 = vadd.f32 %v3405, %v3739
    %v3924 = vadd.f32 %v3406, %v3741
    %v3925 = vadd.f32 %v3407, %v3745
    %v3926 = vadd.f32 %v3408, %v3747
    %v3927 = vadd.f32 %v3409, %v3749
    %v3928 = vadd.f32 %v3410, %v3751
    %v3929 = vadd.f32 %v3411, %v3755
    %v3930 = vadd.f32 %v3412, %v3757
    %v3931 = vadd.f32 %v3413, %v3759
    %v3932 = vadd.f32 %v3414, %v3761
    %v3933 = vadd.f32 %v3415, %v3765
    %v3934 = vadd.f32 %v3416, %v3767
    %v3935 = vadd.f32 %v3417, %v3769
    %v3936 = vadd.f32 %v3418, %v3771
    %v3937 = vadd.f32 %v3419, %v3775
    %v3938 = vadd.f32 %v3420, %v3777
    %v3939 = vadd.f32 %v3421, %v3779
    %v3940 = vadd.f32 %v3422, %v3781
    %v3941 = vadd.f32 %v3423, %v3785
    %v3942 = vadd.f32 %v3424, %v3787
    %v3943 = vadd.f32 %v3425, %v3789
    %v3944 = vadd.f32 %v3426, %v3791
    %v3945 = vadd.f32 %v3427, %v3795
    %v3946 = vadd.f32 %v3428, %v3797
    %v3947 = vadd.f32 %v3429, %v3799
    %v3948 = vadd.f32 %v3430, %v3801
    %v3949 = vadd.f32 %v3431, %v3805
    %v3950 = vadd.f32 %v3432, %v3807
    %v3951 = vadd.f32 %v3433, %v3809
    %v3952 = vadd.f32 %v3434, %v3811
    %v3953 = vadd.f32 %v3435, %v3815
    %v3954 = vadd.f32 %v3436, %v3817
    %v3955 = vadd.f32 %v3437, %v3819
    %v3956 = vadd.f32 %v3438, %v3821
    %v3957 = vadd.f32 %v3439, %v3825
    %v3958 = vadd.f32 %v3440, %v3827
    %v3959 = vadd.f32 %v3441, %v3829
    %v3960 = vadd.f32 %v3442, %v3831
    %v3961 = vpack.c.bf16 %v182, %v181
    %v3962 = vpack.c.bf16 %v236, %v235
    %v3965 = vunpack.c.l.s4 1983009808
    %v3966 = vunpack.c.0.s8 %v3965
    %v3967 = vlaneseq
    %v3968 = vshrl.u32 %v3967, 7
    %v3969 = vsub.s32 %v3966, %v3968
    %v3970 = vrot.slane %v244, %v3969
    %v3971 = vcombine.high %v3970, %v3970
    %v3973 = vsel %vm642, %v3961, 0
    %v3976 = vsel %vm642, %v3962, 0
    %v3979 = vand.u32 %v3970, %v742
    %v3982 = vand.u32 %v3971, %v742
    %3984 = vmatprep.subr.bf16.mxu0 %v3982
    %3985 = vmatpush1.bf16.msra.mxu0 %v3979
    %3986 = vmatprep.subr.bf16.mxu0 0
    %3987 = vmatpush1.bf16.msra.mxu0 0
    %3988 = vmatprep.subr.bf16.mxu0 0
    %3989 = vmatpush1.bf16.msra.mxu0 0
    %3990 = vmatprep.subr.bf16.mxu0 0
    %3991 = vmatpush1.bf16.msra.mxu0 0
    %3992 = vmatprep.subr.bf16.mxu0 0
    %3993 = vmatpush1.bf16.msra.mxu0 0
    %3994 = vmatprep.subr.bf16.mxu0 0
    %3995 = vmatpush1.bf16.msra.mxu0 0
    %3996 = vmatprep.subr.bf16.mxu0 0
    %3997 = vmatpush1.bf16.msra.mxu0 0
    %3998 = vmatprep.subr.bf16.mxu0 0
    %3999 = vmatpush1.bf16.msra.mxu0 0
    %4000 = vmatprep.subr.bf16.mxu0 0
    %4001 = vmatpush1.bf16.msra.mxu0 0
    %4002 = vmatprep.subr.bf16.mxu0 0
    %4003 = vmatpush1.bf16.msra.mxu0 0
    %4004 = vmatprep.subr.bf16.mxu0 0
    %4005 = vmatpush1.bf16.msra.mxu0 0
    %4006 = vmatprep.subr.bf16.mxu0 0
    %4007 = vmatpush1.bf16.msra.mxu0 0
    %4008 = vmatprep.subr.bf16.mxu0 0
    %4009 = vmatpush1.bf16.msra.mxu0 0
    %4010 = vmatprep.subr.bf16.mxu0 0
    %4011 = vmatpush1.bf16.msra.mxu0 0
    %4012 = vmatprep.subr.bf16.mxu0 0
    %4013 = vmatpush1.bf16.msra.mxu0 0
    %4014 = vmatprep.subr.bf16.mxu0 0
    %4015 = vmatpush1.bf16.msra.mxu0 0
    %4016 = vmatprep.mubr.bf16.mxu0 0
    %4017 = vmatmul.mubr.bf16.gmra.mrb[0].mxu0 %v1118
    %v4018 = vpop.f32.mrb[0].mxu0
    %v4019 = vadd.f32 0.0, %v4018
    %v4020 = vpop.f32.mrb[0].mxu0
    %v4021 = vadd.f32 0.0, %v4020
    %v4022 = vpop.f32.mrb[0].mxu0
    %v4023 = vadd.f32 0.0, %v4022
    %v4024 = vpop.f32.mrb[0].mxu0
    %v4025 = vadd.f32 0.0, %v4024
    %4026 = vmatprep.mubr.bf16.mxu0 0
    %4027 = vmatmul.mubr.bf16.gmra.mrb[0].mxu0 %v1121
    %v4028 = vpop.f32.mrb[0].mxu0
    %v4029 = vadd.f32 0.0, %v4028
    %v4030 = vpop.f32.mrb[0].mxu0
    %v4031 = vadd.f32 0.0, %v4030
    %v4032 = vpop.f32.mrb[0].mxu0
    %v4033 = vadd.f32 0.0, %v4032
    %v4034 = vpop.f32.mrb[0].mxu0
    %v4035 = vadd.f32 0.0, %v4034
    %4036 = vmatprep.mubr.bf16.mxu0 0
    %4037 = vmatmul.mubr.bf16.gmra.mrb[0].mxu0 %v1124
    %v4038 = vpop.f32.mrb[0].mxu0
    %v4039 = vadd.f32 0.0, %v4038
    %v4040 = vpop.f32.mrb[0].mxu0
    %v4041 = vadd.f32 0.0, %v4040
    %v4042 = vpop.f32.mrb[0].mxu0
    %v4043 = vadd.f32 0.0, %v4042
    %v4044 = vpop.f32.mrb[0].mxu0
    %v4045 = vadd.f32 0.0, %v4044
    %4046 = vmatprep.mubr.bf16.mxu0 0
    %4047 = vmatmul.mubr.bf16.gmra.mrb[0].mxu0 %v1127
    %v4048 = vpop.f32.mrb[0].mxu0
    %v4049 = vadd.f32 0.0, %v4048
    %v4050 = vpop.f32.mrb[0].mxu0
    %v4051 = vadd.f32 0.0, %v4050
    %v4052 = vpop.f32.mrb[0].mxu0
    %v4053 = vadd.f32 0.0, %v4052
    %v4054 = vpop.f32.mrb[0].mxu0
    %v4055 = vadd.f32 0.0, %v4054
    %4056 = vmatprep.mubr.bf16.mxu0 0
    %4057 = vmatmul.mubr.bf16.gmra.mrb[0].mxu0 %v1130
    %v4058 = vpop.f32.mrb[0].mxu0
    %v4059 = vadd.f32 0.0, %v4058
    %v4060 = vpop.f32.mrb[0].mxu0
    %v4061 = vadd.f32 0.0, %v4060
    %v4062 = vpop.f32.mrb[0].mxu0
    %v4063 = vadd.f32 0.0, %v4062
    %v4064 = vpop.f32.mrb[0].mxu0
    %v4065 = vadd.f32 0.0, %v4064
    %4066 = vmatprep.mubr.bf16.mxu0 0
    %4067 = vmatmul.mubr.bf16.gmra.mrb[0].mxu0 %v1133
    %v4068 = vpop.f32.mrb[0].mxu0
    %v4069 = vadd.f32 0.0, %v4068
    %v4070 = vpop.f32.mrb[0].mxu0
    %v4071 = vadd.f32 0.0, %v4070
    %v4072 = vpop.f32.mrb[0].mxu0
    %v4073 = vadd.f32 0.0, %v4072
    %v4074 = vpop.f32.mrb[0].mxu0
    %v4075 = vadd.f32 0.0, %v4074
    %4076 = vmatprep.mubr.bf16.mxu0 0
    %4077 = vmatmul.mubr.bf16.gmra.mrb[0].mxu0 %v1136
    %v4078 = vpop.f32.mrb[0].mxu0
    %v4079 = vadd.f32 0.0, %v4078
    %v4080 = vpop.f32.mrb[0].mxu0
    %v4081 = vadd.f32 0.0, %v4080
    %v4082 = vpop.f32.mrb[0].mxu0
    %v4083 = vadd.f32 0.0, %v4082
    %v4084 = vpop.f32.mrb[0].mxu0
    %v4085 = vadd.f32 0.0, %v4084
    %4086 = vmatprep.mubr.bf16.mxu0 0
    %4087 = vmatmul.mubr.bf16.gmra.mrb[0].mxu0 %v1139
    %v4088 = vpop.f32.mrb[0].mxu0
    %v4089 = vadd.f32 0.0, %v4088
    %v4090 = vpop.f32.mrb[0].mxu0
    %v4091 = vadd.f32 0.0, %v4090
    %v4092 = vpop.f32.mrb[0].mxu0
    %v4093 = vadd.f32 0.0, %v4092
    %v4094 = vpop.f32.mrb[0].mxu0
    %v4095 = vadd.f32 0.0, %v4094
    %4096 = vmatprep.mubr.bf16.mxu0 0
    %4097 = vmatmul.mubr.bf16.gmra.mrb[0].mxu0 %v1142
    %v4098 = vpop.f32.mrb[0].mxu0
    %v4099 = vadd.f32 0.0, %v4098
    %v4100 = vpop.f32.mrb[0].mxu0
    %v4101 = vadd.f32 0.0, %v4100
    %v4102 = vpop.f32.mrb[0].mxu0
    %v4103 = vadd.f32 0.0, %v4102
    %v4104 = vpop.f32.mrb[0].mxu0
    %v4105 = vadd.f32 0.0, %v4104
    %4106 = vmatprep.mubr.bf16.mxu0 0
    %4107 = vmatmul.mubr.bf16.gmra.mrb[0].mxu0 %v1145
    %v4108 = vpop.f32.mrb[0].mxu0
    %v4109 = vadd.f32 0.0, %v4108
    %v4110 = vpop.f32.mrb[0].mxu0
    %v4111 = vadd.f32 0.0, %v4110
    %v4112 = vpop.f32.mrb[0].mxu0
    %v4113 = vadd.f32 0.0, %v4112
    %v4114 = vpop.f32.mrb[0].mxu0
    %v4115 = vadd.f32 0.0, %v4114
    %4116 = vmatprep.mubr.bf16.mxu0 0
    %4117 = vmatmul.mubr.bf16.gmra.mrb[0].mxu0 %v1148
    %v4118 = vpop.f32.mrb[0].mxu0
    %v4119 = vadd.f32 0.0, %v4118
    %v4120 = vpop.f32.mrb[0].mxu0
    %v4121 = vadd.f32 0.0, %v4120
    %v4122 = vpop.f32.mrb[0].mxu0
    %v4123 = vadd.f32 0.0, %v4122
    %v4124 = vpop.f32.mrb[0].mxu0
    %v4125 = vadd.f32 0.0, %v4124
    %4126 = vmatprep.mubr.bf16.mxu0 0
    %4127 = vmatmul.mubr.bf16.gmra.mrb[0].mxu0 %v1151
    %v4128 = vpop.f32.mrb[0].mxu0
    %v4129 = vadd.f32 0.0, %v4128
    %v4130 = vpop.f32.mrb[0].mxu0
    %v4131 = vadd.f32 0.0, %v4130
    %v4132 = vpop.f32.mrb[0].mxu0
    %v4133 = vadd.f32 0.0, %v4132
    %v4134 = vpop.f32.mrb[0].mxu0
    %v4135 = vadd.f32 0.0, %v4134
    %4136 = vmatprep.mubr.bf16.mxu0 0
    %4137 = vmatmul.mubr.bf16.gmra.mrb[0].mxu0 %v1154
    %v4138 = vpop.f32.mrb[0].mxu0
    %v4139 = vadd.f32 0.0, %v4138
    %v4140 = vpop.f32.mrb[0].mxu0
    %v4141 = vadd.f32 0.0, %v4140
    %v4142 = vpop.f32.mrb[0].mxu0
    %v4143 = vadd.f32 0.0, %v4142
    %v4144 = vpop.f32.mrb[0].mxu0
    %v4145 = vadd.f32 0.0, %v4144
    %4146 = vmatprep.mubr.bf16.mxu0 0
    %4147 = vmatmul.mubr.bf16.gmra.mrb[0].mxu0 %v1157
    %v4148 = vpop.f32.mrb[0].mxu0
    %v4149 = vadd.f32 0.0, %v4148
    %v4150 = vpop.f32.mrb[0].mxu0
    %v4151 = vadd.f32 0.0, %v4150
    %v4152 = vpop.f32.mrb[0].mxu0
    %v4153 = vadd.f32 0.0, %v4152
    %v4154 = vpop.f32.mrb[0].mxu0
    %v4155 = vadd.f32 0.0, %v4154
    %4156 = vmatprep.mubr.bf16.mxu0 0
    %4157 = vmatmul.mubr.bf16.gmra.mrb[0].mxu0 %v2427
    %v4158 = vpop.f32.mrb[0].mxu0
    %v4159 = vadd.f32 0.0, %v4158
    %v4160 = vpop.f32.mrb[0].mxu0
    %v4161 = vadd.f32 0.0, %v4160
    %v4162 = vpop.f32.mrb[0].mxu0
    %v4163 = vadd.f32 0.0, %v4162
    %v4164 = vpop.f32.mrb[0].mxu0
    %v4165 = vadd.f32 0.0, %v4164
    %4166 = vmatprep.mubr.bf16.mxu0 0
    %4167 = vmatmul.mubr.bf16.gmra.mrb[0].mxu0 %v3973
    %v4168 = vpop.f32.mrb[0].mxu0
    %v4169 = vadd.f32 0.0, %v4168
    %v4170 = vpop.f32.mrb[0].mxu0
    %v4171 = vadd.f32 0.0, %v4170
    %v4172 = vpop.f32.mrb[0].mxu0
    %v4173 = vadd.f32 0.0, %v4172
    %v4174 = vpop.f32.mrb[0].mxu0
    %v4175 = vadd.f32 0.0, %v4174
    %4176 = vmatprep.mubr.bf16.mxu0 0
    %4177 = vmatmul.mubr.bf16.gmra.mrb[0].mxu0 %v1166
    %v4178 = vpop.f32.mrb[0].mxu0
    %v4179 = vadd.f32 0.0, %v4178
    %v4180 = vpop.f32.mrb[0].mxu0
    %v4181 = vadd.f32 0.0, %v4180
    %v4182 = vpop.f32.mrb[0].mxu0
    %v4183 = vadd.f32 0.0, %v4182
    %v4184 = vpop.f32.mrb[0].mxu0
    %v4185 = vadd.f32 0.0, %v4184
    %4186 = vmatprep.mubr.bf16.mxu0 0
    %4187 = vmatmul.mubr.bf16.gmra.mrb[0].mxu0 %v1169
    %v4188 = vpop.f32.mrb[0].mxu0
    %v4189 = vadd.f32 0.0, %v4188
    %v4190 = vpop.f32.mrb[0].mxu0
    %v4191 = vadd.f32 0.0, %v4190
    %v4192 = vpop.f32.mrb[0].mxu0
    %v4193 = vadd.f32 0.0, %v4192
    %v4194 = vpop.f32.mrb[0].mxu0
    %v4195 = vadd.f32 0.0, %v4194
    %4196 = vmatprep.mubr.bf16.mxu0 0
    %4197 = vmatmul.mubr.bf16.gmra.mrb[0].mxu0 %v1172
    %v4198 = vpop.f32.mrb[0].mxu0
    %v4199 = vadd.f32 0.0, %v4198
    %v4200 = vpop.f32.mrb[0].mxu0
    %v4201 = vadd.f32 0.0, %v4200
    %v4202 = vpop.f32.mrb[0].mxu0
    %v4203 = vadd.f32 0.0, %v4202
    %v4204 = vpop.f32.mrb[0].mxu0
    %v4205 = vadd.f32 0.0, %v4204
    %4206 = vmatprep.mubr.bf16.mxu0 0
    %4207 = vmatmul.mubr.bf16.gmra.mrb[0].mxu0 %v1175
    %v4208 = vpop.f32.mrb[0].mxu0
    %v4209 = vadd.f32 0.0, %v4208
    %v4210 = vpop.f32.mrb[0].mxu0
    %v4211 = vadd.f32 0.0, %v4210
    %v4212 = vpop.f32.mrb[0].mxu0
    %v4213 = vadd.f32 0.0, %v4212
    %v4214 = vpop.f32.mrb[0].mxu0
    %v4215 = vadd.f32 0.0, %v4214
    %4216 = vmatprep.mubr.bf16.mxu0 0
    %4217 = vmatmul.mubr.bf16.gmra.mrb[0].mxu0 %v1178
    %v4218 = vpop.f32.mrb[0].mxu0
    %v4219 = vadd.f32 0.0, %v4218
    %v4220 = vpop.f32.mrb[0].mxu0
    %v4221 = vadd.f32 0.0, %v4220
    %v4222 = vpop.f32.mrb[0].mxu0
    %v4223 = vadd.f32 0.0, %v4222
    %v4224 = vpop.f32.mrb[0].mxu0
    %v4225 = vadd.f32 0.0, %v4224
    %4226 = vmatprep.mubr.bf16.mxu0 0
    %4227 = vmatmul.mubr.bf16.gmra.mrb[0].mxu0 %v1181
    %v4228 = vpop.f32.mrb[0].mxu0
    %v4229 = vadd.f32 0.0, %v4228
    %v4230 = vpop.f32.mrb[0].mxu0
    %v4231 = vadd.f32 0.0, %v4230
    %v4232 = vpop.f32.mrb[0].mxu0
    %v4233 = vadd.f32 0.0, %v4232
    %v4234 = vpop.f32.mrb[0].mxu0
    %v4235 = vadd.f32 0.0, %v4234
    %4236 = vmatprep.mubr.bf16.mxu0 0
    %4237 = vmatmul.mubr.bf16.gmra.mrb[0].mxu0 %v1184
    %v4238 = vpop.f32.mrb[0].mxu0
    %v4239 = vadd.f32 0.0, %v4238
    %v4240 = vpop.f32.mrb[0].mxu0
    %v4241 = vadd.f32 0.0, %v4240
    %v4242 = vpop.f32.mrb[0].mxu0
    %v4243 = vadd.f32 0.0, %v4242
    %v4244 = vpop.f32.mrb[0].mxu0
    %v4245 = vadd.f32 0.0, %v4244
    %4246 = vmatprep.mubr.bf16.mxu0 0
    %4247 = vmatmul.mubr.bf16.gmra.mrb[0].mxu0 %v1187
    %v4248 = vpop.f32.mrb[0].mxu0
    %v4249 = vadd.f32 0.0, %v4248
    %v4250 = vpop.f32.mrb[0].mxu0
    %v4251 = vadd.f32 0.0, %v4250
    %v4252 = vpop.f32.mrb[0].mxu0
    %v4253 = vadd.f32 0.0, %v4252
    %v4254 = vpop.f32.mrb[0].mxu0
    %v4255 = vadd.f32 0.0, %v4254
    %4256 = vmatprep.mubr.bf16.mxu0 0
    %4257 = vmatmul.mubr.bf16.gmra.mrb[0].mxu0 %v1190
    %v4258 = vpop.f32.mrb[0].mxu0
    %v4259 = vadd.f32 0.0, %v4258
    %v4260 = vpop.f32.mrb[0].mxu0
    %v4261 = vadd.f32 0.0, %v4260
    %v4262 = vpop.f32.mrb[0].mxu0
    %v4263 = vadd.f32 0.0, %v4262
    %v4264 = vpop.f32.mrb[0].mxu0
    %v4265 = vadd.f32 0.0, %v4264
    %4266 = vmatprep.mubr.bf16.mxu0 0
    %4267 = vmatmul.mubr.bf16.gmra.mrb[0].mxu0 %v1193
    %v4268 = vpop.f32.mrb[0].mxu0
    %v4269 = vadd.f32 0.0, %v4268
    %v4270 = vpop.f32.mrb[0].mxu0
    %v4271 = vadd.f32 0.0, %v4270
    %v4272 = vpop.f32.mrb[0].mxu0
    %v4273 = vadd.f32 0.0, %v4272
    %v4274 = vpop.f32.mrb[0].mxu0
    %v4275 = vadd.f32 0.0, %v4274
    %4276 = vmatprep.mubr.bf16.mxu0 0
    %4277 = vmatmul.mubr.bf16.gmra.mrb[0].mxu0 %v1196
    %v4278 = vpop.f32.mrb[0].mxu0
    %v4279 = vadd.f32 0.0, %v4278
    %v4280 = vpop.f32.mrb[0].mxu0
    %v4281 = vadd.f32 0.0, %v4280
    %v4282 = vpop.f32.mrb[0].mxu0
    %v4283 = vadd.f32 0.0, %v4282
    %v4284 = vpop.f32.mrb[0].mxu0
    %v4285 = vadd.f32 0.0, %v4284
    %4286 = vmatprep.mubr.bf16.mxu0 0
    %4287 = vmatmul.mubr.bf16.gmra.mrb[0].mxu0 %v1199
    %v4288 = vpop.f32.mrb[0].mxu0
    %v4289 = vadd.f32 0.0, %v4288
    %v4290 = vpop.f32.mrb[0].mxu0
    %v4291 = vadd.f32 0.0, %v4290
    %v4292 = vpop.f32.mrb[0].mxu0
    %v4293 = vadd.f32 0.0, %v4292
    %v4294 = vpop.f32.mrb[0].mxu0
    %v4295 = vadd.f32 0.0, %v4294
    %4296 = vmatprep.mubr.bf16.mxu0 0
    %4297 = vmatmul.mubr.bf16.gmra.mrb[0].mxu0 %v1202
    %v4298 = vpop.f32.mrb[0].mxu0
    %v4299 = vadd.f32 0.0, %v4298
    %v4300 = vpop.f32.mrb[0].mxu0
    %v4301 = vadd.f32 0.0, %v4300
    %v4302 = vpop.f32.mrb[0].mxu0
    %v4303 = vadd.f32 0.0, %v4302
    %v4304 = vpop.f32.mrb[0].mxu0
    %v4305 = vadd.f32 0.0, %v4304
    %4306 = vmatprep.mubr.bf16.mxu0 0
    %4307 = vmatmul.mubr.bf16.gmra.mrb[0].mxu0 %v1205
    %v4308 = vpop.f32.mrb[0].mxu0
    %v4309 = vadd.f32 0.0, %v4308
    %v4310 = vpop.f32.mrb[0].mxu0
    %v4311 = vadd.f32 0.0, %v4310
    %v4312 = vpop.f32.mrb[0].mxu0
    %v4313 = vadd.f32 0.0, %v4312
    %v4314 = vpop.f32.mrb[0].mxu0
    %v4315 = vadd.f32 0.0, %v4314
    %4316 = vmatprep.mubr.bf16.mxu0 0
    %4317 = vmatmul.mubr.bf16.gmra.mrb[0].mxu0 %v2430
    %v4318 = vpop.f32.mrb[0].mxu0
    %v4319 = vadd.f32 0.0, %v4318
    %v4320 = vpop.f32.mrb[0].mxu0
    %v4321 = vadd.f32 0.0, %v4320
    %v4322 = vpop.f32.mrb[0].mxu0
    %v4323 = vadd.f32 0.0, %v4322
    %v4324 = vpop.f32.mrb[0].mxu0
    %v4325 = vadd.f32 0.0, %v4324
    %4326 = vmatprep.mubr.bf16.mxu0 0
    %4327 = vmatmul.mubr.bf16.gmra.mrb[0].mxu0 %v3976
    %v4328 = vpop.f32.mrb[0].mxu0
    %v4329 = vadd.f32 0.0, %v4328
    %v4330 = vpop.f32.mrb[0].mxu0
    %v4331 = vadd.f32 0.0, %v4330
    %v4332 = vpop.f32.mrb[0].mxu0
    %v4333 = vadd.f32 0.0, %v4332
    %v4334 = vpop.f32.mrb[0].mxu0
    %v4335 = vadd.f32 0.0, %v4334
    %4336 = vdwg.mxu0
    %v4337 = vadd.f32 %v3833, %v4019
    %v4338 = vadd.f32 %v3834, %v4021
    %v4339 = vadd.f32 %v3835, %v4023
    %v4340 = vadd.f32 %v3836, %v4025
    %v4341 = vadd.f32 %v3837, %v4029
    %v4342 = vadd.f32 %v3838, %v4031
    %v4343 = vadd.f32 %v3839, %v4033
    %v4344 = vadd.f32 %v3840, %v4035
    %v4345 = vadd.f32 %v3841, %v4039
    %v4346 = vadd.f32 %v3842, %v4041
    %v4347 = vadd.f32 %v3843, %v4043
    %v4348 = vadd.f32 %v3844, %v4045
    %v4349 = vadd.f32 %v3845, %v4049
    %v4350 = vadd.f32 %v3846, %v4051
    %v4351 = vadd.f32 %v3847, %v4053
    %v4352 = vadd.f32 %v3848, %v4055
    %v4353 = vadd.f32 %v3849, %v4059
    %v4354 = vadd.f32 %v3850, %v4061
    %v4355 = vadd.f32 %v3851, %v4063
    %v4356 = vadd.f32 %v3852, %v4065
    %v4357 = vadd.f32 %v3853, %v4069
    %v4358 = vadd.f32 %v3854, %v4071
    %v4359 = vadd.f32 %v3855, %v4073
    %v4360 = vadd.f32 %v3856, %v4075
    %v4361 = vadd.f32 %v3857, %v4079
    %v4362 = vadd.f32 %v3858, %v4081
    %v4363 = vadd.f32 %v3859, %v4083
    %v4364 = vadd.f32 %v3860, %v4085
    %v4365 = vadd.f32 %v3861, %v4089
    %v4366 = vadd.f32 %v3862, %v4091
    %v4367 = vadd.f32 %v3863, %v4093
    %v4368 = vadd.f32 %v3864, %v4095
    %v4369 = vadd.f32 %v3865, %v4099
    %v4370 = vadd.f32 %v3866, %v4101
    %v4371 = vadd.f32 %v3867, %v4103
    %v4372 = vadd.f32 %v3868, %v4105
    %v4373 = vadd.f32 %v3869, %v4109
    %v4374 = vadd.f32 %v3870, %v4111
    %v4375 = vadd.f32 %v3871, %v4113
    %v4376 = vadd.f32 %v3872, %v4115
    %v4377 = vadd.f32 %v3873, %v4119
    %v4378 = vadd.f32 %v3874, %v4121
    %v4379 = vadd.f32 %v3875, %v4123
    %v4380 = vadd.f32 %v3876, %v4125
    %v4381 = vadd.f32 %v3877, %v4129
    %v4382 = vadd.f32 %v3878, %v4131
    %v4383 = vadd.f32 %v3879, %v4133
    %v4384 = vadd.f32 %v3880, %v4135
    %v4385 = vadd.f32 %v3881, %v4139
    %v4386 = vadd.f32 %v3882, %v4141
    %v4387 = vadd.f32 %v3883, %v4143
    %v4388 = vadd.f32 %v3884, %v4145
    %v4389 = vadd.f32 %v3885, %v4149
    %v4390 = vadd.f32 %v3886, %v4151
    %v4391 = vadd.f32 %v3887, %v4153
    %v4392 = vadd.f32 %v3888, %v4155
    %v4393 = vadd.f32 %v3889, %v4159
    %v4394 = vadd.f32 %v3890, %v4161
    %v4395 = vadd.f32 %v3891, %v4163
    %v4396 = vadd.f32 %v3892, %v4165
    %v4397 = vadd.f32 %v3893, %v4169
    %v4398 = vadd.f32 %v3894, %v4171
    %v4399 = vadd.f32 %v3895, %v4173
    %v4400 = vadd.f32 %v3896, %v4175
    %v4401 = vadd.f32 %v3897, %v4179
    %v4402 = vadd.f32 %v3898, %v4181
    %v4403 = vadd.f32 %v3899, %v4183
    %v4404 = vadd.f32 %v3900, %v4185
    %v4405 = vadd.f32 %v3901, %v4189
    %v4406 = vadd.f32 %v3902, %v4191
    %v4407 = vadd.f32 %v3903, %v4193
    %v4408 = vadd.f32 %v3904, %v4195
    %v4409 = vadd.f32 %v3905, %v4199
    %v4410 = vadd.f32 %v3906, %v4201
    %v4411 = vadd.f32 %v3907, %v4203
    %v4412 = vadd.f32 %v3908, %v4205
    %v4413 = vadd.f32 %v3909, %v4209
    %v4414 = vadd.f32 %v3910, %v4211
    %v4415 = vadd.f32 %v3911, %v4213
    %v4416 = vadd.f32 %v3912, %v4215
    %v4417 = vadd.f32 %v3913, %v4219
    %v4418 = vadd.f32 %v3914, %v4221
    %v4419 = vadd.f32 %v3915, %v4223
    %v4420 = vadd.f32 %v3916, %v4225
    %v4421 = vadd.f32 %v3917, %v4229
    %v4422 = vadd.f32 %v3918, %v4231
    %v4423 = vadd.f32 %v3919, %v4233
    %v4424 = vadd.f32 %v3920, %v4235
    %v4425 = vadd.f32 %v3921, %v4239
    %v4426 = vadd.f32 %v3922, %v4241
    %v4427 = vadd.f32 %v3923, %v4243
    %v4428 = vadd.f32 %v3924, %v4245
    %v4429 = vadd.f32 %v3925, %v4249
    %v4430 = vadd.f32 %v3926, %v4251
    %v4431 = vadd.f32 %v3927, %v4253
    %v4432 = vadd.f32 %v3928, %v4255
    %v4433 = vadd.f32 %v3929, %v4259
    %v4434 = vadd.f32 %v3930, %v4261
    %v4435 = vadd.f32 %v3931, %v4263
    %v4436 = vadd.f32 %v3932, %v4265
    %v4437 = vadd.f32 %v3933, %v4269
    %v4438 = vadd.f32 %v3934, %v4271
    %v4439 = vadd.f32 %v3935, %v4273
    %v4440 = vadd.f32 %v3936, %v4275
    %v4441 = vadd.f32 %v3937, %v4279
    %v4442 = vadd.f32 %v3938, %v4281
    %v4443 = vadd.f32 %v3939, %v4283
    %v4444 = vadd.f32 %v3940, %v4285
    %v4445 = vadd.f32 %v3941, %v4289
    %v4446 = vadd.f32 %v3942, %v4291
    %v4447 = vadd.f32 %v3943, %v4293
    %v4448 = vadd.f32 %v3944, %v4295
    %v4449 = vadd.f32 %v3945, %v4299
    %v4450 = vadd.f32 %v3946, %v4301
    %v4451 = vadd.f32 %v3947, %v4303
    %v4452 = vadd.f32 %v3948, %v4305
    %v4453 = vadd.f32 %v3949, %v4309
    %v4454 = vadd.f32 %v3950, %v4311
    %v4455 = vadd.f32 %v3951, %v4313
    %v4456 = vadd.f32 %v3952, %v4315
    %v4457 = vadd.f32 %v3953, %v4319
    %v4458 = vadd.f32 %v3954, %v4321
    %v4459 = vadd.f32 %v3955, %v4323
    %v4460 = vadd.f32 %v3956, %v4325
    %v4461 = vadd.f32 %v3957, %v4329
    %v4462 = vadd.f32 %v3958, %v4331
    %v4463 = vadd.f32 %v3959, %v4333
    %v4464 = vadd.f32 %v3960, %v4335
    %v4471 = vrot.slane %v181, 1
    %v4472 = vrot.slane %v182, 1
    %v4473 = vsel %vm376, %v4471, %v4472
    %v4474 = vrot.slane %v183, 1
    %v4475 = vsel %vm376, %v4472, %v4474
    %v4476 = vrot.slane %v235, 1
    %v4477 = vrot.slane %v236, 1
    %v4478 = vsel %vm376, %v4476, %v4477
    %v4479 = vrot.slane %v237, 1
    %v4480 = vsel %vm376, %v4477, %v4479
    %v4485 = vpack.c.bf16 %v4475, %v4473
    %v4486 = vpack.c.bf16 %v4480, %v4478
    %v4489 = vunpack.c.l.s4 1983009808
    %v4490 = vunpack.c.0.s8 %v4489
    %v4491 = vlaneseq
    %v4492 = vshrl.u32 %v4491, 7
    %v4493 = vsub.s32 %v4490, %v4492
    %v4494 = vrot.slane %v245, %v4493
    %v4495 = vcombine.high %v4494, %v4494
    %v4497 = vsel %vm642, %v4485, 0
    %v4500 = vsel %vm642, %v4486, 0
    %v4503 = vand.u32 %v4494, %v742
    %v4506 = vand.u32 %v4495, %v742
    %4508 = vmatprep.subr.bf16.mxu0 %v4506
    %4509 = vmatpush1.bf16.msra.mxu0 %v4503
    %4510 = vmatprep.subr.bf16.mxu0 0
    %4511 = vmatpush1.bf16.msra.mxu0 0
    %4512 = vmatprep.subr.bf16.mxu0 0
    %4513 = vmatpush1.bf16.msra.mxu0 0
    %4514 = vmatprep.subr.bf16.mxu0 0
    %4515 = vmatpush1.bf16.msra.mxu0 0
    %4516 = vmatprep.subr.bf16.mxu0 0
    %4517 = vmatpush1.bf16.msra.mxu0 0
    %4518 = vmatprep.subr.bf16.mxu0 0
    %4519 = vmatpush1.bf16.msra.mxu0 0
    %4520 = vmatprep.subr.bf16.mxu0 0
    %4521 = vmatpush1.bf16.msra.mxu0 0
    %4522 = vmatprep.subr.bf16.mxu0 0
    %4523 = vmatpush1.bf16.msra.mxu0 0
    %4524 = vmatprep.subr.bf16.mxu0 0
    %4525 = vmatpush1.bf16.msra.mxu0 0
    %4526 = vmatprep.subr.bf16.mxu0 0
    %4527 = vmatpush1.bf16.msra.mxu0 0
    %4528 = vmatprep.subr.bf16.mxu0 0
    %4529 = vmatpush1.bf16.msra.mxu0 0
    %4530 = vmatprep.subr.bf16.mxu0 0
    %4531 = vmatpush1.bf16.msra.mxu0 0
    %4532 = vmatprep.subr.bf16.mxu0 0
    %4533 = vmatpush1.bf16.msra.mxu0 0
    %4534 = vmatprep.subr.bf16.mxu0 0
    %4535 = vmatpush1.bf16.msra.mxu0 0
    %4536 = vmatprep.subr.bf16.mxu0 0
    %4537 = vmatpush1.bf16.msra.mxu0 0
    %4538 = vmatprep.subr.bf16.mxu0 0
    %4539 = vmatpush1.bf16.msra.mxu0 0
    %4540 = vmatprep.mubr.bf16.mxu0 0
    %4541 = vmatmul.mubr.bf16.gmra.mrb[0].mxu0 %v650
    %v4542 = vpop.f32.mrb[0].mxu0
    %v4543 = vadd.f32 0.0, %v4542
    %v4544 = vpop.f32.mrb[0].mxu0
    %v4545 = vadd.f32 0.0, %v4544
    %v4546 = vpop.f32.mrb[0].mxu0
    %v4547 = vadd.f32 0.0, %v4546
    %v4548 = vpop.f32.mrb[0].mxu0
    %v4549 = vadd.f32 0.0, %v4548
    %4550 = vmatprep.mubr.bf16.mxu0 0
    %4551 = vmatmul.mubr.bf16.gmra.mrb[0].mxu0 %v653
    %v4552 = vpop.f32.mrb[0].mxu0
    %v4553 = vadd.f32 0.0, %v4552
    %v4554 = vpop.f32.mrb[0].mxu0
    %v4555 = vadd.f32 0.0, %v4554
    %v4556 = vpop.f32.mrb[0].mxu0
    %v4557 = vadd.f32 0.0, %v4556
    %v4558 = vpop.f32.mrb[0].mxu0
    %v4559 = vadd.f32 0.0, %v4558
    %4560 = vmatprep.mubr.bf16.mxu0 0
    %4561 = vmatmul.mubr.bf16.gmra.mrb[0].mxu0 %v656
    %v4562 = vpop.f32.mrb[0].mxu0
    %v4563 = vadd.f32 0.0, %v4562
    %v4564 = vpop.f32.mrb[0].mxu0
    %v4565 = vadd.f32 0.0, %v4564
    %v4566 = vpop.f32.mrb[0].mxu0
    %v4567 = vadd.f32 0.0, %v4566
    %v4568 = vpop.f32.mrb[0].mxu0
    %v4569 = vadd.f32 0.0, %v4568
    %4570 = vmatprep.mubr.bf16.mxu0 0
    %4571 = vmatmul.mubr.bf16.gmra.mrb[0].mxu0 %v659
    %v4572 = vpop.f32.mrb[0].mxu0
    %v4573 = vadd.f32 0.0, %v4572
    %v4574 = vpop.f32.mrb[0].mxu0
    %v4575 = vadd.f32 0.0, %v4574
    %v4576 = vpop.f32.mrb[0].mxu0
    %v4577 = vadd.f32 0.0, %v4576
    %v4578 = vpop.f32.mrb[0].mxu0
    %v4579 = vadd.f32 0.0, %v4578
    %4580 = vmatprep.mubr.bf16.mxu0 0
    %4581 = vmatmul.mubr.bf16.gmra.mrb[0].mxu0 %v662
    %v4582 = vpop.f32.mrb[0].mxu0
    %v4583 = vadd.f32 0.0, %v4582
    %v4584 = vpop.f32.mrb[0].mxu0
    %v4585 = vadd.f32 0.0, %v4584
    %v4586 = vpop.f32.mrb[0].mxu0
    %v4587 = vadd.f32 0.0, %v4586
    %v4588 = vpop.f32.mrb[0].mxu0
    %v4589 = vadd.f32 0.0, %v4588
    %4590 = vmatprep.mubr.bf16.mxu0 0
    %4591 = vmatmul.mubr.bf16.gmra.mrb[0].mxu0 %v665
    %v4592 = vpop.f32.mrb[0].mxu0
    %v4593 = vadd.f32 0.0, %v4592
    %v4594 = vpop.f32.mrb[0].mxu0
    %v4595 = vadd.f32 0.0, %v4594
    %v4596 = vpop.f32.mrb[0].mxu0
    %v4597 = vadd.f32 0.0, %v4596
    %v4598 = vpop.f32.mrb[0].mxu0
    %v4599 = vadd.f32 0.0, %v4598
    %4600 = vmatprep.mubr.bf16.mxu0 0
    %4601 = vmatmul.mubr.bf16.gmra.mrb[0].mxu0 %v668
    %v4602 = vpop.f32.mrb[0].mxu0
    %v4603 = vadd.f32 0.0, %v4602
    %v4604 = vpop.f32.mrb[0].mxu0
    %v4605 = vadd.f32 0.0, %v4604
    %v4606 = vpop.f32.mrb[0].mxu0
    %v4607 = vadd.f32 0.0, %v4606
    %v4608 = vpop.f32.mrb[0].mxu0
    %v4609 = vadd.f32 0.0, %v4608
    %4610 = vmatprep.mubr.bf16.mxu0 0
    %4611 = vmatmul.mubr.bf16.gmra.mrb[0].mxu0 %v671
    %v4612 = vpop.f32.mrb[0].mxu0
    %v4613 = vadd.f32 0.0, %v4612
    %v4614 = vpop.f32.mrb[0].mxu0
    %v4615 = vadd.f32 0.0, %v4614
    %v4616 = vpop.f32.mrb[0].mxu0
    %v4617 = vadd.f32 0.0, %v4616
    %v4618 = vpop.f32.mrb[0].mxu0
    %v4619 = vadd.f32 0.0, %v4618
    %4620 = vmatprep.mubr.bf16.mxu0 0
    %4621 = vmatmul.mubr.bf16.gmra.mrb[0].mxu0 %v674
    %v4622 = vpop.f32.mrb[0].mxu0
    %v4623 = vadd.f32 0.0, %v4622
    %v4624 = vpop.f32.mrb[0].mxu0
    %v4625 = vadd.f32 0.0, %v4624
    %v4626 = vpop.f32.mrb[0].mxu0
    %v4627 = vadd.f32 0.0, %v4626
    %v4628 = vpop.f32.mrb[0].mxu0
    %v4629 = vadd.f32 0.0, %v4628
    %4630 = vmatprep.mubr.bf16.mxu0 0
    %4631 = vmatmul.mubr.bf16.gmra.mrb[0].mxu0 %v677
    %v4632 = vpop.f32.mrb[0].mxu0
    %v4633 = vadd.f32 0.0, %v4632
    %v4634 = vpop.f32.mrb[0].mxu0
    %v4635 = vadd.f32 0.0, %v4634
    %v4636 = vpop.f32.mrb[0].mxu0
    %v4637 = vadd.f32 0.0, %v4636
    %v4638 = vpop.f32.mrb[0].mxu0
    %v4639 = vadd.f32 0.0, %v4638
    %4640 = vmatprep.mubr.bf16.mxu0 0
    %4641 = vmatmul.mubr.bf16.gmra.mrb[0].mxu0 %v680
    %v4642 = vpop.f32.mrb[0].mxu0
    %v4643 = vadd.f32 0.0, %v4642
    %v4644 = vpop.f32.mrb[0].mxu0
    %v4645 = vadd.f32 0.0, %v4644
    %v4646 = vpop.f32.mrb[0].mxu0
    %v4647 = vadd.f32 0.0, %v4646
    %v4648 = vpop.f32.mrb[0].mxu0
    %v4649 = vadd.f32 0.0, %v4648
    %4650 = vmatprep.mubr.bf16.mxu0 0
    %4651 = vmatmul.mubr.bf16.gmra.mrb[0].mxu0 %v683
    %v4652 = vpop.f32.mrb[0].mxu0
    %v4653 = vadd.f32 0.0, %v4652
    %v4654 = vpop.f32.mrb[0].mxu0
    %v4655 = vadd.f32 0.0, %v4654
    %v4656 = vpop.f32.mrb[0].mxu0
    %v4657 = vadd.f32 0.0, %v4656
    %v4658 = vpop.f32.mrb[0].mxu0
    %v4659 = vadd.f32 0.0, %v4658
    %4660 = vmatprep.mubr.bf16.mxu0 0
    %4661 = vmatmul.mubr.bf16.gmra.mrb[0].mxu0 %v686
    %v4662 = vpop.f32.mrb[0].mxu0
    %v4663 = vadd.f32 0.0, %v4662
    %v4664 = vpop.f32.mrb[0].mxu0
    %v4665 = vadd.f32 0.0, %v4664
    %v4666 = vpop.f32.mrb[0].mxu0
    %v4667 = vadd.f32 0.0, %v4666
    %v4668 = vpop.f32.mrb[0].mxu0
    %v4669 = vadd.f32 0.0, %v4668
    %4670 = vmatprep.mubr.bf16.mxu0 0
    %4671 = vmatmul.mubr.bf16.gmra.mrb[0].mxu0 %v689
    %v4672 = vpop.f32.mrb[0].mxu0
    %v4673 = vadd.f32 0.0, %v4672
    %v4674 = vpop.f32.mrb[0].mxu0
    %v4675 = vadd.f32 0.0, %v4674
    %v4676 = vpop.f32.mrb[0].mxu0
    %v4677 = vadd.f32 0.0, %v4676
    %v4678 = vpop.f32.mrb[0].mxu0
    %v4679 = vadd.f32 0.0, %v4678
    %4680 = vmatprep.mubr.bf16.mxu0 0
    %4681 = vmatmul.mubr.bf16.gmra.mrb[0].mxu0 %v2951
    %v4682 = vpop.f32.mrb[0].mxu0
    %v4683 = vadd.f32 0.0, %v4682
    %v4684 = vpop.f32.mrb[0].mxu0
    %v4685 = vadd.f32 0.0, %v4684
    %v4686 = vpop.f32.mrb[0].mxu0
    %v4687 = vadd.f32 0.0, %v4686
    %v4688 = vpop.f32.mrb[0].mxu0
    %v4689 = vadd.f32 0.0, %v4688
    %4690 = vmatprep.mubr.bf16.mxu0 0
    %4691 = vmatmul.mubr.bf16.gmra.mrb[0].mxu0 %v4497
    %v4692 = vpop.f32.mrb[0].mxu0
    %v4693 = vadd.f32 0.0, %v4692
    %v4694 = vpop.f32.mrb[0].mxu0
    %v4695 = vadd.f32 0.0, %v4694
    %v4696 = vpop.f32.mrb[0].mxu0
    %v4697 = vadd.f32 0.0, %v4696
    %v4698 = vpop.f32.mrb[0].mxu0
    %v4699 = vadd.f32 0.0, %v4698
    %4700 = vmatprep.mubr.bf16.mxu0 0
    %4701 = vmatmul.mubr.bf16.gmra.mrb[0].mxu0 %v698
    %v4702 = vpop.f32.mrb[0].mxu0
    %v4703 = vadd.f32 0.0, %v4702
    %v4704 = vpop.f32.mrb[0].mxu0
    %v4705 = vadd.f32 0.0, %v4704
    %v4706 = vpop.f32.mrb[0].mxu0
    %v4707 = vadd.f32 0.0, %v4706
    %v4708 = vpop.f32.mrb[0].mxu0
    %v4709 = vadd.f32 0.0, %v4708
    %4710 = vmatprep.mubr.bf16.mxu0 0
    %4711 = vmatmul.mubr.bf16.gmra.mrb[0].mxu0 %v701
    %v4712 = vpop.f32.mrb[0].mxu0
    %v4713 = vadd.f32 0.0, %v4712
    %v4714 = vpop.f32.mrb[0].mxu0
    %v4715 = vadd.f32 0.0, %v4714
    %v4716 = vpop.f32.mrb[0].mxu0
    %v4717 = vadd.f32 0.0, %v4716
    %v4718 = vpop.f32.mrb[0].mxu0
    %v4719 = vadd.f32 0.0, %v4718
    %4720 = vmatprep.mubr.bf16.mxu0 0
    %4721 = vmatmul.mubr.bf16.gmra.mrb[0].mxu0 %v704
    %v4722 = vpop.f32.mrb[0].mxu0
    %v4723 = vadd.f32 0.0, %v4722
    %v4724 = vpop.f32.mrb[0].mxu0
    %v4725 = vadd.f32 0.0, %v4724
    %v4726 = vpop.f32.mrb[0].mxu0
    %v4727 = vadd.f32 0.0, %v4726
    %v4728 = vpop.f32.mrb[0].mxu0
    %v4729 = vadd.f32 0.0, %v4728
    %4730 = vmatprep.mubr.bf16.mxu0 0
    %4731 = vmatmul.mubr.bf16.gmra.mrb[0].mxu0 %v707
    %v4732 = vpop.f32.mrb[0].mxu0
    %v4733 = vadd.f32 0.0, %v4732
    %v4734 = vpop.f32.mrb[0].mxu0
    %v4735 = vadd.f32 0.0, %v4734
    %v4736 = vpop.f32.mrb[0].mxu0
    %v4737 = vadd.f32 0.0, %v4736
    %v4738 = vpop.f32.mrb[0].mxu0
    %v4739 = vadd.f32 0.0, %v4738
    %4740 = vmatprep.mubr.bf16.mxu0 0
    %4741 = vmatmul.mubr.bf16.gmra.mrb[0].mxu0 %v710
    %v4742 = vpop.f32.mrb[0].mxu0
    %v4743 = vadd.f32 0.0, %v4742
    %v4744 = vpop.f32.mrb[0].mxu0
    %v4745 = vadd.f32 0.0, %v4744
    %v4746 = vpop.f32.mrb[0].mxu0
    %v4747 = vadd.f32 0.0, %v4746
    %v4748 = vpop.f32.mrb[0].mxu0
    %v4749 = vadd.f32 0.0, %v4748
    %4750 = vmatprep.mubr.bf16.mxu0 0
    %4751 = vmatmul.mubr.bf16.gmra.mrb[0].mxu0 %v713
    %v4752 = vpop.f32.mrb[0].mxu0
    %v4753 = vadd.f32 0.0, %v4752
    %v4754 = vpop.f32.mrb[0].mxu0
    %v4755 = vadd.f32 0.0, %v4754
    %v4756 = vpop.f32.mrb[0].mxu0
    %v4757 = vadd.f32 0.0, %v4756
    %v4758 = vpop.f32.mrb[0].mxu0
    %v4759 = vadd.f32 0.0, %v4758
    %4760 = vmatprep.mubr.bf16.mxu0 0
    %4761 = vmatmul.mubr.bf16.gmra.mrb[0].mxu0 %v716
    %v4762 = vpop.f32.mrb[0].mxu0
    %v4763 = vadd.f32 0.0, %v4762
    %v4764 = vpop.f32.mrb[0].mxu0
    %v4765 = vadd.f32 0.0, %v4764
    %v4766 = vpop.f32.mrb[0].mxu0
    %v4767 = vadd.f32 0.0, %v4766
    %v4768 = vpop.f32.mrb[0].mxu0
    %v4769 = vadd.f32 0.0, %v4768
    %4770 = vmatprep.mubr.bf16.mxu0 0
    %4771 = vmatmul.mubr.bf16.gmra.mrb[0].mxu0 %v719
    %v4772 = vpop.f32.mrb[0].mxu0
    %v4773 = vadd.f32 0.0, %v4772
    %v4774 = vpop.f32.mrb[0].mxu0
    %v4775 = vadd.f32 0.0, %v4774
    %v4776 = vpop.f32.mrb[0].mxu0
    %v4777 = vadd.f32 0.0, %v4776
    %v4778 = vpop.f32.mrb[0].mxu0
    %v4779 = vadd.f32 0.0, %v4778
    %4780 = vmatprep.mubr.bf16.mxu0 0
    %4781 = vmatmul.mubr.bf16.gmra.mrb[0].mxu0 %v722
    %v4782 = vpop.f32.mrb[0].mxu0
    %v4783 = vadd.f32 0.0, %v4782
    %v4784 = vpop.f32.mrb[0].mxu0
    %v4785 = vadd.f32 0.0, %v4784
    %v4786 = vpop.f32.mrb[0].mxu0
    %v4787 = vadd.f32 0.0, %v4786
    %v4788 = vpop.f32.mrb[0].mxu0
    %v4789 = vadd.f32 0.0, %v4788
    %4790 = vmatprep.mubr.bf16.mxu0 0
    %4791 = vmatmul.mubr.bf16.gmra.mrb[0].mxu0 %v725
    %v4792 = vpop.f32.mrb[0].mxu0
    %v4793 = vadd.f32 0.0, %v4792
    %v4794 = vpop.f32.mrb[0].mxu0
    %v4795 = vadd.f32 0.0, %v4794
    %v4796 = vpop.f32.mrb[0].mxu0
    %v4797 = vadd.f32 0.0, %v4796
    %v4798 = vpop.f32.mrb[0].mxu0
    %v4799 = vadd.f32 0.0, %v4798
    %4800 = vmatprep.mubr.bf16.mxu0 0
    %4801 = vmatmul.mubr.bf16.gmra.mrb[0].mxu0 %v728
    %v4802 = vpop.f32.mrb[0].mxu0
    %v4803 = vadd.f32 0.0, %v4802
    %v4804 = vpop.f32.mrb[0].mxu0
    %v4805 = vadd.f32 0.0, %v4804
    %v4806 = vpop.f32.mrb[0].mxu0
    %v4807 = vadd.f32 0.0, %v4806
    %v4808 = vpop.f32.mrb[0].mxu0
    %v4809 = vadd.f32 0.0, %v4808
    %4810 = vmatprep.mubr.bf16.mxu0 0
    %4811 = vmatmul.mubr.bf16.gmra.mrb[0].mxu0 %v731
    %v4812 = vpop.f32.mrb[0].mxu0
    %v4813 = vadd.f32 0.0, %v4812
    %v4814 = vpop.f32.mrb[0].mxu0
    %v4815 = vadd.f32 0.0, %v4814
    %v4816 = vpop.f32.mrb[0].mxu0
    %v4817 = vadd.f32 0.0, %v4816
    %v4818 = vpop.f32.mrb[0].mxu0
    %v4819 = vadd.f32 0.0, %v4818
    %4820 = vmatprep.mubr.bf16.mxu0 0
    %4821 = vmatmul.mubr.bf16.gmra.mrb[0].mxu0 %v734
    %v4822 = vpop.f32.mrb[0].mxu0
    %v4823 = vadd.f32 0.0, %v4822
    %v4824 = vpop.f32.mrb[0].mxu0
    %v4825 = vadd.f32 0.0, %v4824
    %v4826 = vpop.f32.mrb[0].mxu0
    %v4827 = vadd.f32 0.0, %v4826
    %v4828 = vpop.f32.mrb[0].mxu0
    %v4829 = vadd.f32 0.0, %v4828
    %4830 = vmatprep.mubr.bf16.mxu0 0
    %4831 = vmatmul.mubr.bf16.gmra.mrb[0].mxu0 %v737
    %v4832 = vpop.f32.mrb[0].mxu0
    %v4833 = vadd.f32 0.0, %v4832
    %v4834 = vpop.f32.mrb[0].mxu0
    %v4835 = vadd.f32 0.0, %v4834
    %v4836 = vpop.f32.mrb[0].mxu0
    %v4837 = vadd.f32 0.0, %v4836
    %v4838 = vpop.f32.mrb[0].mxu0
    %v4839 = vadd.f32 0.0, %v4838
    %4840 = vmatprep.mubr.bf16.mxu0 0
    %4841 = vmatmul.mubr.bf16.gmra.mrb[0].mxu0 %v2954
    %v4842 = vpop.f32.mrb[0].mxu0
    %v4843 = vadd.f32 0.0, %v4842
    %v4844 = vpop.f32.mrb[0].mxu0
    %v4845 = vadd.f32 0.0, %v4844
    %v4846 = vpop.f32.mrb[0].mxu0
    %v4847 = vadd.f32 0.0, %v4846
    %v4848 = vpop.f32.mrb[0].mxu0
    %v4849 = vadd.f32 0.0, %v4848
    %4850 = vmatprep.mubr.bf16.mxu0 0
    %4851 = vmatmul.mubr.bf16.gmra.mrb[0].mxu0 %v4500
    %v4852 = vpop.f32.mrb[0].mxu0
    %v4853 = vadd.f32 0.0, %v4852
    %v4854 = vpop.f32.mrb[0].mxu0
    %v4855 = vadd.f32 0.0, %v4854
    %v4856 = vpop.f32.mrb[0].mxu0
    %v4857 = vadd.f32 0.0, %v4856
    %v4858 = vpop.f32.mrb[0].mxu0
    %v4859 = vadd.f32 0.0, %v4858
    %4860 = vdwg.mxu0
    %v4861 = vadd.f32 %v4337, %v4543
    %v4862 = vadd.f32 %v4338, %v4545
    %v4863 = vadd.f32 %v4339, %v4547
    %v4864 = vadd.f32 %v4340, %v4549
    %v4865 = vadd.f32 %v4341, %v4553
    %v4866 = vadd.f32 %v4342, %v4555
    %v4867 = vadd.f32 %v4343, %v4557
    %v4868 = vadd.f32 %v4344, %v4559
    %v4869 = vadd.f32 %v4345, %v4563
    %v4870 = vadd.f32 %v4346, %v4565
    %v4871 = vadd.f32 %v4347, %v4567
    %v4872 = vadd.f32 %v4348, %v4569
    %v4873 = vadd.f32 %v4349, %v4573
    %v4874 = vadd.f32 %v4350, %v4575
    %v4875 = vadd.f32 %v4351, %v4577
    %v4876 = vadd.f32 %v4352, %v4579
    %v4877 = vadd.f32 %v4353, %v4583
    %v4878 = vadd.f32 %v4354, %v4585
    %v4879 = vadd.f32 %v4355, %v4587
    %v4880 = vadd.f32 %v4356, %v4589
    %v4881 = vadd.f32 %v4357, %v4593
    %v4882 = vadd.f32 %v4358, %v4595
    %v4883 = vadd.f32 %v4359, %v4597
    %v4884 = vadd.f32 %v4360, %v4599
    %v4885 = vadd.f32 %v4361, %v4603
    %v4886 = vadd.f32 %v4362, %v4605
    %v4887 = vadd.f32 %v4363, %v4607
    %v4888 = vadd.f32 %v4364, %v4609
    %v4889 = vadd.f32 %v4365, %v4613
    %v4890 = vadd.f32 %v4366, %v4615
    %v4891 = vadd.f32 %v4367, %v4617
    %v4892 = vadd.f32 %v4368, %v4619
    %v4893 = vadd.f32 %v4369, %v4623
    %v4894 = vadd.f32 %v4370, %v4625
    %v4895 = vadd.f32 %v4371, %v4627
    %v4896 = vadd.f32 %v4372, %v4629
    %v4897 = vadd.f32 %v4373, %v4633
    %v4898 = vadd.f32 %v4374, %v4635
    %v4899 = vadd.f32 %v4375, %v4637
    %v4900 = vadd.f32 %v4376, %v4639
    %v4901 = vadd.f32 %v4377, %v4643
    %v4902 = vadd.f32 %v4378, %v4645
    %v4903 = vadd.f32 %v4379, %v4647
    %v4904 = vadd.f32 %v4380, %v4649
    %v4905 = vadd.f32 %v4381, %v4653
    %v4906 = vadd.f32 %v4382, %v4655
    %v4907 = vadd.f32 %v4383, %v4657
    %v4908 = vadd.f32 %v4384, %v4659
    %v4909 = vadd.f32 %v4385, %v4663
    %v4910 = vadd.f32 %v4386, %v4665
    %v4911 = vadd.f32 %v4387, %v4667
    %v4912 = vadd.f32 %v4388, %v4669
    %v4913 = vadd.f32 %v4389, %v4673
    %v4914 = vadd.f32 %v4390, %v4675
    %v4915 = vadd.f32 %v4391, %v4677
    %v4916 = vadd.f32 %v4392, %v4679
    %v4917 = vadd.f32 %v4393, %v4683
    %v4918 = vadd.f32 %v4394, %v4685
    %v4919 = vadd.f32 %v4395, %v4687
    %v4920 = vadd.f32 %v4396, %v4689
    %v4921 = vadd.f32 %v4397, %v4693
    %v4922 = vadd.f32 %v4398, %v4695
    %v4923 = vadd.f32 %v4399, %v4697
    %v4924 = vadd.f32 %v4400, %v4699
    %v4925 = vadd.f32 %v4401, %v4703
    %v4926 = vadd.f32 %v4402, %v4705
    %v4927 = vadd.f32 %v4403, %v4707
    %v4928 = vadd.f32 %v4404, %v4709
    %v4929 = vadd.f32 %v4405, %v4713
    %v4930 = vadd.f32 %v4406, %v4715
    %v4931 = vadd.f32 %v4407, %v4717
    %v4932 = vadd.f32 %v4408, %v4719
    %v4933 = vadd.f32 %v4409, %v4723
    %v4934 = vadd.f32 %v4410, %v4725
    %v4935 = vadd.f32 %v4411, %v4727
    %v4936 = vadd.f32 %v4412, %v4729
    %v4937 = vadd.f32 %v4413, %v4733
    %v4938 = vadd.f32 %v4414, %v4735
    %v4939 = vadd.f32 %v4415, %v4737
    %v4940 = vadd.f32 %v4416, %v4739
    %v4941 = vadd.f32 %v4417, %v4743
    %v4942 = vadd.f32 %v4418, %v4745
    %v4943 = vadd.f32 %v4419, %v4747
    %v4944 = vadd.f32 %v4420, %v4749
    %v4945 = vadd.f32 %v4421, %v4753
    %v4946 = vadd.f32 %v4422, %v4755
    %v4947 = vadd.f32 %v4423, %v4757
    %v4948 = vadd.f32 %v4424, %v4759
    %v4949 = vadd.f32 %v4425, %v4763
    %v4950 = vadd.f32 %v4426, %v4765
    %v4951 = vadd.f32 %v4427, %v4767
    %v4952 = vadd.f32 %v4428, %v4769
    %v4953 = vadd.f32 %v4429, %v4773
    %v4954 = vadd.f32 %v4430, %v4775
    %v4955 = vadd.f32 %v4431, %v4777
    %v4956 = vadd.f32 %v4432, %v4779
    %v4957 = vadd.f32 %v4433, %v4783
    %v4958 = vadd.f32 %v4434, %v4785
    %v4959 = vadd.f32 %v4435, %v4787
    %v4960 = vadd.f32 %v4436, %v4789
    %v4961 = vadd.f32 %v4437, %v4793
    %v4962 = vadd.f32 %v4438, %v4795
    %v4963 = vadd.f32 %v4439, %v4797
    %v4964 = vadd.f32 %v4440, %v4799
    %v4965 = vadd.f32 %v4441, %v4803
    %v4966 = vadd.f32 %v4442, %v4805
    %v4967 = vadd.f32 %v4443, %v4807
    %v4968 = vadd.f32 %v4444, %v4809
    %v4969 = vadd.f32 %v4445, %v4813
    %v4970 = vadd.f32 %v4446, %v4815
    %v4971 = vadd.f32 %v4447, %v4817
    %v4972 = vadd.f32 %v4448, %v4819
    %v4973 = vadd.f32 %v4449, %v4823
    %v4974 = vadd.f32 %v4450, %v4825
    %v4975 = vadd.f32 %v4451, %v4827
    %v4976 = vadd.f32 %v4452, %v4829
    %v4977 = vadd.f32 %v4453, %v4833
    %v4978 = vadd.f32 %v4454, %v4835
    %v4979 = vadd.f32 %v4455, %v4837
    %v4980 = vadd.f32 %v4456, %v4839
    %v4981 = vadd.f32 %v4457, %v4843
    %v4982 = vadd.f32 %v4458, %v4845
    %v4983 = vadd.f32 %v4459, %v4847
    %v4984 = vadd.f32 %v4460, %v4849
    %v4985 = vadd.f32 %v4461, %v4853
    %v4986 = vadd.f32 %v4462, %v4855
    %v4987 = vadd.f32 %v4463, %v4857
    %v4988 = vadd.f32 %v4464, %v4859
    %v4989 = vrot.slane %v181, 2
    %v4990 = vrot.slane %v182, 2
    %v4991 = vsel %vm1566, %v4989, %v4990
    %v4992 = vrot.slane %v183, 2
    %v4993 = vsel %vm1566, %v4990, %v4992
    %v4994 = vrot.slane %v235, 2
    %v4995 = vrot.slane %v236, 2
    %v4996 = vsel %vm1566, %v4994, %v4995
    %v4997 = vrot.slane %v237, 2
    %v4998 = vsel %vm1566, %v4995, %v4997
    %v5003 = vpack.c.bf16 %v4993, %v4991
    %v5004 = vpack.c.bf16 %v4998, %v4996
    %v5007 = vunpack.c.l.s4 1983009808
    %v5008 = vunpack.c.0.s8 %v5007
    %v5009 = vlaneseq
    %v5010 = vshrl.u32 %v5009, 7
    %v5011 = vsub.s32 %v5008, %v5010
    %v5012 = vrot.slane %v246, %v5011
    %v5013 = vcombine.high %v5012, %v5012
    %v5015 = vsel %vm642, %v5003, 0
    %v5018 = vsel %vm642, %v5004, 0
    %v5021 = vand.u32 %v5012, %v742
    %v5024 = vand.u32 %v5013, %v742
    %5026 = vmatprep.subr.bf16.mxu0 %v5024
    %5027 = vmatpush1.bf16.msra.mxu0 %v5021
    %5028 = vmatprep.subr.bf16.mxu0 0
    %5029 = vmatpush1.bf16.msra.mxu0 0
    %5030 = vmatprep.subr.bf16.mxu0 0
    %5031 = vmatpush1.bf16.msra.mxu0 0
    %5032 = vmatprep.subr.bf16.mxu0 0
    %5033 = vmatpush1.bf16.msra.mxu0 0
    %5034 = vmatprep.subr.bf16.mxu0 0
    %5035 = vmatpush1.bf16.msra.mxu0 0
    %5036 = vmatprep.subr.bf16.mxu0 0
    %5037 = vmatpush1.bf16.msra.mxu0 0
    %5038 = vmatprep.subr.bf16.mxu0 0
    %5039 = vmatpush1.bf16.msra.mxu0 0
    %5040 = vmatprep.subr.bf16.mxu0 0
    %5041 = vmatpush1.bf16.msra.mxu0 0
    %5042 = vmatprep.subr.bf16.mxu0 0
    %5043 = vmatpush1.bf16.msra.mxu0 0
    %5044 = vmatprep.subr.bf16.mxu0 0
    %5045 = vmatpush1.bf16.msra.mxu0 0
    %5046 = vmatprep.subr.bf16.mxu0 0
    %5047 = vmatpush1.bf16.msra.mxu0 0
    %5048 = vmatprep.subr.bf16.mxu0 0
    %5049 = vmatpush1.bf16.msra.mxu0 0
    %5050 = vmatprep.subr.bf16.mxu0 0
    %5051 = vmatpush1.bf16.msra.mxu0 0
    %5052 = vmatprep.subr.bf16.mxu0 0
    %5053 = vmatpush1.bf16.msra.mxu0 0
    %5054 = vmatprep.subr.bf16.mxu0 0
    %5055 = vmatpush1.bf16.msra.mxu0 0
    %5056 = vmatprep.subr.bf16.mxu0 0
    %5057 = vmatpush1.bf16.msra.mxu0 0
    %5058 = vmatprep.mubr.bf16.mxu0 0
    %5059 = vmatmul.mubr.bf16.gmra.mrb[0].mxu0 %v1839
    %v5060 = vpop.f32.mrb[0].mxu0
    %v5061 = vadd.f32 0.0, %v5060
    %v5062 = vpop.f32.mrb[0].mxu0
    %v5063 = vadd.f32 0.0, %v5062
    %v5064 = vpop.f32.mrb[0].mxu0
    %v5065 = vadd.f32 0.0, %v5064
    %v5066 = vpop.f32.mrb[0].mxu0
    %v5067 = vadd.f32 0.0, %v5066
    %5068 = vmatprep.mubr.bf16.mxu0 0
    %5069 = vmatmul.mubr.bf16.gmra.mrb[0].mxu0 %v1842
    %v5070 = vpop.f32.mrb[0].mxu0
    %v5071 = vadd.f32 0.0, %v5070
    %v5072 = vpop.f32.mrb[0].mxu0
    %v5073 = vadd.f32 0.0, %v5072
    %v5074 = vpop.f32.mrb[0].mxu0
    %v5075 = vadd.f32 0.0, %v5074
    %v5076 = vpop.f32.mrb[0].mxu0
    %v5077 = vadd.f32 0.0, %v5076
    %5078 = vmatprep.mubr.bf16.mxu0 0
    %5079 = vmatmul.mubr.bf16.gmra.mrb[0].mxu0 %v1845
    %v5080 = vpop.f32.mrb[0].mxu0
    %v5081 = vadd.f32 0.0, %v5080
    %v5082 = vpop.f32.mrb[0].mxu0
    %v5083 = vadd.f32 0.0, %v5082
    %v5084 = vpop.f32.mrb[0].mxu0
    %v5085 = vadd.f32 0.0, %v5084
    %v5086 = vpop.f32.mrb[0].mxu0
    %v5087 = vadd.f32 0.0, %v5086
    %5088 = vmatprep.mubr.bf16.mxu0 0
    %5089 = vmatmul.mubr.bf16.gmra.mrb[0].mxu0 %v1848
    %v5090 = vpop.f32.mrb[0].mxu0
    %v5091 = vadd.f32 0.0, %v5090
    %v5092 = vpop.f32.mrb[0].mxu0
    %v5093 = vadd.f32 0.0, %v5092
    %v5094 = vpop.f32.mrb[0].mxu0
    %v5095 = vadd.f32 0.0, %v5094
    %v5096 = vpop.f32.mrb[0].mxu0
    %v5097 = vadd.f32 0.0, %v5096
    %5098 = vmatprep.mubr.bf16.mxu0 0
    %5099 = vmatmul.mubr.bf16.gmra.mrb[0].mxu0 %v1851
    %v5100 = vpop.f32.mrb[0].mxu0
    %v5101 = vadd.f32 0.0, %v5100
    %v5102 = vpop.f32.mrb[0].mxu0
    %v5103 = vadd.f32 0.0, %v5102
    %v5104 = vpop.f32.mrb[0].mxu0
    %v5105 = vadd.f32 0.0, %v5104
    %v5106 = vpop.f32.mrb[0].mxu0
    %v5107 = vadd.f32 0.0, %v5106
    %5108 = vmatprep.mubr.bf16.mxu0 0
    %5109 = vmatmul.mubr.bf16.gmra.mrb[0].mxu0 %v1854
    %v5110 = vpop.f32.mrb[0].mxu0
    %v5111 = vadd.f32 0.0, %v5110
    %v5112 = vpop.f32.mrb[0].mxu0
    %v5113 = vadd.f32 0.0, %v5112
    %v5114 = vpop.f32.mrb[0].mxu0
    %v5115 = vadd.f32 0.0, %v5114
    %v5116 = vpop.f32.mrb[0].mxu0
    %v5117 = vadd.f32 0.0, %v5116
    %5118 = vmatprep.mubr.bf16.mxu0 0
    %5119 = vmatmul.mubr.bf16.gmra.mrb[0].mxu0 %v1857
    %v5120 = vpop.f32.mrb[0].mxu0
    %v5121 = vadd.f32 0.0, %v5120
    %v5122 = vpop.f32.mrb[0].mxu0
    %v5123 = vadd.f32 0.0, %v5122
    %v5124 = vpop.f32.mrb[0].mxu0
    %v5125 = vadd.f32 0.0, %v5124
    %v5126 = vpop.f32.mrb[0].mxu0
    %v5127 = vadd.f32 0.0, %v5126
    %5128 = vmatprep.mubr.bf16.mxu0 0
    %5129 = vmatmul.mubr.bf16.gmra.mrb[0].mxu0 %v1860
    %v5130 = vpop.f32.mrb[0].mxu0
    %v5131 = vadd.f32 0.0, %v5130
    %v5132 = vpop.f32.mrb[0].mxu0
    %v5133 = vadd.f32 0.0, %v5132
    %v5134 = vpop.f32.mrb[0].mxu0
    %v5135 = vadd.f32 0.0, %v5134
    %v5136 = vpop.f32.mrb[0].mxu0
    %v5137 = vadd.f32 0.0, %v5136
    %5138 = vmatprep.mubr.bf16.mxu0 0
    %5139 = vmatmul.mubr.bf16.gmra.mrb[0].mxu0 %v1863
    %v5140 = vpop.f32.mrb[0].mxu0
    %v5141 = vadd.f32 0.0, %v5140
    %v5142 = vpop.f32.mrb[0].mxu0
    %v5143 = vadd.f32 0.0, %v5142
    %v5144 = vpop.f32.mrb[0].mxu0
    %v5145 = vadd.f32 0.0, %v5144
    %v5146 = vpop.f32.mrb[0].mxu0
    %v5147 = vadd.f32 0.0, %v5146
    %5148 = vmatprep.mubr.bf16.mxu0 0
    %5149 = vmatmul.mubr.bf16.gmra.mrb[0].mxu0 %v1866
    %v5150 = vpop.f32.mrb[0].mxu0
    %v5151 = vadd.f32 0.0, %v5150
    %v5152 = vpop.f32.mrb[0].mxu0
    %v5153 = vadd.f32 0.0, %v5152
    %v5154 = vpop.f32.mrb[0].mxu0
    %v5155 = vadd.f32 0.0, %v5154
    %v5156 = vpop.f32.mrb[0].mxu0
    %v5157 = vadd.f32 0.0, %v5156
    %5158 = vmatprep.mubr.bf16.mxu0 0
    %5159 = vmatmul.mubr.bf16.gmra.mrb[0].mxu0 %v1869
    %v5160 = vpop.f32.mrb[0].mxu0
    %v5161 = vadd.f32 0.0, %v5160
    %v5162 = vpop.f32.mrb[0].mxu0
    %v5163 = vadd.f32 0.0, %v5162
    %v5164 = vpop.f32.mrb[0].mxu0
    %v5165 = vadd.f32 0.0, %v5164
    %v5166 = vpop.f32.mrb[0].mxu0
    %v5167 = vadd.f32 0.0, %v5166
    %5168 = vmatprep.mubr.bf16.mxu0 0
    %5169 = vmatmul.mubr.bf16.gmra.mrb[0].mxu0 %v1872
    %v5170 = vpop.f32.mrb[0].mxu0
    %v5171 = vadd.f32 0.0, %v5170
    %v5172 = vpop.f32.mrb[0].mxu0
    %v5173 = vadd.f32 0.0, %v5172
    %v5174 = vpop.f32.mrb[0].mxu0
    %v5175 = vadd.f32 0.0, %v5174
    %v5176 = vpop.f32.mrb[0].mxu0
    %v5177 = vadd.f32 0.0, %v5176
    %5178 = vmatprep.mubr.bf16.mxu0 0
    %5179 = vmatmul.mubr.bf16.gmra.mrb[0].mxu0 %v1875
    %v5180 = vpop.f32.mrb[0].mxu0
    %v5181 = vadd.f32 0.0, %v5180
    %v5182 = vpop.f32.mrb[0].mxu0
    %v5183 = vadd.f32 0.0, %v5182
    %v5184 = vpop.f32.mrb[0].mxu0
    %v5185 = vadd.f32 0.0, %v5184
    %v5186 = vpop.f32.mrb[0].mxu0
    %v5187 = vadd.f32 0.0, %v5186
    %5188 = vmatprep.mubr.bf16.mxu0 0
    %5189 = vmatmul.mubr.bf16.gmra.mrb[0].mxu0 %v1878
    %v5190 = vpop.f32.mrb[0].mxu0
    %v5191 = vadd.f32 0.0, %v5190
    %v5192 = vpop.f32.mrb[0].mxu0
    %v5193 = vadd.f32 0.0, %v5192
    %v5194 = vpop.f32.mrb[0].mxu0
    %v5195 = vadd.f32 0.0, %v5194
    %v5196 = vpop.f32.mrb[0].mxu0
    %v5197 = vadd.f32 0.0, %v5196
    %5198 = vmatprep.mubr.bf16.mxu0 0
    %5199 = vmatmul.mubr.bf16.gmra.mrb[0].mxu0 %v3469
    %v5200 = vpop.f32.mrb[0].mxu0
    %v5201 = vadd.f32 0.0, %v5200
    %v5202 = vpop.f32.mrb[0].mxu0
    %v5203 = vadd.f32 0.0, %v5202
    %v5204 = vpop.f32.mrb[0].mxu0
    %v5205 = vadd.f32 0.0, %v5204
    %v5206 = vpop.f32.mrb[0].mxu0
    %v5207 = vadd.f32 0.0, %v5206
    %5208 = vmatprep.mubr.bf16.mxu0 0
    %5209 = vmatmul.mubr.bf16.gmra.mrb[0].mxu0 %v5015
    %v5210 = vpop.f32.mrb[0].mxu0
    %v5211 = vadd.f32 0.0, %v5210
    %v5212 = vpop.f32.mrb[0].mxu0
    %v5213 = vadd.f32 0.0, %v5212
    %v5214 = vpop.f32.mrb[0].mxu0
    %v5215 = vadd.f32 0.0, %v5214
    %v5216 = vpop.f32.mrb[0].mxu0
    %v5217 = vadd.f32 0.0, %v5216
    %5218 = vmatprep.mubr.bf16.mxu0 0
    %5219 = vmatmul.mubr.bf16.gmra.mrb[0].mxu0 %v1887
    %v5220 = vpop.f32.mrb[0].mxu0
    %v5221 = vadd.f32 0.0, %v5220
    %v5222 = vpop.f32.mrb[0].mxu0
    %v5223 = vadd.f32 0.0, %v5222
    %v5224 = vpop.f32.mrb[0].mxu0
    %v5225 = vadd.f32 0.0, %v5224
    %v5226 = vpop.f32.mrb[0].mxu0
    %v5227 = vadd.f32 0.0, %v5226
    %5228 = vmatprep.mubr.bf16.mxu0 0
    %5229 = vmatmul.mubr.bf16.gmra.mrb[0].mxu0 %v1890
    %v5230 = vpop.f32.mrb[0].mxu0
    %v5231 = vadd.f32 0.0, %v5230
    %v5232 = vpop.f32.mrb[0].mxu0
    %v5233 = vadd.f32 0.0, %v5232
    %v5234 = vpop.f32.mrb[0].mxu0
    %v5235 = vadd.f32 0.0, %v5234
    %v5236 = vpop.f32.mrb[0].mxu0
    %v5237 = vadd.f32 0.0, %v5236
    %5238 = vmatprep.mubr.bf16.mxu0 0
    %5239 = vmatmul.mubr.bf16.gmra.mrb[0].mxu0 %v1893
    %v5240 = vpop.f32.mrb[0].mxu0
    %v5241 = vadd.f32 0.0, %v5240
    %v5242 = vpop.f32.mrb[0].mxu0
    %v5243 = vadd.f32 0.0, %v5242
    %v5244 = vpop.f32.mrb[0].mxu0
    %v5245 = vadd.f32 0.0, %v5244
    %v5246 = vpop.f32.mrb[0].mxu0
    %v5247 = vadd.f32 0.0, %v5246
    %5248 = vmatprep.mubr.bf16.mxu0 0
    %5249 = vmatmul.mubr.bf16.gmra.mrb[0].mxu0 %v1896
    %v5250 = vpop.f32.mrb[0].mxu0
    %v5251 = vadd.f32 0.0, %v5250
    %v5252 = vpop.f32.mrb[0].mxu0
    %v5253 = vadd.f32 0.0, %v5252
    %v5254 = vpop.f32.mrb[0].mxu0
    %v5255 = vadd.f32 0.0, %v5254
    %v5256 = vpop.f32.mrb[0].mxu0
    %v5257 = vadd.f32 0.0, %v5256
    %5258 = vmatprep.mubr.bf16.mxu0 0
    %5259 = vmatmul.mubr.bf16.gmra.mrb[0].mxu0 %v1899
    %v5260 = vpop.f32.mrb[0].mxu0
    %v5261 = vadd.f32 0.0, %v5260
    %v5262 = vpop.f32.mrb[0].mxu0
    %v5263 = vadd.f32 0.0, %v5262
    %v5264 = vpop.f32.mrb[0].mxu0
    %v5265 = vadd.f32 0.0, %v5264
    %v5266 = vpop.f32.mrb[0].mxu0
    %v5267 = vadd.f32 0.0, %v5266
    %5268 = vmatprep.mubr.bf16.mxu0 0
    %5269 = vmatmul.mubr.bf16.gmra.mrb[0].mxu0 %v1902
    %v5270 = vpop.f32.mrb[0].mxu0
    %v5271 = vadd.f32 0.0, %v5270
    %v5272 = vpop.f32.mrb[0].mxu0
    %v5273 = vadd.f32 0.0, %v5272
    %v5274 = vpop.f32.mrb[0].mxu0
    %v5275 = vadd.f32 0.0, %v5274
    %v5276 = vpop.f32.mrb[0].mxu0
    %v5277 = vadd.f32 0.0, %v5276
    %5278 = vmatprep.mubr.bf16.mxu0 0
    %5279 = vmatmul.mubr.bf16.gmra.mrb[0].mxu0 %v1905
    %v5280 = vpop.f32.mrb[0].mxu0
    %v5281 = vadd.f32 0.0, %v5280
    %v5282 = vpop.f32.mrb[0].mxu0
    %v5283 = vadd.f32 0.0, %v5282
    %v5284 = vpop.f32.mrb[0].mxu0
    %v5285 = vadd.f32 0.0, %v5284
    %v5286 = vpop.f32.mrb[0].mxu0
    %v5287 = vadd.f32 0.0, %v5286
    %5288 = vmatprep.mubr.bf16.mxu0 0
    %5289 = vmatmul.mubr.bf16.gmra.mrb[0].mxu0 %v1908
    %v5290 = vpop.f32.mrb[0].mxu0
    %v5291 = vadd.f32 0.0, %v5290
    %v5292 = vpop.f32.mrb[0].mxu0
    %v5293 = vadd.f32 0.0, %v5292
    %v5294 = vpop.f32.mrb[0].mxu0
    %v5295 = vadd.f32 0.0, %v5294
    %v5296 = vpop.f32.mrb[0].mxu0
    %v5297 = vadd.f32 0.0, %v5296
    %5298 = vmatprep.mubr.bf16.mxu0 0
    %5299 = vmatmul.mubr.bf16.gmra.mrb[0].mxu0 %v1911
    %v5300 = vpop.f32.mrb[0].mxu0
    %v5301 = vadd.f32 0.0, %v5300
    %v5302 = vpop.f32.mrb[0].mxu0
    %v5303 = vadd.f32 0.0, %v5302
    %v5304 = vpop.f32.mrb[0].mxu0
    %v5305 = vadd.f32 0.0, %v5304
    %v5306 = vpop.f32.mrb[0].mxu0
    %v5307 = vadd.f32 0.0, %v5306
    %5308 = vmatprep.mubr.bf16.mxu0 0
    %5309 = vmatmul.mubr.bf16.gmra.mrb[0].mxu0 %v1914
    %v5310 = vpop.f32.mrb[0].mxu0
    %v5311 = vadd.f32 0.0, %v5310
    %v5312 = vpop.f32.mrb[0].mxu0
    %v5313 = vadd.f32 0.0, %v5312
    %v5314 = vpop.f32.mrb[0].mxu0
    %v5315 = vadd.f32 0.0, %v5314
    %v5316 = vpop.f32.mrb[0].mxu0
    %v5317 = vadd.f32 0.0, %v5316
    %5318 = vmatprep.mubr.bf16.mxu0 0
    %5319 = vmatmul.mubr.bf16.gmra.mrb[0].mxu0 %v1917
    %v5320 = vpop.f32.mrb[0].mxu0
    %v5321 = vadd.f32 0.0, %v5320
    %v5322 = vpop.f32.mrb[0].mxu0
    %v5323 = vadd.f32 0.0, %v5322
    %v5324 = vpop.f32.mrb[0].mxu0
    %v5325 = vadd.f32 0.0, %v5324
    %v5326 = vpop.f32.mrb[0].mxu0
    %v5327 = vadd.f32 0.0, %v5326
    %5328 = vmatprep.mubr.bf16.mxu0 0
    %5329 = vmatmul.mubr.bf16.gmra.mrb[0].mxu0 %v1920
    %v5330 = vpop.f32.mrb[0].mxu0
    %v5331 = vadd.f32 0.0, %v5330
    %v5332 = vpop.f32.mrb[0].mxu0
    %v5333 = vadd.f32 0.0, %v5332
    %v5334 = vpop.f32.mrb[0].mxu0
    %v5335 = vadd.f32 0.0, %v5334
    %v5336 = vpop.f32.mrb[0].mxu0
    %v5337 = vadd.f32 0.0, %v5336
    %5338 = vmatprep.mubr.bf16.mxu0 0
    %5339 = vmatmul.mubr.bf16.gmra.mrb[0].mxu0 %v1923
    %v5340 = vpop.f32.mrb[0].mxu0
    %v5341 = vadd.f32 0.0, %v5340
    %v5342 = vpop.f32.mrb[0].mxu0
    %v5343 = vadd.f32 0.0, %v5342
    %v5344 = vpop.f32.mrb[0].mxu0
    %v5345 = vadd.f32 0.0, %v5344
    %v5346 = vpop.f32.mrb[0].mxu0
    %v5347 = vadd.f32 0.0, %v5346
    %5348 = vmatprep.mubr.bf16.mxu0 0
    %5349 = vmatmul.mubr.bf16.gmra.mrb[0].mxu0 %v1926
    %v5350 = vpop.f32.mrb[0].mxu0
    %v5351 = vadd.f32 0.0, %v5350
    %v5352 = vpop.f32.mrb[0].mxu0
    %v5353 = vadd.f32 0.0, %v5352
    %v5354 = vpop.f32.mrb[0].mxu0
    %v5355 = vadd.f32 0.0, %v5354
    %v5356 = vpop.f32.mrb[0].mxu0
    %v5357 = vadd.f32 0.0, %v5356
    %5358 = vmatprep.mubr.bf16.mxu0 0
    %5359 = vmatmul.mubr.bf16.gmra.mrb[0].mxu0 %v3472
    %v5360 = vpop.f32.mrb[0].mxu0
    %v5361 = vadd.f32 0.0, %v5360
    %v5362 = vpop.f32.mrb[0].mxu0
    %v5363 = vadd.f32 0.0, %v5362
    %v5364 = vpop.f32.mrb[0].mxu0
    %v5365 = vadd.f32 0.0, %v5364
    %v5366 = vpop.f32.mrb[0].mxu0
    %v5367 = vadd.f32 0.0, %v5366
    %5368 = vmatprep.mubr.bf16.mxu0 0
    %5369 = vmatmul.mubr.bf16.gmra.mrb[0].mxu0 %v5018
    %v5370 = vpop.f32.mrb[0].mxu0
    %v5371 = vadd.f32 0.0, %v5370
    %v5372 = vpop.f32.mrb[0].mxu0
    %v5373 = vadd.f32 0.0, %v5372
    %v5374 = vpop.f32.mrb[0].mxu0
    %v5375 = vadd.f32 0.0, %v5374
    %v5376 = vpop.f32.mrb[0].mxu0
    %v5377 = vadd.f32 0.0, %v5376
    %5378 = vdwg.mxu0
    %v5379 = vadd.f32 %v4861, %v5061
    %v5380 = vadd.f32 %v4862, %v5063
    %v5381 = vadd.f32 %v4863, %v5065
    %v5382 = vadd.f32 %v4864, %v5067
    %v5383 = vadd.f32 %v4865, %v5071
    %v5384 = vadd.f32 %v4866, %v5073
    %v5385 = vadd.f32 %v4867, %v5075
    %v5386 = vadd.f32 %v4868, %v5077
    %v5387 = vadd.f32 %v4869, %v5081
    %v5388 = vadd.f32 %v4870, %v5083
    %v5389 = vadd.f32 %v4871, %v5085
    %v5390 = vadd.f32 %v4872, %v5087
    %v5391 = vadd.f32 %v4873, %v5091
    %v5392 = vadd.f32 %v4874, %v5093
    %v5393 = vadd.f32 %v4875, %v5095
    %v5394 = vadd.f32 %v4876, %v5097
    %v5395 = vadd.f32 %v4877, %v5101
    %v5396 = vadd.f32 %v4878, %v5103
    %v5397 = vadd.f32 %v4879, %v5105
    %v5398 = vadd.f32 %v4880, %v5107
    %v5399 = vadd.f32 %v4881, %v5111
    %v5400 = vadd.f32 %v4882, %v5113
    %v5401 = vadd.f32 %v4883, %v5115
    %v5402 = vadd.f32 %v4884, %v5117
    %v5403 = vadd.f32 %v4885, %v5121
    %v5404 = vadd.f32 %v4886, %v5123
    %v5405 = vadd.f32 %v4887, %v5125
    %v5406 = vadd.f32 %v4888, %v5127
    %v5407 = vadd.f32 %v4889, %v5131
    %v5408 = vadd.f32 %v4890, %v5133
    %v5409 = vadd.f32 %v4891, %v5135
    %v5410 = vadd.f32 %v4892, %v5137
    %v5411 = vadd.f32 %v4893, %v5141
    %v5412 = vadd.f32 %v4894, %v5143
    %v5413 = vadd.f32 %v4895, %v5145
    %v5414 = vadd.f32 %v4896, %v5147
    %v5415 = vadd.f32 %v4897, %v5151
    %v5416 = vadd.f32 %v4898, %v5153
    %v5417 = vadd.f32 %v4899, %v5155
    %v5418 = vadd.f32 %v4900, %v5157
    %v5419 = vadd.f32 %v4901, %v5161
    %v5420 = vadd.f32 %v4902, %v5163
    %v5421 = vadd.f32 %v4903, %v5165
    %v5422 = vadd.f32 %v4904, %v5167
    %v5423 = vadd.f32 %v4905, %v5171
    %v5424 = vadd.f32 %v4906, %v5173
    %v5425 = vadd.f32 %v4907, %v5175
    %v5426 = vadd.f32 %v4908, %v5177
    %v5427 = vadd.f32 %v4909, %v5181
    %v5428 = vadd.f32 %v4910, %v5183
    %v5429 = vadd.f32 %v4911, %v5185
    %v5430 = vadd.f32 %v4912, %v5187
    %v5431 = vadd.f32 %v4913, %v5191
    %v5432 = vadd.f32 %v4914, %v5193
    %v5433 = vadd.f32 %v4915, %v5195
    %v5434 = vadd.f32 %v4916, %v5197
    %v5435 = vadd.f32 %v4917, %v5201
    %v5436 = vadd.f32 %v4918, %v5203
    %v5437 = vadd.f32 %v4919, %v5205
    %v5438 = vadd.f32 %v4920, %v5207
    %v5439 = vadd.f32 %v4921, %v5211
    %v5440 = vadd.f32 %v4922, %v5213
    %v5441 = vadd.f32 %v4923, %v5215
    %v5442 = vadd.f32 %v4924, %v5217
    %v5443 = vadd.f32 %v4925, %v5221
    %v5444 = vadd.f32 %v4926, %v5223
    %v5445 = vadd.f32 %v4927, %v5225
    %v5446 = vadd.f32 %v4928, %v5227
    %v5447 = vadd.f32 %v4929, %v5231
    %v5448 = vadd.f32 %v4930, %v5233
    %v5449 = vadd.f32 %v4931, %v5235
    %v5450 = vadd.f32 %v4932, %v5237
    %v5451 = vadd.f32 %v4933, %v5241
    %v5452 = vadd.f32 %v4934, %v5243
    %v5453 = vadd.f32 %v4935, %v5245
    %v5454 = vadd.f32 %v4936, %v5247
    %v5455 = vadd.f32 %v4937, %v5251
    %v5456 = vadd.f32 %v4938, %v5253
    %v5457 = vadd.f32 %v4939, %v5255
    %v5458 = vadd.f32 %v4940, %v5257
    %v5459 = vadd.f32 %v4941, %v5261
    %v5460 = vadd.f32 %v4942, %v5263
    %v5461 = vadd.f32 %v4943, %v5265
    %v5462 = vadd.f32 %v4944, %v5267
    %v5463 = vadd.f32 %v4945, %v5271
    %v5464 = vadd.f32 %v4946, %v5273
    %v5465 = vadd.f32 %v4947, %v5275
    %v5466 = vadd.f32 %v4948, %v5277
    %v5467 = vadd.f32 %v4949, %v5281
    %v5468 = vadd.f32 %v4950, %v5283
    %v5469 = vadd.f32 %v4951, %v5285
    %v5470 = vadd.f32 %v4952, %v5287
    %v5471 = vadd.f32 %v4953, %v5291
    %v5472 = vadd.f32 %v4954, %v5293
    %v5473 = vadd.f32 %v4955, %v5295
    %v5474 = vadd.f32 %v4956, %v5297
    %v5475 = vadd.f32 %v4957, %v5301
    %v5476 = vadd.f32 %v4958, %v5303
    %v5477 = vadd.f32 %v4959, %v5305
    %v5478 = vadd.f32 %v4960, %v5307
    %v5479 = vadd.f32 %v4961, %v5311
    %v5480 = vadd.f32 %v4962, %v5313
    %v5481 = vadd.f32 %v4963, %v5315
    %v5482 = vadd.f32 %v4964, %v5317
    %v5483 = vadd.f32 %v4965, %v5321
    %v5484 = vadd.f32 %v4966, %v5323
    %v5485 = vadd.f32 %v4967, %v5325
    %v5486 = vadd.f32 %v4968, %v5327
    %v5487 = vadd.f32 %v4969, %v5331
    %v5488 = vadd.f32 %v4970, %v5333
    %v5489 = vadd.f32 %v4971, %v5335
    %v5490 = vadd.f32 %v4972, %v5337
    %v5491 = vadd.f32 %v4973, %v5341
    %v5492 = vadd.f32 %v4974, %v5343
    %v5493 = vadd.f32 %v4975, %v5345
    %v5494 = vadd.f32 %v4976, %v5347
    %v5495 = vadd.f32 %v4977, %v5351
    %v5496 = vadd.f32 %v4978, %v5353
    %v5497 = vadd.f32 %v4979, %v5355
    %v5498 = vadd.f32 %v4980, %v5357
    %v5499 = vadd.f32 %v4981, %v5361
    %v5500 = vadd.f32 %v4982, %v5363
    %v5501 = vadd.f32 %v4983, %v5365
    %v5502 = vadd.f32 %v4984, %v5367
    %v5503 = vadd.f32 %v4985, %v5371
    %v5504 = vadd.f32 %v4986, %v5373
    %v5505 = vadd.f32 %v4987, %v5375
    %v5506 = vadd.f32 %v4988, %v5377
    %v5507 = vld [vmem:[%s2] sm:$0x3]
    %v5509 = vlaneseq
    %v5510 = vshrl.u32 %v5509, 7
    %v5511 = vsub.s32 0, %v5510
    %v5512 = vrot.slane %v5507, %v5511
    %v5513 = vlaneseq
    %v5514 = vshrl.u32 %v5513, 7
    %v5515 = vsub.s32 1, %v5514
    %v5516 = vrot.slane %v5507, %v5515
    %v5519 = vadd.f32 %v5379, %v5512
    %v5520 = vadd.f32 %v5380, %v5516
    %v5521 = vadd.f32 %v5381, %v5512
    %v5522 = vadd.f32 %v5382, %v5516
    %v5523 = vadd.f32 %v5383, %v5512
    %v5524 = vadd.f32 %v5384, %v5516
    %v5525 = vadd.f32 %v5385, %v5512
    %v5526 = vadd.f32 %v5386, %v5516
    %v5527 = vadd.f32 %v5387, %v5512
    %v5528 = vadd.f32 %v5388, %v5516
    %v5529 = vadd.f32 %v5389, %v5512
    %v5530 = vadd.f32 %v5390, %v5516
    %v5531 = vadd.f32 %v5391, %v5512
    %v5532 = vadd.f32 %v5392, %v5516
    %v5533 = vadd.f32 %v5393, %v5512
    %v5534 = vadd.f32 %v5394, %v5516
    %v5535 = vadd.f32 %v5395, %v5512
    %v5536 = vadd.f32 %v5396, %v5516
    %v5537 = vadd.f32 %v5397, %v5512
    %v5538 = vadd.f32 %v5398, %v5516
    %v5539 = vadd.f32 %v5399, %v5512
    %v5540 = vadd.f32 %v5400, %v5516
    %v5541 = vadd.f32 %v5401, %v5512
    %v5542 = vadd.f32 %v5402, %v5516
    %v5543 = vadd.f32 %v5403, %v5512
    %v5544 = vadd.f32 %v5404, %v5516
    %v5545 = vadd.f32 %v5405, %v5512
    %v5546 = vadd.f32 %v5406, %v5516
    %v5547 = vadd.f32 %v5407, %v5512
    %v5548 = vadd.f32 %v5408, %v5516
    %v5549 = vadd.f32 %v5409, %v5512
    %v5550 = vadd.f32 %v5410, %v5516
    %v5551 = vadd.f32 %v5411, %v5512
    %v5552 = vadd.f32 %v5412, %v5516
    %v5553 = vadd.f32 %v5413, %v5512
    %v5554 = vadd.f32 %v5414, %v5516
    %v5555 = vadd.f32 %v5415, %v5512
    %v5556 = vadd.f32 %v5416, %v5516
    %v5557 = vadd.f32 %v5417, %v5512
    %v5558 = vadd.f32 %v5418, %v5516
    %v5559 = vadd.f32 %v5419, %v5512
    %v5560 = vadd.f32 %v5420, %v5516
    %v5561 = vadd.f32 %v5421, %v5512
    %v5562 = vadd.f32 %v5422, %v5516
    %v5563 = vadd.f32 %v5423, %v5512
    %v5564 = vadd.f32 %v5424, %v5516
    %v5565 = vadd.f32 %v5425, %v5512
    %v5566 = vadd.f32 %v5426, %v5516
    %v5567 = vadd.f32 %v5427, %v5512
    %v5568 = vadd.f32 %v5428, %v5516
    %v5569 = vadd.f32 %v5429, %v5512
    %v5570 = vadd.f32 %v5430, %v5516
    %v5571 = vadd.f32 %v5431, %v5512
    %v5572 = vadd.f32 %v5432, %v5516
    %v5573 = vadd.f32 %v5433, %v5512
    %v5574 = vadd.f32 %v5434, %v5516
    %v5575 = vadd.f32 %v5435, %v5512
    %v5576 = vadd.f32 %v5436, %v5516
    %v5577 = vadd.f32 %v5437, %v5512
    %v5578 = vadd.f32 %v5438, %v5516
    %v5579 = vadd.f32 %v5439, %v5512
    %v5580 = vadd.f32 %v5440, %v5516
    %v5581 = vadd.f32 %v5441, %v5512
    %v5582 = vadd.f32 %v5442, %v5516
    %v5583 = vadd.f32 %v5443, %v5512
    %v5584 = vadd.f32 %v5444, %v5516
    %v5585 = vadd.f32 %v5445, %v5512
    %v5586 = vadd.f32 %v5446, %v5516
    %v5587 = vadd.f32 %v5447, %v5512
    %v5588 = vadd.f32 %v5448, %v5516
    %v5589 = vadd.f32 %v5449, %v5512
    %v5590 = vadd.f32 %v5450, %v5516
    %v5591 = vadd.f32 %v5451, %v5512
    %v5592 = vadd.f32 %v5452, %v5516
    %v5593 = vadd.f32 %v5453, %v5512
    %v5594 = vadd.f32 %v5454, %v5516
    %v5595 = vadd.f32 %v5455, %v5512
    %v5596 = vadd.f32 %v5456, %v5516
    %v5597 = vadd.f32 %v5457, %v5512
    %v5598 = vadd.f32 %v5458, %v5516
    %v5599 = vadd.f32 %v5459, %v5512
    %v5600 = vadd.f32 %v5460, %v5516
    %v5601 = vadd.f32 %v5461, %v5512
    %v5602 = vadd.f32 %v5462, %v5516
    %v5603 = vadd.f32 %v5463, %v5512
    %v5604 = vadd.f32 %v5464, %v5516
    %v5605 = vadd.f32 %v5465, %v5512
    %v5606 = vadd.f32 %v5466, %v5516
    %v5607 = vadd.f32 %v5467, %v5512
    %v5608 = vadd.f32 %v5468, %v5516
    %v5609 = vadd.f32 %v5469, %v5512
    %v5610 = vadd.f32 %v5470, %v5516
    %v5611 = vadd.f32 %v5471, %v5512
    %v5612 = vadd.f32 %v5472, %v5516
    %v5613 = vadd.f32 %v5473, %v5512
    %v5614 = vadd.f32 %v5474, %v5516
    %v5615 = vadd.f32 %v5475, %v5512
    %v5616 = vadd.f32 %v5476, %v5516
    %v5617 = vadd.f32 %v5477, %v5512
    %v5618 = vadd.f32 %v5478, %v5516
    %v5619 = vadd.f32 %v5479, %v5512
    %v5620 = vadd.f32 %v5480, %v5516
    %v5621 = vadd.f32 %v5481, %v5512
    %v5622 = vadd.f32 %v5482, %v5516
    %v5623 = vadd.f32 %v5483, %v5512
    %v5624 = vadd.f32 %v5484, %v5516
    %v5625 = vadd.f32 %v5485, %v5512
    %v5626 = vadd.f32 %v5486, %v5516
    %v5627 = vadd.f32 %v5487, %v5512
    %v5628 = vadd.f32 %v5488, %v5516
    %v5629 = vadd.f32 %v5489, %v5512
    %v5630 = vadd.f32 %v5490, %v5516
    %v5631 = vadd.f32 %v5491, %v5512
    %v5632 = vadd.f32 %v5492, %v5516
    %v5633 = vadd.f32 %v5493, %v5512
    %v5634 = vadd.f32 %v5494, %v5516
    %v5635 = vadd.f32 %v5495, %v5512
    %v5636 = vadd.f32 %v5496, %v5516
    %v5637 = vadd.f32 %v5497, %v5512
    %v5638 = vadd.f32 %v5498, %v5516
    %v5639 = vadd.f32 %v5499, %v5512
    %v5640 = vadd.f32 %v5500, %v5516
    %v5641 = vadd.f32 %v5501, %v5512
    %v5642 = vadd.f32 %v5502, %v5516
    %v5643 = vadd.f32 %v5503, %v5512
    %v5644 = vadd.f32 %v5504, %v5516
    %v5645 = vadd.f32 %v5505, %v5512
    %v5646 = vadd.f32 %v5506, %v5516
    %v5647 = vmax.f32 %v5519, 0.0
    %v5648 = vmax.f32 %v5520, 0.0
    %v5649 = vmax.f32 %v5521, 0.0
    %v5650 = vmax.f32 %v5522, 0.0
    %v5651 = vmax.f32 %v5523, 0.0
    %v5652 = vmax.f32 %v5524, 0.0
    %v5653 = vmax.f32 %v5525, 0.0
    %v5654 = vmax.f32 %v5526, 0.0
    %v5655 = vmax.f32 %v5527, 0.0
    %v5656 = vmax.f32 %v5528, 0.0
    %v5657 = vmax.f32 %v5529, 0.0
    %v5658 = vmax.f32 %v5530, 0.0
    %v5659 = vmax.f32 %v5531, 0.0
    %v5660 = vmax.f32 %v5532, 0.0
    %v5661 = vmax.f32 %v5533, 0.0
    %v5662 = vmax.f32 %v5534, 0.0
    %v5663 = vmax.f32 %v5535, 0.0
    %v5664 = vmax.f32 %v5536, 0.0
    %v5665 = vmax.f32 %v5537, 0.0
    %v5666 = vmax.f32 %v5538, 0.0
    %v5667 = vmax.f32 %v5539, 0.0
    %v5668 = vmax.f32 %v5540, 0.0
    %v5669 = vmax.f32 %v5541, 0.0
    %v5670 = vmax.f32 %v5542, 0.0
    %v5671 = vmax.f32 %v5543, 0.0
    %v5672 = vmax.f32 %v5544, 0.0
    %v5673 = vmax.f32 %v5545, 0.0
    %v5674 = vmax.f32 %v5546, 0.0
    %v5675 = vmax.f32 %v5547, 0.0
    %v5676 = vmax.f32 %v5548, 0.0
    %v5677 = vmax.f32 %v5549, 0.0
    %v5678 = vmax.f32 %v5550, 0.0
    %v5679 = vmax.f32 %v5551, 0.0
    %v5680 = vmax.f32 %v5552, 0.0
    %v5681 = vmax.f32 %v5553, 0.0
    %v5682 = vmax.f32 %v5554, 0.0
    %v5683 = vmax.f32 %v5555, 0.0
    %v5684 = vmax.f32 %v5556, 0.0
    %v5685 = vmax.f32 %v5557, 0.0
    %v5686 = vmax.f32 %v5558, 0.0
    %v5687 = vmax.f32 %v5559, 0.0
    %v5688 = vmax.f32 %v5560, 0.0
    %v5689 = vmax.f32 %v5561, 0.0
    %v5690 = vmax.f32 %v5562, 0.0
    %v5691 = vmax.f32 %v5563, 0.0
    %v5692 = vmax.f32 %v5564, 0.0
    %v5693 = vmax.f32 %v5565, 0.0
    %v5694 = vmax.f32 %v5566, 0.0
    %v5695 = vmax.f32 %v5567, 0.0
    %v5696 = vmax.f32 %v5568, 0.0
    %v5697 = vmax.f32 %v5569, 0.0
    %v5698 = vmax.f32 %v5570, 0.0
    %v5699 = vmax.f32 %v5571, 0.0
    %v5700 = vmax.f32 %v5572, 0.0
    %v5701 = vmax.f32 %v5573, 0.0
    %v5702 = vmax.f32 %v5574, 0.0
    %v5703 = vmax.f32 %v5575, 0.0
    %v5704 = vmax.f32 %v5576, 0.0
    %v5705 = vmax.f32 %v5577, 0.0
    %v5706 = vmax.f32 %v5578, 0.0
    %v5707 = vmax.f32 %v5579, 0.0
    %v5708 = vmax.f32 %v5580, 0.0
    %v5709 = vmax.f32 %v5581, 0.0
    %v5710 = vmax.f32 %v5582, 0.0
    %v5711 = vmax.f32 %v5583, 0.0
    %v5712 = vmax.f32 %v5584, 0.0
    %v5713 = vmax.f32 %v5585, 0.0
    %v5714 = vmax.f32 %v5586, 0.0
    %v5715 = vmax.f32 %v5587, 0.0
    %v5716 = vmax.f32 %v5588, 0.0
    %v5717 = vmax.f32 %v5589, 0.0
    %v5718 = vmax.f32 %v5590, 0.0
    %v5719 = vmax.f32 %v5591, 0.0
    %v5720 = vmax.f32 %v5592, 0.0
    %v5721 = vmax.f32 %v5593, 0.0
    %v5722 = vmax.f32 %v5594, 0.0
    %v5723 = vmax.f32 %v5595, 0.0
    %v5724 = vmax.f32 %v5596, 0.0
    %v5725 = vmax.f32 %v5597, 0.0
    %v5726 = vmax.f32 %v5598, 0.0
    %v5727 = vmax.f32 %v5599, 0.0
    %v5728 = vmax.f32 %v5600, 0.0
    %v5729 = vmax.f32 %v5601, 0.0
    %v5730 = vmax.f32 %v5602, 0.0
    %v5731 = vmax.f32 %v5603, 0.0
    %v5732 = vmax.f32 %v5604, 0.0
    %v5733 = vmax.f32 %v5605, 0.0
    %v5734 = vmax.f32 %v5606, 0.0
    %v5735 = vmax.f32 %v5607, 0.0
    %v5736 = vmax.f32 %v5608, 0.0
    %v5737 = vmax.f32 %v5609, 0.0
    %v5738 = vmax.f32 %v5610, 0.0
    %v5739 = vmax.f32 %v5611, 0.0
    %v5740 = vmax.f32 %v5612, 0.0
    %v5741 = vmax.f32 %v5613, 0.0
    %v5742 = vmax.f32 %v5614, 0.0
    %v5743 = vmax.f32 %v5615, 0.0
    %v5744 = vmax.f32 %v5616, 0.0
    %v5745 = vmax.f32 %v5617, 0.0
    %v5746 = vmax.f32 %v5618, 0.0
    %v5747 = vmax.f32 %v5619, 0.0
    %v5748 = vmax.f32 %v5620, 0.0
    %v5749 = vmax.f32 %v5621, 0.0
    %v5750 = vmax.f32 %v5622, 0.0
    %v5751 = vmax.f32 %v5623, 0.0
    %v5752 = vmax.f32 %v5624, 0.0
    %v5753 = vmax.f32 %v5625, 0.0
    %v5754 = vmax.f32 %v5626, 0.0
    %v5755 = vmax.f32 %v5627, 0.0
    %v5756 = vmax.f32 %v5628, 0.0
    %v5757 = vmax.f32 %v5629, 0.0
    %v5758 = vmax.f32 %v5630, 0.0
    %v5759 = vmax.f32 %v5631, 0.0
    %v5760 = vmax.f32 %v5632, 0.0
    %v5761 = vmax.f32 %v5633, 0.0
    %v5762 = vmax.f32 %v5634, 0.0
    %v5763 = vmax.f32 %v5635, 0.0
    %v5764 = vmax.f32 %v5636, 0.0
    %v5765 = vmax.f32 %v5637, 0.0
    %v5766 = vmax.f32 %v5638, 0.0
    %v5767 = vmax.f32 %v5639, 0.0
    %v5768 = vmax.f32 %v5640, 0.0
    %v5769 = vmax.f32 %v5641, 0.0
    %v5770 = vmax.f32 %v5642, 0.0
    %v5771 = vmax.f32 %v5643, 0.0
    %v5772 = vmax.f32 %v5644, 0.0
    %v5773 = vmax.f32 %v5645, 0.0
    %v5774 = vmax.f32 %v5646, 0.0
    %v5775 = vadd.f32 %v5647, %v5649
    %v5776 = vadd.f32 %v5775, %v5651
    %v5777 = vadd.f32 %v5776, %v5653
    %v5778 = vadd.f32 %v5777, %v5655
    %v5779 = vadd.f32 %v5778, %v5657
    %v5780 = vadd.f32 %v5779, %v5659
    %v5781 = vadd.f32 %v5780, %v5661
    %v5782 = vadd.f32 %v5781, %v5663
    %v5783 = vadd.f32 %v5782, %v5665
    %v5784 = vadd.f32 %v5783, %v5667
    %v5785 = vadd.f32 %v5784, %v5669
    %v5786 = vadd.f32 %v5785, %v5671
    %v5787 = vadd.f32 %v5786, %v5673
    %v5788 = vadd.f32 %v5787, %v5675
    %v5789 = vadd.f32 %v5788, %v5677
    %v5790 = vadd.f32 %v5789, %v5679
    %v5791 = vadd.f32 %v5790, %v5681
    %v5792 = vadd.f32 %v5791, %v5683
    %v5793 = vadd.f32 %v5792, %v5685
    %v5794 = vadd.f32 %v5793, %v5687
    %v5795 = vadd.f32 %v5794, %v5689
    %v5796 = vadd.f32 %v5795, %v5691
    %v5797 = vadd.f32 %v5796, %v5693
    %v5798 = vadd.f32 %v5797, %v5695
    %v5799 = vadd.f32 %v5798, %v5697
    %v5800 = vadd.f32 %v5799, %v5699
    %v5801 = vadd.f32 %v5800, %v5701
    %v5802 = vadd.f32 %v5801, %v5703
    %v5803 = vadd.f32 %v5802, %v5705
    %v5804 = vadd.f32 %v5803, %v5707
    %v5805 = vadd.f32 %v5804, %v5709
    %v5806 = vrot.slane %v5805, 4
    %v5807 = vadd.f32 %v5805, %v5806
    %v5808 = vrot.slane %v5807, 2
    %v5809 = vadd.f32 %v5807, %v5808
    %v5810 = vrot.slane %v5809, 1
    %v5811 = vadd.f32 %v5809, %v5810
    %v5812 = vadd.f32 %v5648, %v5650
    %v5813 = vadd.f32 %v5812, %v5652
    %v5814 = vadd.f32 %v5813, %v5654
    %v5815 = vadd.f32 %v5814, %v5656
    %v5816 = vadd.f32 %v5815, %v5658
    %v5817 = vadd.f32 %v5816, %v5660
    %v5818 = vadd.f32 %v5817, %v5662
    %v5819 = vadd.f32 %v5818, %v5664
    %v5820 = vadd.f32 %v5819, %v5666
    %v5821 = vadd.f32 %v5820, %v5668
    %v5822 = vadd.f32 %v5821, %v5670
    %v5823 = vadd.f32 %v5822, %v5672
    %v5824 = vadd.f32 %v5823, %v5674
    %v5825 = vadd.f32 %v5824, %v5676
    %v5826 = vadd.f32 %v5825, %v5678
    %v5827 = vadd.f32 %v5826, %v5680
    %v5828 = vadd.f32 %v5827, %v5682
    %v5829 = vadd.f32 %v5828, %v5684
    %v5830 = vadd.f32 %v5829, %v5686
    %v5831 = vadd.f32 %v5830, %v5688
    %v5832 = vadd.f32 %v5831, %v5690
    %v5833 = vadd.f32 %v5832, %v5692
    %v5834 = vadd.f32 %v5833, %v5694
    %v5835 = vadd.f32 %v5834, %v5696
    %v5836 = vadd.f32 %v5835, %v5698
    %v5837 = vadd.f32 %v5836, %v5700
    %v5838 = vadd.f32 %v5837, %v5702
    %v5839 = vadd.f32 %v5838, %v5704
    %v5840 = vadd.f32 %v5839, %v5706
    %v5841 = vadd.f32 %v5840, %v5708
    %v5842 = vadd.f32 %v5841, %v5710
    %v5843 = vrot.slane %v5842, 4
    %v5844 = vadd.f32 %v5842, %v5843
    %v5845 = vrot.slane %v5844, 2
    %v5846 = vadd.f32 %v5844, %v5845
    %v5847 = vrot.slane %v5846, 1
    %v5848 = vadd.f32 %v5846, %v5847
    %v5849 = vadd.f32 %v5711, %v5713
    %v5850 = vadd.f32 %v5849, %v5715
    %v5851 = vadd.f32 %v5850, %v5717
    %v5852 = vadd.f32 %v5851, %v5719
    %v5853 = vadd.f32 %v5852, %v5721
    %v5854 = vadd.f32 %v5853, %v5723
    %v5855 = vadd.f32 %v5854, %v5725
    %v5856 = vadd.f32 %v5855, %v5727
    %v5857 = vadd.f32 %v5856, %v5729
    %v5858 = vadd.f32 %v5857, %v5731
    %v5859 = vadd.f32 %v5858, %v5733
    %v5860 = vadd.f32 %v5859, %v5735
    %v5861 = vadd.f32 %v5860, %v5737
    %v5862 = vadd.f32 %v5861, %v5739
    %v5863 = vadd.f32 %v5862, %v5741
    %v5864 = vadd.f32 %v5863, %v5743
    %v5865 = vadd.f32 %v5864, %v5745
    %v5866 = vadd.f32 %v5865, %v5747
    %v5867 = vadd.f32 %v5866, %v5749
    %v5868 = vadd.f32 %v5867, %v5751
    %v5869 = vadd.f32 %v5868, %v5753
    %v5870 = vadd.f32 %v5869, %v5755
    %v5871 = vadd.f32 %v5870, %v5757
    %v5872 = vadd.f32 %v5871, %v5759
    %v5873 = vadd.f32 %v5872, %v5761
    %v5874 = vadd.f32 %v5873, %v5763
    %v5875 = vadd.f32 %v5874, %v5765
    %v5876 = vadd.f32 %v5875, %v5767
    %v5877 = vadd.f32 %v5876, %v5769
    %v5878 = vadd.f32 %v5877, %v5771
    %v5879 = vadd.f32 %v5878, %v5773
    %v5880 = vrot.slane %v5879, 4
    %v5881 = vadd.f32 %v5879, %v5880
    %v5882 = vrot.slane %v5881, 2
    %v5883 = vadd.f32 %v5881, %v5882
    %v5884 = vrot.slane %v5883, 1
    %v5885 = vadd.f32 %v5883, %v5884
    %v5886 = vadd.f32 %v5712, %v5714
    %v5887 = vadd.f32 %v5886, %v5716
    %v5888 = vadd.f32 %v5887, %v5718
    %v5889 = vadd.f32 %v5888, %v5720
    %v5890 = vadd.f32 %v5889, %v5722
    %v5891 = vadd.f32 %v5890, %v5724
    %v5892 = vadd.f32 %v5891, %v5726
    %v5893 = vadd.f32 %v5892, %v5728
    %v5894 = vadd.f32 %v5893, %v5730
    %v5895 = vadd.f32 %v5894, %v5732
    %v5896 = vadd.f32 %v5895, %v5734
    %v5897 = vadd.f32 %v5896, %v5736
    %v5898 = vadd.f32 %v5897, %v5738
    %v5899 = vadd.f32 %v5898, %v5740
    %v5900 = vadd.f32 %v5899, %v5742
    %v5901 = vadd.f32 %v5900, %v5744
    %v5902 = vadd.f32 %v5901, %v5746
    %v5903 = vadd.f32 %v5902, %v5748
    %v5904 = vadd.f32 %v5903, %v5750
    %v5905 = vadd.f32 %v5904, %v5752
    %v5906 = vadd.f32 %v5905, %v5754
    %v5907 = vadd.f32 %v5906, %v5756
    %v5908 = vadd.f32 %v5907, %v5758
    %v5909 = vadd.f32 %v5908, %v5760
    %v5910 = vadd.f32 %v5909, %v5762
    %v5911 = vadd.f32 %v5910, %v5764
    %v5912 = vadd.f32 %v5911, %v5766
    %v5913 = vadd.f32 %v5912, %v5768
    %v5914 = vadd.f32 %v5913, %v5770
    %v5915 = vadd.f32 %v5914, %v5772
    %v5916 = vadd.f32 %v5915, %v5774
    %v5917 = vrot.slane %v5916, 4
    %v5918 = vadd.f32 %v5916, %v5917
    %v5919 = vrot.slane %v5918, 2
    %v5920 = vadd.f32 %v5918, %v5919
    %v5921 = vrot.slane %v5920, 1
    %v5922 = vadd.f32 %v5920, %v5921
    %v5923 = vmul.f32 %v5811, 0.00390625
    %v5924 = vmul.f32 %v5848, 0.00390625
    %v5925 = vmul.f32 %v5885, 0.00390625
    %v5926 = vmul.f32 %v5922, 0.00390625
    %v5927 = vpack.c.bf16 %v5923, %v5923
    %v5928 = vpack.c.bf16 %v5924, %v5924
    %v5929 = vpack.c.bf16 %v5925, %v5925
    %v5930 = vpack.c.bf16 %v5926, %v5926
    %v5931 = vld [vmem:[%s3] sm:$0xf]
    %v5932 = vld [vmem:[%s3 + $0x4] sm:$0xf]
    %v5933 = vld [vmem:[%s3 + $0x8] sm:$0xf]
    %v5934 = vld [vmem:[%s3 + $0xc] sm:$0xf]
    %v5935 = vld [vmem:[%s3 + $0x10] sm:$0xf]
    %v5936 = vld [vmem:[%s3 + $0x14] sm:$0xf]
    %v5937 = vld [vmem:[%s3 + $0x18] sm:$0xf]
    %v5938 = vld [vmem:[%s3 + $0x1c] sm:$0xf]
    %v5939 = vld [vmem:[%s3 + $0x20] sm:$0xf]
    %v5940 = vld [vmem:[%s3 + $0x24] sm:$0xf]
    %v5941 = vld [vmem:[%s3 + $0x28] sm:$0xf]
    %v5942 = vld [vmem:[%s3 + $0x2c] sm:$0xf]
    %v5943 = vld [vmem:[%s3 + $0x30] sm:$0xf]
    %v5944 = vld [vmem:[%s3 + $0x34] sm:$0xf]
    %v5945 = vld [vmem:[%s3 + $0x38] sm:$0xf]
    %v5946 = vld [vmem:[%s3 + $0x3c] sm:$0xf]
    %v5947 = vld [vmem:[%s3 + $0x40] sm:$0xf]
    %v5948 = vld [vmem:[%s3 + $0x44] sm:$0xf]
    %v5949 = vld [vmem:[%s3 + $0x48] sm:$0xf]
    %v5950 = vld [vmem:[%s3 + $0x4c] sm:$0xf]
    %v5951 = vld [vmem:[%s3 + $0x50] sm:$0xf]
    %v5952 = vld [vmem:[%s3 + $0x54] sm:$0xf]
    %v5953 = vld [vmem:[%s3 + $0x58] sm:$0xf]
    %v5954 = vld [vmem:[%s3 + $0x5c] sm:$0xf]
    %v5955 = vld [vmem:[%s3 + $0x60] sm:$0xf]
    %v5956 = vld [vmem:[%s3 + $0x64] sm:$0xf]
    %v5957 = vld [vmem:[%s3 + $0x68] sm:$0xf]
    %v5958 = vld [vmem:[%s3 + $0x6c] sm:$0xf]
    %v5959 = vld [vmem:[%s3 + $0x70] sm:$0xf]
    %v5960 = vld [vmem:[%s3 + $0x74] sm:$0xf]
    %v5961 = vld [vmem:[%s3 + $0x78] sm:$0xf]
    %v5962 = vld [vmem:[%s3 + $0x7c] sm:$0xf]
    %v5963 = vlaneseq
    %v5964 = vshrl.u32 %v5963, 7
    %v5965 = vsub.s32 0, %v5964
    %v5966 = vrot.slane %v247, %v5965
    %v5971 = vunpack.c.l.b16 %v5927
    %v5972 = vunpack.c.l.b16 %v5928
    %v5973 = vunpack.c.l.b16 %v5929
    %v5974 = vunpack.c.l.b16 %v5930
    %vm5975 = vcmask 1041409
    %v5976 = vsel %vm5975, %v5973, %v5971
    %v5977 = vsel %vm5975, %v5974, %v5972
    %v5978 = vpack.c.b16 %v5976, %v5976
    %v5979 = vpack.c.b16 %v5977, %v5977
    %v6014 = vunpack.c.l.b16 %v5931
    %v6015 = vunpack.c.l.b16 %v5932
    %v6016 = vunpack.c.l.b16 %v5933
    %v6017 = vunpack.c.l.b16 %v5934
    %v6018 = vunpack.c.l.b16 %v5935
    %v6019 = vunpack.c.l.b16 %v5936
    %v6020 = vunpack.c.l.b16 %v5937
    %v6021 = vunpack.c.l.b16 %v5938
    %v6022 = vunpack.c.l.b16 %v5939
    %v6023 = vunpack.c.l.b16 %v5940
    %v6024 = vunpack.c.l.b16 %v5941
    %v6025 = vunpack.c.l.b16 %v5942
    %v6026 = vunpack.c.l.b16 %v5943
    %v6027 = vunpack.c.l.b16 %v5944
    %v6028 = vunpack.c.l.b16 %v5945
    %v6029 = vunpack.c.l.b16 %v5946
    %v6030 = vunpack.c.l.b16 %v5947
    %v6031 = vunpack.c.l.b16 %v5948
    %v6032 = vunpack.c.l.b16 %v5949
    %v6033 = vunpack.c.l.b16 %v5950
    %v6034 = vunpack.c.l.b16 %v5951
    %v6035 = vunpack.c.l.b16 %v5952
    %v6036 = vunpack.c.l.b16 %v5953
    %v6037 = vunpack.c.l.b16 %v5954
    %v6038 = vunpack.c.l.b16 %v5955
    %v6039 = vunpack.c.l.b16 %v5956
    %v6040 = vunpack.c.l.b16 %v5957
    %v6041 = vunpack.c.l.b16 %v5958
    %v6042 = vunpack.c.l.b16 %v5959
    %v6043 = vunpack.c.l.b16 %v5960
    %v6044 = vunpack.c.l.b16 %v5961
    %v6045 = vunpack.c.l.b16 %v5962
    %v6046 = vpack.c.b16 %v6015, %v6014
    %v6047 = vpack.c.b16 %v6017, %v6016
    %v6048 = vpack.c.b16 %v6019, %v6018
    %v6049 = vpack.c.b16 %v6021, %v6020
    %v6050 = vpack.c.b16 %v6023, %v6022
    %v6051 = vpack.c.b16 %v6025, %v6024
    %v6052 = vpack.c.b16 %v6027, %v6026
    %v6053 = vpack.c.b16 %v6029, %v6028
    %v6054 = vpack.c.b16 %v6031, %v6030
    %v6055 = vpack.c.b16 %v6033, %v6032
    %v6056 = vpack.c.b16 %v6035, %v6034
    %v6057 = vpack.c.b16 %v6037, %v6036
    %v6058 = vpack.c.b16 %v6039, %v6038
    %v6059 = vpack.c.b16 %v6041, %v6040
    %v6060 = vpack.c.b16 %v6043, %v6042
    %v6061 = vpack.c.b16 %v6045, %v6044
    %6078 = vmatprep.subr.bf16.mxu0 0
    %6079 = vmatpush1.bf16.msra.mxu0 %v6046
    %6080 = vmatprep.subr.bf16.mxu0 0
    %6081 = vmatpush1.bf16.msra.mxu0 %v6047
    %6082 = vmatprep.subr.bf16.mxu0 0
    %6083 = vmatpush1.bf16.msra.mxu0 %v6048
    %6084 = vmatprep.subr.bf16.mxu0 0
    %6085 = vmatpush1.bf16.msra.mxu0 %v6049
    %6086 = vmatprep.subr.bf16.mxu0 0
    %6087 = vmatpush1.bf16.msra.mxu0 %v6050
    %6088 = vmatprep.subr.bf16.mxu0 0
    %6089 = vmatpush1.bf16.msra.mxu0 %v6051
    %6090 = vmatprep.subr.bf16.mxu0 0
    %6091 = vmatpush1.bf16.msra.mxu0 %v6052
    %6092 = vmatprep.subr.bf16.mxu0 0
    %6093 = vmatpush1.bf16.msra.mxu0 %v6053
    %6094 = vmatprep.subr.bf16.mxu0 0
    %6095 = vmatpush1.bf16.msra.mxu0 %v6054
    %6096 = vmatprep.subr.bf16.mxu0 0
    %6097 = vmatpush1.bf16.msra.mxu0 %v6055
    %6098 = vmatprep.subr.bf16.mxu0 0
    %6099 = vmatpush1.bf16.msra.mxu0 %v6056
    %6100 = vmatprep.subr.bf16.mxu0 0
    %6101 = vmatpush1.bf16.msra.mxu0 %v6057
    %6102 = vmatprep.subr.bf16.mxu0 0
    %6103 = vmatpush1.bf16.msra.mxu0 %v6058
    %6104 = vmatprep.subr.bf16.mxu0 0
    %6105 = vmatpush1.bf16.msra.mxu0 %v6059
    %6106 = vmatprep.subr.bf16.mxu0 0
    %6107 = vmatpush1.bf16.msra.mxu0 %v6060
    %6108 = vmatprep.subr.bf16.mxu0 0
    %6109 = vmatpush1.bf16.msra.mxu0 %v6061
    %6110 = vmatprep.mubr.bf16.mxu0 %v5979
    %6111 = vmatmul.mubr.bf16.gmra.mrb[0].mxu0 %v5978
    %v6112 = vpop.f32.mrb[0].mxu0
    %v6113 = vadd.f32 %v5966, %v6112
    %v6114 = vpop.f32.mrb[0].mxu0
    %v6115 = vpop.f32.mrb[0].mxu0
    %v6116 = vpop.f32.mrb[0].mxu0
    %6117 = vdwg.mxu0
    %v6118 = vsel %vm740, %v6113, 0.0
    %v6119 = vrot.slane %v6118, 4
    %v6120 = vadd.f32 %v6118, %v6119
    %v6121 = vrot.slane %v6120, 2
    %v6122 = vadd.f32 %v6120, %v6121
    %v6123 = vrot.slane %v6122, 1
    %v6124 = vadd.f32 %v6122, %v6123
    %v6125 = vrcp.pop 2.0
    %v6126 = vmul.f32 %v6124, %v6125
    %v6127 = vsub.f32 %v6113, %v6126
    %v6128 = vmul.f32 %v6127, %v6127
    %v6129 = vsel %vm740, %v6128, 0.0
    %v6130 = vrot.slane %v6129, 4
    %v6131 = vadd.f32 %v6129, %v6130
    %v6132 = vrot.slane %v6131, 2
    %v6133 = vadd.f32 %v6131, %v6132
    %v6134 = vrot.slane %v6133, 1
    %v6135 = vadd.f32 %v6133, %v6134
    %v6136 = vmul.f32 %v6135, %v6125
    %v6137 = vadd.f32 %v6136, 1e-05
    %v6138 = vrsqrt.pop %v6137
    %v6139 = vmul.f32 %v6127, %v6138
    %v6140 = vlaneseq
    %v6141 = vshrl.u32 %v6140, 7
    %v6142 = vsub.s32 1, %v6141
    %v6143 = vrot.slane %v247, %v6142
    %v6144 = vmul.f32 %v6139, %v6143
    %v6145 = vlaneseq
    %v6146 = vshrl.u32 %v6145, 7
    %v6147 = vsub.s32 2, %v6146
    %v6148 = vrot.slane %v247, %v6147
    %v6149 = vadd.f32 %v6144, %v6148
    %6150 = vst [vmem:[#allocation2] sm:$0x3] %v6149
    // Predicated region
    $region22: #{cnn_model_forward.1} parent=1 // pred_check
      _
    $region23: #{cnn_model_forward.1} parent=1 // pred_check_branch
      %6152 = sbr.rel (0) target = $region25
    $region24: #{cnn_model_forward.1} parent=1 // pred_region
      %s6154 = ssub.s32 32, 32
      %6155 = vsyncadd [#allocation3], %s6154
      %s6157 = sshll.u32 [#allocation2], 4
      %s6158 = int_to_ptr.vmem [resolvable:$true] %s6157
      %6160 = dma.vmem_to_hbm [thread:$0]  %s6158, 32, %s5, [#allocation3]
    $region25: #{cnn_model_forward.1} parent=1 // pred_fallthru
      _
    // Predicated region
    $region26: #{cnn_model_forward.1} parent=1 // pred_check
      _
    $region27: #{cnn_model_forward.1} parent=1 // pred_check_branch
      %6162 = sbr.rel (0) target = $region29
    $region28: #{cnn_model_forward.1} parent=1 // pred_region
      %6163 = dma.done [#allocation3], 32
    $region29: #{cnn_model_forward.1} parent=1 // pred_fallthru
      _
    %6164 = vsyncpa [#allocation3], 1

</llo_original>
